<compile_context>
chip_gen: v6e
topology: v6e:2x2x1
jax: 0.10.0
libtpu: 0.0.40
codegen_flags: <defaults>
</compile_context>

<pallas_src>
import jax
import jax.numpy as jnp
from jax.experimental import pallas as pl
from jax.experimental.pallas import tpu as pltpu

# Keep kernel and reference matmuls at f32 precision so the self-test tolerance
# is governed only by the approximate reciprocal.
jax.config.update("jax_default_matmul_precision", "highest")

# ----- problem sizes (small, consistent with the module's __init__) ----------
BATCH = 4            # number of independent graphs stacked on the grid axis
N_NODES = 8          # number of graph nodes
IN_FEATURES = 32     # in_features
N_HIDDEN = 32        # n_hidden (total, across heads; is_concat=True)
N_HEADS = 4          # n_heads
HID = N_HIDDEN // N_HEADS   # per-head hidden size
NEG_SLOPE = 0.2      # LeakyReLU slope used for attention logits
NEG_INF = -1e9


def decode_cora_kernel(vert_ref, edge_ref, w_ref, msrc_ref, mdst_ref,
                       rowsel_ref, reprows_ref, stripe_ref, headmask_ref,
                       out_ref):
    """One batch sample per grid step: fused multi-head GAT + ELU.

    vert_ref : [1, N, F_in]        node features
    edge_ref : [1, N, N]           adjacency mask (float, >0 means edge)
    w_ref    : [F_in, H*HID]       projection weight
    msrc_ref : [H*HID, N*H]        msrc[h'*HID+d, j*H+h] = delta(h,h')*a_src[h,d]
    mdst_ref : [H*HID, N*H]        same with a_dst
    rowsel_ref   : [N, N*H]        rowsel[j', j*H+h]      = delta(j,j')
    reprows_ref  : [N*H, N]        reprows[j*H+h, j']     = delta(j,j')
    stripe_ref   : [N*H, N*H]      stripe[j'*H+h', j*H+h] = delta(h,h')
    headmask_ref : [N*H, H*HID]    headmask[j*H+h, h'*HID+d] = delta(h,h')
    out_ref  : [1, N, H*HID]       output (heads concatenated)
    """
    vert = vert_ref[0]                     # [N, F_in]
    edge = edge_ref[0]                     # [N, N]
    rowsel = rowsel_ref[...]               # [N, N*H]

    # Projection: g = vert @ W  -> [N, H*HID]                             (MXU)
    g = jnp.dot(vert, w_ref[...], preferred_element_type=jnp.float32)

    # Per-node per-head scores, already lane-expanded to [N, N*H]         (MXU)
    #   src_l[n, j*H+h]   = s_src[n, h]
    #   dst_t[j', j*H+h]  = s_dst[j', h]
    src_l = jnp.dot(g, msrc_ref[...], preferred_element_type=jnp.float32)
    dst_t = jnp.dot(g, mdst_ref[...], preferred_element_type=jnp.float32)

    # dst_l[n, j*H+h] = s_dst[j, h]   (select row j, broadcast over n)    (MXU)
    ones_nn = jnp.ones((N_NODES, N_NODES), jnp.float32)
    dst_l = jnp.dot(ones_nn, dst_t * rowsel, preferred_element_type=jnp.float32)

    # attention logits e[n, j*H+h] = LeakyReLU(s_src[n,h] + s_dst[j,h])
    e = src_l + dst_l
    e = jnp.where(e > 0, e, NEG_SLOPE * e)

    # edge mask replicated across heads: edge_rep[n, j*H+h] = edge[n, j]  (MXU)
    edge_rep = jnp.dot(edge, rowsel, preferred_element_type=jnp.float32)
    e = jnp.where(edge_rep > 0, e, NEG_INF)

    # softmax over neighbors j, per (node, head) segment.
    # A per-row max is constant within every head segment -> valid shift.
    e = e - jnp.max(e, axis=-1, keepdims=True)
    p = jnp.exp(e)
    # per-(n, h) denominator broadcast back to lane layout via block-of-ones (MXU)
    denom = jnp.dot(p, stripe_ref[...], preferred_element_type=jnp.float32)
    alpha = p * pl.reciprocal(denom, approx=True)                        # EUP

    # Aggregation as one block-diagonal matmul:
    #   g_blk[j*H+h, h'*HID+d] = delta(h,h') * g[j, h'*HID+d]
    g_blk = jnp.dot(reprows_ref[...], g,
                    preferred_element_type=jnp.float32) * headmask_ref[...]
    x = jnp.dot(alpha, g_blk, preferred_element_type=jnp.float32)        # [N, H*HID]

    # ELU activation (alpha=1.0)
    x = jnp.where(x > 0, x, jnp.exp(jnp.minimum(x, 0.0)) - 1.0)

    # Dropout: identity (inference semantics).
    out_ref[0] = x.astype(out_ref.dtype)


def _build_selector_mats(a_src, a_dst):
    """Static block-diagonal / selector matrices (built in the wrapper, XLA)."""
    H, N, D = N_HEADS, N_NODES, HID
    f32 = jnp.float32
    eye_h = jnp.eye(H, dtype=f32)
    eye_n = jnp.eye(N, dtype=f32)

    # msrc[h'*D+d, j*H+h] = delta(h',h) * a_src[h, d]
    msrc = eye_h[:, None, None, :] * a_src.astype(f32).T[None, :, None, :]
    msrc = jnp.broadcast_to(msrc, (H, D, N, H)).reshape(H * D, N * H)
    mdst = eye_h[:, None, None, :] * a_dst.astype(f32).T[None, :, None, :]
    mdst = jnp.broadcast_to(mdst, (H, D, N, H)).reshape(H * D, N * H)

    # rowsel[j', j*H+h] = delta(j', j)
    rowsel = jnp.broadcast_to(eye_n[:, :, None], (N, N, H)).reshape(N, N * H)
    reprows = rowsel.T                                          # [N*H, N]

    # stripe[j'*H+h', j*H+h] = delta(h', h)
    stripe = jnp.broadcast_to(eye_h[None, :, None, :], (N, H, N, H)).reshape(N * H, N * H)

    # headmask[j*H+h, h'*D+d] = delta(h, h')
    headmask = jnp.broadcast_to(eye_h[None, :, :, None], (N, H, H, D)).reshape(N * H, H * D)

    return msrc, mdst, rowsel, reprows, stripe, headmask


@jax.jit
def decode_cora(vert, edge, w, a_src, a_dst):
    """vert: [B, N, F_in], edge: [B, N, N] -> [B, N, N_HIDDEN]."""
    B = vert.shape[0]
    msrc, mdst, rowsel, reprows, stripe, headmask = _build_selector_mats(a_src, a_dst)

    def shared(shape):
        return pl.BlockSpec(shape, lambda b: tuple(0 for _ in shape))

    in_specs = [
        pl.BlockSpec((1, N_NODES, IN_FEATURES), lambda b: (b, 0, 0)),   # vert
        pl.BlockSpec((1, N_NODES, N_NODES),     lambda b: (b, 0, 0)),   # edge
        shared((IN_FEATURES, N_HIDDEN)),                                # w
        shared((N_HIDDEN, N_NODES * N_HEADS)),                          # msrc
        shared((N_HIDDEN, N_NODES * N_HEADS)),                          # mdst
        shared((N_NODES, N_NODES * N_HEADS)),                           # rowsel
        shared((N_NODES * N_HEADS, N_NODES)),                           # reprows
        shared((N_NODES * N_HEADS, N_NODES * N_HEADS)),                 # stripe
        shared((N_NODES * N_HEADS, N_HIDDEN)),                          # headmask
    ]
    out_specs = pl.BlockSpec((1, N_NODES, N_HIDDEN), lambda b: (b, 0, 0))

    return pl.pallas_call(
        decode_cora_kernel,
        grid=(B,),
        in_specs=in_specs,
        out_specs=out_specs,
        out_shape=jax.ShapeDtypeStruct((B, N_NODES, N_HIDDEN), jnp.float32),
        compiler_params=pltpu.CompilerParams(dimension_semantics=("parallel",)),
    )(vert, edge, w, msrc, mdst, rowsel, reprows, stripe, headmask)


def decode_cora_ref(vert, edge, w, a_src, a_dst):
    """Pure-JAX reference (single sample) for correctness checking."""
    g = (vert @ w).reshape(N_NODES, N_HEADS, HID)
    s_src = jnp.einsum("nhd,hd->nh", g, a_src)           # [N, H]
    s_dst = jnp.einsum("nhd,hd->nh", g, a_dst)           # [N, H]
    e = s_src[:, None, :] + s_dst[None, :, :]            # [N, N, H]
    e = jnp.where(e > 0, e, NEG_SLOPE * e)
    e = jnp.where(edge[:, :, None] > 0, e, NEG_INF)
    alpha = jax.nn.softmax(e, axis=1)
    out = jnp.einsum("njh,jhd->nhd", alpha, g).reshape(N_NODES, N_HIDDEN)
    return jnp.where(out > 0, out, jnp.exp(jnp.minimum(out, 0.0)) - 1.0)


if __name__ == "__main__":
    key = jax.random.PRNGKey(0)
    k_v, k_e, k_w, k_as, k_ad = jax.random.split(key, 5)

    # inputs: batch of independent graphs
    vert = jax.random.normal(k_v, (BATCH, N_NODES, IN_FEATURES), dtype=jnp.float32)
    adj_rand = (jax.random.uniform(k_e, (BATCH, N_NODES, N_NODES)) > 0.5).astype(jnp.float32)
    edge = jnp.maximum(jnp.maximum(adj_rand, jnp.swapaxes(adj_rand, -1, -2)),
                       jnp.eye(N_NODES, dtype=jnp.float32))   # symmetric + self-loops

    # deterministic parameter init (Glorot-ish scaling)
    w = jax.random.normal(k_w, (IN_FEATURES, N_HIDDEN), dtype=jnp.float32) / jnp.sqrt(float(IN_FEATURES))
    a_src = jax.random.normal(k_as, (N_HEADS, HID), dtype=jnp.float32) / jnp.sqrt(float(HID))
    a_dst = jax.random.normal(k_ad, (N_HEADS, HID), dtype=jnp.float32) / jnp.sqrt(float(HID))

    out = decode_cora(vert, edge, w, a_src, a_dst)
    out = jax.block_until_ready(out)

    ref = jax.vmap(decode_cora_ref, in_axes=(0, 0, None, None, None))(vert, edge, w, a_src, a_dst)

    assert out.shape == (BATCH, N_NODES, N_HIDDEN)
    # tolerance accommodates the EUP approximate reciprocal used in the kernel softmax
    assert jnp.allclose(out, ref, atol=5e-3, rtol=5e-3), "mismatch vs JAX reference"

    print("KERNEL_OK")
</pallas_src>

<mosaic_0001>
module attributes {stable_mosaic.version = 11 : i64} {
  func.func @decode_cora_kernel(%arg0: i32, %arg1: memref<1x8x32xf32, #tpu.memory_space<vmem>>, %arg2: memref<1x8x8xf32, #tpu.memory_space<vmem>>, %arg3: memref<32x32xf32, #tpu.memory_space<vmem>>, %arg4: memref<32x32xf32, #tpu.memory_space<vmem>>, %arg5: memref<32x32xf32, #tpu.memory_space<vmem>>, %arg6: memref<8x32xf32, #tpu.memory_space<vmem>>, %arg7: memref<32x8xf32, #tpu.memory_space<vmem>>, %arg8: memref<32x32xf32, #tpu.memory_space<vmem>>, %arg9: memref<32x32xf32, #tpu.memory_space<vmem>>, %arg10: memref<1x8x32xf32, #tpu.memory_space<vmem>>) attributes {dimension_semantics = [#tpu.dimension_semantics<parallel>], iteration_bounds = array<i64: 4>, scalar_prefetch = 0 : i64, scratch_operands = 0 : i64, tpu.core_type = #tpu.core_type<tc>, window_params = [{transform_indices = @transform_0, window_bounds = array<i64: 1, 8, 32>}, {transform_indices = @transform_1, window_bounds = array<i64: 1, 8, 8>}, {pipeline_mode = #tpu.pipeline_mode<synchronous>, transform_indices = @transform_2, window_bounds = array<i64: 32, 32>}, {pipeline_mode = #tpu.pipeline_mode<synchronous>, transform_indices = @transform_3, window_bounds = array<i64: 32, 32>}, {pipeline_mode = #tpu.pipeline_mode<synchronous>, transform_indices = @transform_4, window_bounds = array<i64: 32, 32>}, {pipeline_mode = #tpu.pipeline_mode<synchronous>, transform_indices = @transform_5, window_bounds = array<i64: 8, 32>}, {pipeline_mode = #tpu.pipeline_mode<synchronous>, transform_indices = @transform_6, window_bounds = array<i64: 32, 8>}, {pipeline_mode = #tpu.pipeline_mode<synchronous>, transform_indices = @transform_7, window_bounds = array<i64: 32, 32>}, {pipeline_mode = #tpu.pipeline_mode<synchronous>, transform_indices = @transform_8, window_bounds = array<i64: 32, 32>}, {transform_indices = @transform_9, window_bounds = array<i64: 1, 8, 32>}]} {
    %c0 = arith.constant 0 : index
    %c0_0 = arith.constant 0 : index
    %c0_1 = arith.constant 0 : index
    %0 = vector.load %arg1[%c0, %c0_0, %c0_1] : memref<1x8x32xf32, #tpu.memory_space<vmem>>, vector<1x8x32xf32>
    %1 = vector.shape_cast %0 : vector<1x8x32xf32> to vector<8x32xf32>
    %c0_2 = arith.constant 0 : index
    %c0_3 = arith.constant 0 : index
    %c0_4 = arith.constant 0 : index
    %2 = vector.load %arg2[%c0_2, %c0_3, %c0_4] : memref<1x8x8xf32, #tpu.memory_space<vmem>>, vector<1x8x8xf32>
    %3 = vector.shape_cast %2 : vector<1x8x8xf32> to vector<8x8xf32>
    %c0_5 = arith.constant 0 : index
    %c0_6 = arith.constant 0 : index
    %4 = vector.load %arg6[%c0_5, %c0_6] : memref<8x32xf32, #tpu.memory_space<vmem>>, vector<8x32xf32>
    %c0_7 = arith.constant 0 : index
    %c0_8 = arith.constant 0 : index
    %5 = vector.load %arg3[%c0_7, %c0_8] : memref<32x32xf32, #tpu.memory_space<vmem>>, vector<32x32xf32>
    %cst = arith.constant dense<0.000000e+00> : vector<8x32xf32>
    %6 = tpu.matmul %1, %5, %cst {dimension_numbers = #tpu.dot_dimension_numbers<[1], [0], [0], [1], [0, 0, 1, 1], [], []>, precision = #tpu.contract_precision<fp32>} : vector<8x32xf32>, vector<32x32xf32>, vector<8x32xf32> -> vector<8x32xf32>
    %c0_9 = arith.constant 0 : index
    %c0_10 = arith.constant 0 : index
    %7 = vector.load %arg4[%c0_9, %c0_10] : memref<32x32xf32, #tpu.memory_space<vmem>>, vector<32x32xf32>
    %cst_11 = arith.constant dense<0.000000e+00> : vector<8x32xf32>
    %8 = tpu.matmul %6, %7, %cst_11 {dimension_numbers = #tpu.dot_dimension_numbers<[1], [0], [0], [1], [0, 0, 1, 1], [], []>, precision = #tpu.contract_precision<fp32>} : vector<8x32xf32>, vector<32x32xf32>, vector<8x32xf32> -> vector<8x32xf32>
    %c0_12 = arith.constant 0 : index
    %c0_13 = arith.constant 0 : index
    %9 = vector.load %arg5[%c0_12, %c0_13] : memref<32x32xf32, #tpu.memory_space<vmem>>, vector<32x32xf32>
    %cst_14 = arith.constant dense<0.000000e+00> : vector<8x32xf32>
    %10 = tpu.matmul %6, %9, %cst_14 {dimension_numbers = #tpu.dot_dimension_numbers<[1], [0], [0], [1], [0, 0, 1, 1], [], []>, precision = #tpu.contract_precision<fp32>} : vector<8x32xf32>, vector<32x32xf32>, vector<8x32xf32> -> vector<8x32xf32>
    %cst_15 = arith.constant 1.000000e+00 : f32
    %11 = vector.broadcast %cst_15 : f32 to vector<8x8xf32>
    %12 = arith.mulf %10, %4 : vector<8x32xf32>
    %cst_16 = arith.constant dense<0.000000e+00> : vector<8x32xf32>
    %13 = tpu.matmul %11, %12, %cst_16 {dimension_numbers = #tpu.dot_dimension_numbers<[1], [0], [0], [1], [0, 0, 1, 1], [], []>, precision = #tpu.contract_precision<fp32>} : vector<8x8xf32>, vector<8x32xf32>, vector<8x32xf32> -> vector<8x32xf32>
    %14 = arith.addf %8, %13 : vector<8x32xf32>
    %cst_17 = arith.constant 0.000000e+00 : f32
    %15 = vector.broadcast %cst_17 : f32 to vector<8x32xf32>
    %16 = arith.cmpf ogt, %14, %15 : vector<8x32xf32>
    %cst_18 = arith.constant 2.000000e-01 : f32
    %17 = vector.broadcast %cst_18 : f32 to vector<8x32xf32>
    %18 = arith.mulf %17, %14 : vector<8x32xf32>
    %19 = arith.select %16, %14, %18 : vector<8x32xi1>, vector<8x32xf32>
    %cst_19 = arith.constant dense<0.000000e+00> : vector<8x32xf32>
    %20 = tpu.matmul %3, %4, %cst_19 {dimension_numbers = #tpu.dot_dimension_numbers<[1], [0], [0], [1], [0, 0, 1, 1], [], []>, precision = #tpu.contract_precision<fp32>} : vector<8x8xf32>, vector<8x32xf32>, vector<8x32xf32> -> vector<8x32xf32>
    %cst_20 = arith.constant 0.000000e+00 : f32
    %21 = vector.broadcast %cst_20 : f32 to vector<8x32xf32>
    %22 = arith.cmpf ogt, %20, %21 : vector<8x32xf32>
    %cst_21 = arith.constant -1.000000e+09 : f32
    %23 = vector.broadcast %cst_21 : f32 to vector<8x32xf32>
    %24 = arith.select %22, %19, %23 : vector<8x32xi1>, vector<8x32xf32>
    %cst_22 = arith.constant dense<0xFF800000> : vector<8xf32>
    %25 = vector.multi_reduction <maximumf>, %24, %cst_22 [1] : vector<8x32xf32> to vector<8xf32>
    %26 = vector.shape_cast %25 : vector<8xf32> to vector<8x1xf32>
    %27 = vector.broadcast %26 : vector<8x1xf32> to vector<8x32xf32>
    %28 = arith.subf %24, %27 : vector<8x32xf32>
    %29 = math.exp %28 : vector<8x32xf32>
    %c0_23 = arith.constant 0 : index
    %c0_24 = arith.constant 0 : index
    %30 = vector.load %arg8[%c0_23, %c0_24] : memref<32x32xf32, #tpu.memory_space<vmem>>, vector<32x32xf32>
    %cst_25 = arith.constant dense<0.000000e+00> : vector<8x32xf32>
    %31 = tpu.matmul %29, %30, %cst_25 {dimension_numbers = #tpu.dot_dimension_numbers<[1], [0], [0], [1], [0, 0, 1, 1], [], []>, precision = #tpu.contract_precision<fp32>} : vector<8x32xf32>, vector<32x32xf32>, vector<8x32xf32> -> vector<8x32xf32>
    %32 = tpu.reciprocal %31 {approx = true} : vector<8x32xf32> -> vector<8x32xf32>
    %33 = arith.mulf %29, %32 : vector<8x32xf32>
    %c0_26 = arith.constant 0 : index
    %c0_27 = arith.constant 0 : index
    %34 = vector.load %arg7[%c0_26, %c0_27] : memref<32x8xf32, #tpu.memory_space<vmem>>, vector<32x8xf32>
    %cst_28 = arith.constant dense<0.000000e+00> : vector<32x32xf32>
    %35 = tpu.matmul %34, %6, %cst_28 {dimension_numbers = #tpu.dot_dimension_numbers<[1], [0], [0], [1], [0, 0, 1, 1], [], []>, precision = #tpu.contract_precision<fp32>} : vector<32x8xf32>, vector<8x32xf32>, vector<32x32xf32> -> vector<32x32xf32>
    %c0_29 = arith.constant 0 : index
    %c0_30 = arith.constant 0 : index
    %36 = vector.load %arg9[%c0_29, %c0_30] : memref<32x32xf32, #tpu.memory_space<vmem>>, vector<32x32xf32>
    %37 = arith.mulf %35, %36 : vector<32x32xf32>
    %cst_31 = arith.constant dense<0.000000e+00> : vector<8x32xf32>
    %38 = tpu.matmul %33, %37, %cst_31 {dimension_numbers = #tpu.dot_dimension_numbers<[1], [0], [0], [1], [0, 0, 1, 1], [], []>, precision = #tpu.contract_precision<fp32>} : vector<8x32xf32>, vector<32x32xf32>, vector<8x32xf32> -> vector<8x32xf32>
    %cst_32 = arith.constant 0.000000e+00 : f32
    %39 = vector.broadcast %cst_32 : f32 to vector<8x32xf32>
    %40 = arith.cmpf ogt, %38, %39 : vector<8x32xf32>
    %cst_33 = arith.constant 0.000000e+00 : f32
    %41 = vector.broadcast %cst_33 : f32 to vector<8x32xf32>
    %42 = arith.minimumf %38, %41 : vector<8x32xf32>
    %43 = math.exp %42 : vector<8x32xf32>
    %cst_34 = arith.constant 1.000000e+00 : f32
    %44 = vector.broadcast %cst_34 : f32 to vector<8x32xf32>
    %45 = arith.subf %43, %44 : vector<8x32xf32>
    %46 = arith.select %40, %38, %45 : vector<8x32xi1>, vector<8x32xf32>
    %c0_35 = arith.constant 0 : index
    %c0_36 = arith.constant 0 : index
    %c0_37 = arith.constant 0 : index
    %47 = vector.load %arg10[%c0_35, %c0_36, %c0_37] : memref<1x8x32xf32, #tpu.memory_space<vmem>>, vector<1x8x32xf32>
    %48 = vector.shape_cast %47 : vector<1x8x32xf32> to vector<8x32xf32>
    %49 = vector.shape_cast %46 : vector<8x32xf32> to vector<1x8x32xf32>
    tpu.vector_store %arg10[%c0_35, %c0_36, %c0_37], %49 {strides = array<i32>} : memref<1x8x32xf32, #tpu.memory_space<vmem>>, vector<1x8x32xf32>,
    return
  }
  func.func @transform_0(%arg0: i32) -> (i32, i32, i32) {
    %c0_i32 = arith.constant 0 : i32
    %c0_i32_0 = arith.constant 0 : i32
    %c0_i32_1 = arith.constant 0 : i32
    return %arg0, %c0_i32, %c0_i32_0 : i32, i32, i32
  }
  func.func @transform_1(%arg0: i32) -> (i32, i32, i32) {
    %c0_i32 = arith.constant 0 : i32
    %c0_i32_0 = arith.constant 0 : i32
    %c0_i32_1 = arith.constant 0 : i32
    return %arg0, %c0_i32, %c0_i32_0 : i32, i32, i32
  }
  func.func @transform_2(%arg0: i32) -> (i32, i32) {
    %c0_i32 = arith.constant 0 : i32
    %c0_i32_0 = arith.constant 0 : i32
    %c0_i32_1 = arith.constant 0 : i32
    return %c0_i32, %c0_i32_0 : i32, i32
  }
  func.func @transform_3(%arg0: i32) -> (i32, i32) {
    %c0_i32 = arith.constant 0 : i32
    %c0_i32_0 = arith.constant 0 : i32
    %c0_i32_1 = arith.constant 0 : i32
    return %c0_i32, %c0_i32_0 : i32, i32
  }
  func.func @transform_4(%arg0: i32) -> (i32, i32) {
    %c0_i32 = arith.constant 0 : i32
    %c0_i32_0 = arith.constant 0 : i32
    %c0_i32_1 = arith.constant 0 : i32
    return %c0_i32, %c0_i32_0 : i32, i32
  }
  func.func @transform_5(%arg0: i32) -> (i32, i32) {
    %c0_i32 = arith.constant 0 : i32
    %c0_i32_0 = arith.constant 0 : i32
    %c0_i32_1 = arith.constant 0 : i32
    return %c0_i32, %c0_i32_0 : i32, i32
  }
  func.func @transform_6(%arg0: i32) -> (i32, i32) {
    %c0_i32 = arith.constant 0 : i32
    %c0_i32_0 = arith.constant 0 : i32
    %c0_i32_1 = arith.constant 0 : i32
    return %c0_i32, %c0_i32_0 : i32, i32
  }
  func.func @transform_7(%arg0: i32) -> (i32, i32) {
    %c0_i32 = arith.constant 0 : i32
    %c0_i32_0 = arith.constant 0 : i32
    %c0_i32_1 = arith.constant 0 : i32
    return %c0_i32, %c0_i32_0 : i32, i32
  }
  func.func @transform_8(%arg0: i32) -> (i32, i32) {
    %c0_i32 = arith.constant 0 : i32
    %c0_i32_0 = arith.constant 0 : i32
    %c0_i32_1 = arith.constant 0 : i32
    return %c0_i32, %c0_i32_0 : i32, i32
  }
  func.func @transform_9(%arg0: i32) -> (i32, i32, i32) {
    %c0_i32 = arith.constant 0 : i32
    %c0_i32_0 = arith.constant 0 : i32
    %c0_i32_1 = arith.constant 0 : i32
    return %arg0, %c0_i32, %c0_i32_0 : i32, i32, i32
  }
}

</mosaic_0001>

<llo_original>
// kernel: decode_cora.1
$region0: #{decode_cora.1}
  #allocation0 [shape = 'u32[]', space=smem, size = 0x4, offset = 0x4, fixed_abs, tag = 'smem constant byte address 0x4 - core index']
  #allocation1 [shape = 'u32[144,128]{1,0:T(1,128)}', space=vmem, size = 0x12000, scoped, tag = 'internal scratch']
  %s0 = inlined_call_operand.vmem [shape: f32[4,8,32], index: 0, kind: input, shape index: {}]
  %s1 = inlined_call_operand.vmem [shape: f32[4,8,8], index: 1, kind: input, shape index: {}]
  %s2 = inlined_call_operand.vmem [shape: f32[32,32], index: 2, kind: input, shape index: {}]
  %s3 = inlined_call_operand.vmem [shape: f32[32,32], index: 3, kind: input, shape index: {}]
  %s4 = inlined_call_operand.vmem [shape: f32[32,32], index: 4, kind: input, shape index: {}]
  %s5 = inlined_call_operand.vmem [shape: f32[8,32], index: 5, kind: input, shape index: {}]
  %s6 = inlined_call_operand.vmem [shape: f32[32,8], index: 6, kind: input, shape index: {}]
  %s7 = inlined_call_operand.vmem [shape: f32[32,32], index: 7, kind: input, shape index: {}]
  %s8 = inlined_call_operand.vmem [shape: f32[32,32], index: 8, kind: input, shape index: {}]
  %s9 = inlined_call_operand.hbm [shape: f32[4,8,32], index: 9, kind: output, shape index: {}]
  %s10 = sld [smem:[#allocation0]]
  $region69: #{decode_cora.1} parent=0
    _
  %s12 = ssub.s32 1, %s10
  %s13 = scalar_select 0, %s12, %s10
  $region1: #{decode_cora.1} parent=0
    #allocation2 [shape = 'u8[8192]{0}', space=vmem, size = 0x2000, scoped, tag = 'output window, operand 0']
    #allocation3 [shape = 's32[2]{0}', space=sflag, size = 0x8, scoped, tag = 'scoped memory for decode_cora.1']
    %14 = vsyncpa [#allocation3], 0
    %s15 = scalar_lea.sflag [#allocation3], 1
    %16 = vsyncpa %s15, 0
    loop: start=0, step=1, limit=6
    $region2: #{decode_cora.1} parent=1 // loop_pre_header
      _
    $region3: #{decode_cora.1} parent=1 // loop_header
      %s18 = sphi 0, %s22
      %p19 = scmp.ge.s32.totalorder %s18, 6
      %s28 = sphi 0, %s30
      %s31 = sphi 0, %s28
      %s32 = sphi 0, %s31
      %s48 = sphi 0, %s32
      %s54 = sphi 0, %s56
      %s57 = sphi 0, %s54
      %s58 = sphi 0, %s57
      %s74 = sphi 0, %s58
      %s78 = sphi 0, %s78
      %s80 = sphi 0, %s78
      %s81 = sphi 0, %s80
      %s95 = sphi 0, %s81
      %s99 = sphi 0, %s99
      %s101 = sphi 0, %s99
      %s102 = sphi 0, %s101
      %s116 = sphi 0, %s102
      %s120 = sphi 0, %s120
      %s122 = sphi 0, %s120
      %s123 = sphi 0, %s122
      %s137 = sphi 0, %s123
      %s141 = sphi 0, %s141
      %s143 = sphi 0, %s141
      %s144 = sphi 0, %s143
      %s158 = sphi 0, %s144
      %s162 = sphi 0, %s162
      %s164 = sphi 0, %s162
      %s165 = sphi 0, %s164
      %s179 = sphi 0, %s165
      %s183 = sphi 0, %s183
      %s185 = sphi 0, %s183
      %s186 = sphi 0, %s185
      %s200 = sphi 0, %s186
      %s204 = sphi 0, %s204
      %s206 = sphi 0, %s204
      %s207 = sphi 0, %s206
      %s221 = sphi 0, %s207
      %s227 = sphi 0, %s229
      %s230 = sphi 0, %s227
      %s231 = sphi 0, %s230
      %s247 = sphi 0, %s231
    $region4: #{decode_cora.1} parent=1 // loop_header_branch
      %21 = sbr.rel (%p19) target = $region8
    $region5: #{decode_cora.1} parent=1 // loop_body
      %s23 = ssub.s32 %s18, 1
      %s24 = ssub.s32 %s18, 2
      %s25 = sadd.s32 %s18, 1
      %s26 = ssub.s32 %s18, %s25
      %p27 = scmp.eq.s32.totalorder %s26, 0
      %s29 = sadd.s32 %s28, 1
      %s30 = scalar_select %p27, %s28, %s29
      %p33 = pneg %p27
      %p34 = scmp.eq.s32.totalorder %s18, 3
      %p35 = por %p33, %p34
      %p36 = scmp.ne.s32.totalorder %s28, %s31
      %p37 = scmp.eq.s32.totalorder %s18, 0
      %p38 = por %p36, %p37
      %p39 = scmp.ne.s32.totalorder %s28, %s31
      %p40 = scmp.eq.s32.totalorder %s23, 3
      %p41 = por %p39, %p40
      %p42 = scmp.ne.s32.totalorder %s31, %s32
      %p43 = scmp.eq.s32.totalorder %s23, 0
      %p44 = por %p42, %p43
      %p45 = scmp.ne.s32.totalorder %s31, %s32
      %p46 = scmp.eq.s32.totalorder %s24, 3
      %p47 = por %p45, %p46
      %p49 = scmp.ne.s32.totalorder %s32, %s48
      %p50 = scmp.eq.s32.totalorder %s24, 0
      %p51 = por %p49, %p50
      %s52 = ssub.s32 %s18, %s25
      %p53 = scmp.eq.s32.totalorder %s52, 0
      %s55 = sadd.s32 %s54, 1
      %s56 = scalar_select %p53, %s54, %s55
      %p59 = pneg %p53
      %p60 = scmp.eq.s32.totalorder %s18, 3
      %p61 = por %p59, %p60
      %p62 = scmp.ne.s32.totalorder %s54, %s57
      %p63 = scmp.eq.s32.totalorder %s18, 0
      %p64 = por %p62, %p63
      %p65 = scmp.ne.s32.totalorder %s54, %s57
      %p66 = scmp.eq.s32.totalorder %s23, 3
      %p67 = por %p65, %p66
      %p68 = scmp.ne.s32.totalorder %s57, %s58
      %p69 = scmp.eq.s32.totalorder %s23, 0
      %p70 = por %p68, %p69
      %p71 = scmp.ne.s32.totalorder %s57, %s58
      %p72 = scmp.eq.s32.totalorder %s24, 3
      %p73 = por %p71, %p72
      %p75 = scmp.ne.s32.totalorder %s58, %s74
      %p76 = scmp.eq.s32.totalorder %s24, 0
      %p77 = por %p75, %p76
      %s79 = sadd.s32 %s78, 1
      %p82 = scmp.eq.s32.totalorder %s18, 3
      %p83 = scmp.ne.s32.totalorder %s78, %s80
      %p84 = scmp.eq.s32.totalorder %s18, 0
      %p85 = por %p83, %p84
      %p86 = scmp.ne.s32.totalorder %s78, %s80
      %p87 = scmp.eq.s32.totalorder %s23, 3
      %p88 = por %p86, %p87
      %p89 = scmp.ne.s32.totalorder %s80, %s81
      %p90 = scmp.eq.s32.totalorder %s23, 0
      %p91 = por %p89, %p90
      %p92 = scmp.ne.s32.totalorder %s80, %s81
      %p93 = scmp.eq.s32.totalorder %s24, 3
      %p94 = por %p92, %p93
      %p96 = scmp.ne.s32.totalorder %s81, %s95
      %p97 = scmp.eq.s32.totalorder %s24, 0
      %p98 = por %p96, %p97
      %s100 = sadd.s32 %s99, 1
      %p103 = scmp.eq.s32.totalorder %s18, 3
      %p104 = scmp.ne.s32.totalorder %s99, %s101
      %p105 = scmp.eq.s32.totalorder %s18, 0
      %p106 = por %p104, %p105
      %p107 = scmp.ne.s32.totalorder %s99, %s101
      %p108 = scmp.eq.s32.totalorder %s23, 3
      %p109 = por %p107, %p108
      %p110 = scmp.ne.s32.totalorder %s101, %s102
      %p111 = scmp.eq.s32.totalorder %s23, 0
      %p112 = por %p110, %p111
      %p113 = scmp.ne.s32.totalorder %s101, %s102
      %p114 = scmp.eq.s32.totalorder %s24, 3
      %p115 = por %p113, %p114
      %p117 = scmp.ne.s32.totalorder %s102, %s116
      %p118 = scmp.eq.s32.totalorder %s24, 0
      %p119 = por %p117, %p118
      %s121 = sadd.s32 %s120, 1
      %p124 = scmp.eq.s32.totalorder %s18, 3
      %p125 = scmp.ne.s32.totalorder %s120, %s122
      %p126 = scmp.eq.s32.totalorder %s18, 0
      %p127 = por %p125, %p126
      %p128 = scmp.ne.s32.totalorder %s120, %s122
      %p129 = scmp.eq.s32.totalorder %s23, 3
      %p130 = por %p128, %p129
      %p131 = scmp.ne.s32.totalorder %s122, %s123
      %p132 = scmp.eq.s32.totalorder %s23, 0
      %p133 = por %p131, %p132
      %p134 = scmp.ne.s32.totalorder %s122, %s123
      %p135 = scmp.eq.s32.totalorder %s24, 3
      %p136 = por %p134, %p135
      %p138 = scmp.ne.s32.totalorder %s123, %s137
      %p139 = scmp.eq.s32.totalorder %s24, 0
      %p140 = por %p138, %p139
      %s142 = sadd.s32 %s141, 1
      %p145 = scmp.eq.s32.totalorder %s18, 3
      %p146 = scmp.ne.s32.totalorder %s141, %s143
      %p147 = scmp.eq.s32.totalorder %s18, 0
      %p148 = por %p146, %p147
      %p149 = scmp.ne.s32.totalorder %s141, %s143
      %p150 = scmp.eq.s32.totalorder %s23, 3
      %p151 = por %p149, %p150
      %p152 = scmp.ne.s32.totalorder %s143, %s144
      %p153 = scmp.eq.s32.totalorder %s23, 0
      %p154 = por %p152, %p153
      %p155 = scmp.ne.s32.totalorder %s143, %s144
      %p156 = scmp.eq.s32.totalorder %s24, 3
      %p157 = por %p155, %p156
      %p159 = scmp.ne.s32.totalorder %s144, %s158
      %p160 = scmp.eq.s32.totalorder %s24, 0
      %p161 = por %p159, %p160
      %s163 = sadd.s32 %s162, 1
      %p166 = scmp.eq.s32.totalorder %s18, 3
      %p167 = scmp.ne.s32.totalorder %s162, %s164
      %p168 = scmp.eq.s32.totalorder %s18, 0
      %p169 = por %p167, %p168
      %p170 = scmp.ne.s32.totalorder %s162, %s164
      %p171 = scmp.eq.s32.totalorder %s23, 3
      %p172 = por %p170, %p171
      %p173 = scmp.ne.s32.totalorder %s164, %s165
      %p174 = scmp.eq.s32.totalorder %s23, 0
      %p175 = por %p173, %p174
      %p176 = scmp.ne.s32.totalorder %s164, %s165
      %p177 = scmp.eq.s32.totalorder %s24, 3
      %p178 = por %p176, %p177
      %p180 = scmp.ne.s32.totalorder %s165, %s179
      %p181 = scmp.eq.s32.totalorder %s24, 0
      %p182 = por %p180, %p181
      %s184 = sadd.s32 %s183, 1
      %p187 = scmp.eq.s32.totalorder %s18, 3
      %p188 = scmp.ne.s32.totalorder %s183, %s185
      %p189 = scmp.eq.s32.totalorder %s18, 0
      %p190 = por %p188, %p189
      %p191 = scmp.ne.s32.totalorder %s183, %s185
      %p192 = scmp.eq.s32.totalorder %s23, 3
      %p193 = por %p191, %p192
      %p194 = scmp.ne.s32.totalorder %s185, %s186
      %p195 = scmp.eq.s32.totalorder %s23, 0
      %p196 = por %p194, %p195
      %p197 = scmp.ne.s32.totalorder %s185, %s186
      %p198 = scmp.eq.s32.totalorder %s24, 3
      %p199 = por %p197, %p198
      %p201 = scmp.ne.s32.totalorder %s186, %s200
      %p202 = scmp.eq.s32.totalorder %s24, 0
      %p203 = por %p201, %p202
      %s205 = sadd.s32 %s204, 1
      %p208 = scmp.eq.s32.totalorder %s18, 3
      %p209 = scmp.ne.s32.totalorder %s204, %s206
      %p210 = scmp.eq.s32.totalorder %s18, 0
      %p211 = por %p209, %p210
      %p212 = scmp.ne.s32.totalorder %s204, %s206
      %p213 = scmp.eq.s32.totalorder %s23, 3
      %p214 = por %p212, %p213
      %p215 = scmp.ne.s32.totalorder %s206, %s207
      %p216 = scmp.eq.s32.totalorder %s23, 0
      %p217 = por %p215, %p216
      %p218 = scmp.ne.s32.totalorder %s206, %s207
      %p219 = scmp.eq.s32.totalorder %s24, 3
      %p220 = por %p218, %p219
      %p222 = scmp.ne.s32.totalorder %s207, %s221
      %p223 = scmp.eq.s32.totalorder %s24, 0
      %p224 = por %p222, %p223
      %s225 = ssub.s32 %s18, %s25
      %p226 = scmp.eq.s32.totalorder %s225, 0
      %s228 = sadd.s32 %s227, 1
      %s229 = scalar_select %p226, %s227, %s228
      %p232 = pneg %p226
      %p233 = scmp.eq.s32.totalorder %s18, 3
      %p234 = por %p232, %p233
      %p235 = scmp.ne.s32.totalorder %s227, %s230
      %p236 = scmp.eq.s32.totalorder %s18, 0
      %p237 = por %p235, %p236
      %p238 = scmp.ne.s32.totalorder %s227, %s230
      %p239 = scmp.eq.s32.totalorder %s23, 3
      %p240 = por %p238, %p239
      %p241 = scmp.ne.s32.totalorder %s230, %s231
      %p242 = scmp.eq.s32.totalorder %s23, 0
      %p243 = por %p241, %p242
      %p244 = scmp.ne.s32.totalorder %s230, %s231
      %p245 = scmp.eq.s32.totalorder %s24, 3
      %p246 = por %p244, %p245
      %p248 = scmp.ne.s32.totalorder %s231, %s247
      %p249 = scmp.eq.s32.totalorder %s24, 0
      %p250 = por %p248, %p249
      %p251 = scmp.le.s32.totalorder 1, %s18
      %p252 = scmp.lt.s32.totalorder %s18, 5
      %p253 = pnand %p251, %p252
      %p254 = pneg %p253
      // Predicated region
      $region9: #{decode_cora.1} parent=5 // pred_check
        _
      $region10: #{decode_cora.1} parent=5 // pred_check_branch
        %256 = sbr.rel (%p253) target = $region12
      $region11: #{decode_cora.1} parent=5 // pred_region
        %s257 = ssub.s32 %s18, 1
        // Predicated region
        $region13: #{decode_cora.1} parent=11 // pred_check
          %p258 = pneg %p91
        $region14: #{decode_cora.1} parent=11 // pred_check_branch
          %260 = sbr.rel (%p258) target = $region16
        $region15: #{decode_cora.1} parent=11 // pred_region
          _
        $region16: #{decode_cora.1} parent=11 // pred_fallthru
          _
        // Predicated region
        $region17: #{decode_cora.1} parent=11 // pred_check
          %p261 = pneg %p112
        $region18: #{decode_cora.1} parent=11 // pred_check_branch
          %263 = sbr.rel (%p261) target = $region20
        $region19: #{decode_cora.1} parent=11 // pred_region
          _
        $region20: #{decode_cora.1} parent=11 // pred_fallthru
          _
        // Predicated region
        $region21: #{decode_cora.1} parent=11 // pred_check
          %p264 = pneg %p133
        $region22: #{decode_cora.1} parent=11 // pred_check_branch
          %266 = sbr.rel (%p264) target = $region24
        $region23: #{decode_cora.1} parent=11 // pred_region
          _
        $region24: #{decode_cora.1} parent=11 // pred_fallthru
          _
        // Predicated region
        $region25: #{decode_cora.1} parent=11 // pred_check
          %p267 = pneg %p154
        $region26: #{decode_cora.1} parent=11 // pred_check_branch
          %269 = sbr.rel (%p267) target = $region28
        $region27: #{decode_cora.1} parent=11 // pred_region
          _
        $region28: #{decode_cora.1} parent=11 // pred_fallthru
          _
        // Predicated region
        $region29: #{decode_cora.1} parent=11 // pred_check
          %p270 = pneg %p175
        $region30: #{decode_cora.1} parent=11 // pred_check_branch
          %272 = sbr.rel (%p270) target = $region32
        $region31: #{decode_cora.1} parent=11 // pred_region
          _
        $region32: #{decode_cora.1} parent=11 // pred_fallthru
          _
        // Predicated region
        $region33: #{decode_cora.1} parent=11 // pred_check
          %p273 = pneg %p196
        $region34: #{decode_cora.1} parent=11 // pred_check_branch
          %275 = sbr.rel (%p273) target = $region36
        $region35: #{decode_cora.1} parent=11 // pred_region
          _
        $region36: #{decode_cora.1} parent=11 // pred_fallthru
          _
        // Predicated region
        $region37: #{decode_cora.1} parent=11 // pred_check
          %p276 = pneg %p217
        $region38: #{decode_cora.1} parent=11 // pred_check_branch
          %278 = sbr.rel (%p276) target = $region40
        $region39: #{decode_cora.1} parent=11 // pred_region
          _
        $region40: #{decode_cora.1} parent=11 // pred_fallthru
          _
      $region12: #{decode_cora.1} parent=5 // pred_fallthru
        _
      %p279 = scmp.lt.s32.totalorder %s18, 4
      // Predicated region
      $region41: #{decode_cora.1} parent=5 // pred_check
        %p280 = pneg %p279
      $region42: #{decode_cora.1} parent=5 // pred_check_branch
        %282 = sbr.rel (%p280) target = $region44
      $region43: #{decode_cora.1} parent=5 // pred_region
        // Predicated region
        $region45: #{decode_cora.1} parent=43 // pred_check
          %p283 = pneg %p38
        $region46: #{decode_cora.1} parent=43 // pred_check_branch
          %285 = sbr.rel (%p283) target = $region48
        $region47: #{decode_cora.1} parent=43 // pred_region
          %p286 = scmp.lt.s32.totalorder %s18, 3
          %s287 = scalar_select %p286, %s18, 3
          %s288 = smul.addr %s287, 8
          %s289 = scalar_lea.vmem %s0, %s288
        $region48: #{decode_cora.1} parent=43 // pred_fallthru
          _
        // Predicated region
        $region49: #{decode_cora.1} parent=43 // pred_check
          %p290 = pneg %p64
        $region50: #{decode_cora.1} parent=43 // pred_check_branch
          %292 = sbr.rel (%p290) target = $region52
        $region51: #{decode_cora.1} parent=43 // pred_region
          %p293 = scmp.lt.s32.totalorder %s18, 3
          %s294 = scalar_select %p293, %s18, 3
          %s295 = smul.addr %s294, 8
          %s296 = scalar_lea.vmem %s1, %s295
        $region52: #{decode_cora.1} parent=43 // pred_fallthru
          _
      $region44: #{decode_cora.1} parent=5 // pred_fallthru
        _
      %p297 = scmp.le.s32.totalorder 1, %s18
      %p298 = scmp.lt.s32.totalorder %s18, 5
      %p299 = pnand %p297, %p298
      %p300 = pneg %p299
      // Predicated region
      $region53: #{decode_cora.1} parent=5 // pred_check
        _
      $region54: #{decode_cora.1} parent=5 // pred_check_branch
        %302 = sbr.rel (%p299) target = $region56
      $region55: #{decode_cora.1} parent=5 // pred_region
        %s303 = ssub.s32 %s18, 1
        %p304 = scmp.lt.s32.totalorder %s23, 3
        %s305 = scalar_select %p304, %s23, 3
        %s306 = smul.addr %s305, 8
        %s307 = scalar_lea.vmem %s0, %s306
        %p308 = pneg %p44
        %p309 = pneg %p41
        %p310 = scmp.lt.s32.totalorder %s23, 3
        %s311 = scalar_select %p310, %s23, 3
        %s312 = smul.addr %s311, 8
        %s313 = scalar_lea.vmem %s1, %s312
        %p314 = pneg %p70
        %p315 = pneg %p67
        %p316 = pneg %p91
        %p317 = pneg %p88
        %p318 = pneg %p112
        %p319 = pneg %p109
        %p320 = pneg %p133
        %p321 = pneg %p130
        %p322 = pneg %p154
        %p323 = pneg %p151
        %p324 = pneg %p175
        %p325 = pneg %p172
        %p326 = pneg %p196
        %p327 = pneg %p193
        %p328 = pneg %p217
        %p329 = pneg %p214
        %p330 = pneg %p243
        %p331 = pneg %p240
        %s332 = sand.u32 %s230, 1
        %s333 = scalar_lea.sflag [#allocation3], %s332
        %s334 = sand.u32 %s230, 1
        %s335 = smul.addr %s334, 8
        %s336 = scalar_lea.vmem [#allocation2], %s335
        %p337 = scmp.lt.s32.totalorder %s23, 3
        %s338 = scalar_select %p337, %s23, 3
        %s339 = smul.addr %s338, 8
        %s340 = scalar_lea.vmem %s0, %s339
        %p341 = scmp.lt.s32.totalorder %s23, 3
        %s342 = scalar_select %p341, %s23, 3
        %s343 = smul.addr %s342, 8
        %s344 = scalar_lea.vmem %s1, %s343
        %v345 = vld [vmem:[%s340] sm:$0xff]
        %v346 = vld [vmem:[%s344] sm:$0xff]
        %v347 = vld [vmem:[%s5] sm:$0xff]
        %v348 = vld [vmem:[%s2] sm:$0xff]
        %v349 = vld [vmem:[%s2 + $0x8] sm:$0xff]
        %v350 = vld [vmem:[%s2 + $0x10] sm:$0xff]
        %v351 = vld [vmem:[%s2 + $0x18] sm:$0xff]
        %vm352 = vcmask 261120
        %v354 = vsel %vm352, %v345, 0
        %356 = vmatprep.subr.mxu0 0.0
        %357 = vmatpush1.msra.mxu0 0.0
        %358 = vmatprep.subr.mxu0 0.0
        %359 = vmatpush1.msra.mxu0 0.0
        %360 = vmatprep.subr.mxu0 0.0
        %361 = vmatpush1.msra.mxu0 0.0
        %362 = vmatprep.subr.mxu0 0.0
        %363 = vmatpush1.msra.mxu0 0.0
        %364 = vmatprep.subr.mxu0 0.0
        %365 = vmatpush1.msra.mxu0 0.0
        %366 = vmatprep.subr.mxu0 0.0
        %367 = vmatpush1.msra.mxu0 0.0
        %368 = vmatprep.subr.mxu0 0.0
        %369 = vmatpush1.msra.mxu0 0.0
        %370 = vmatprep.subr.mxu0 0.0
        %371 = vmatpush1.msra.mxu0 0.0
        %372 = vmatprep.subr.mxu0 0.0
        %373 = vmatpush1.msra.mxu0 0.0
        %374 = vmatprep.subr.mxu0 0.0
        %375 = vmatpush1.msra.mxu0 0.0
        %376 = vmatprep.subr.mxu0 0.0
        %377 = vmatpush1.msra.mxu0 0.0
        %378 = vmatprep.subr.mxu0 0.0
        %379 = vmatpush1.msra.mxu0 0.0
        %380 = vmatprep.subr.mxu0 0.0
        %v381 = vand.u32 %v351, 4294901760
        %382 = vmatpush1.msra.mxu0 %v381
        %383 = vmatprep.subr.mxu0 0.0
        %v384 = vand.u32 %v350, 4294901760
        %385 = vmatpush1.msra.mxu0 %v384
        %386 = vmatprep.subr.mxu0 0.0
        %v387 = vand.u32 %v349, 4294901760
        %388 = vmatpush1.msra.mxu0 %v387
        %389 = vmatprep.subr.mxu0 0.0
        %v390 = vand.u32 %v348, 4294901760
        %391 = vmatpush1.msra.mxu0 %v390
        %392 = vmatprep.subr.mxu0 0.0
        %393 = vmatpush2.msra.mxu0 0.0
        %394 = vmatprep.subr.mxu0 0.0
        %395 = vmatpush2.msra.mxu0 0.0
        %396 = vmatprep.subr.mxu0 0.0
        %397 = vmatpush2.msra.mxu0 0.0
        %398 = vmatprep.subr.mxu0 0.0
        %399 = vmatpush2.msra.mxu0 0.0
        %400 = vmatprep.subr.mxu0 0.0
        %401 = vmatpush2.msra.mxu0 0.0
        %402 = vmatprep.subr.mxu0 0.0
        %403 = vmatpush2.msra.mxu0 0.0
        %404 = vmatprep.subr.mxu0 0.0
        %405 = vmatpush2.msra.mxu0 0.0
        %406 = vmatprep.subr.mxu0 0.0
        %407 = vmatpush2.msra.mxu0 0.0
        %408 = vmatprep.subr.mxu0 0.0
        %409 = vmatpush2.msra.mxu0 0.0
        %410 = vmatprep.subr.mxu0 0.0
        %411 = vmatpush2.msra.mxu0 0.0
        %412 = vmatprep.subr.mxu0 0.0
        %413 = vmatpush2.msra.mxu0 0.0
        %414 = vmatprep.subr.mxu0 0.0
        %415 = vmatpush2.msra.mxu0 0.0
        %416 = vmatprep.subr.mxu0 0.0
        %417 = vmatpush2.msra.mxu0 0.0
        %418 = vmatprep.subr.mxu0 0.0
        %419 = vmatpush2.msra.mxu0 0.0
        %420 = vmatprep.subr.mxu0 0.0
        %421 = vmatpush2.msra.mxu0 0.0
        %422 = vmatprep.subr.mxu0 0.0
        %423 = vmatpush2.msra.mxu0 0.0
        %424 = vmatprep.mubr.f32.mxu0 0.0
        %v425 = vand.u32 %v354, 4294901760
        %v426 = vsub.f32 %v354, %v425
        %v427 = vand.u32 %v426, 4294901760
        %v428 = vsub.f32 %v426, %v427
        %v429 = vand.u32 %v428, 4294901760
        %430 = vmatmul.mubr.f32.gmra.mxu0 %v429
        %v431 = vpop.f32.mrf.mxu0
        %v432 = vadd.f32 0.0, %v431
        %v433 = vpop.f32.mrf.mxu0
        %434 = vdwg.mxu0
        %435 = vmatprep.subr.mxu0 0.0
        %436 = vmatpush1.msra.mxu0 0.0
        %437 = vmatprep.subr.mxu0 0.0
        %438 = vmatpush1.msra.mxu0 0.0
        %439 = vmatprep.subr.mxu0 0.0
        %440 = vmatpush1.msra.mxu0 0.0
        %441 = vmatprep.subr.mxu0 0.0
        %442 = vmatpush1.msra.mxu0 0.0
        %443 = vmatprep.subr.mxu0 0.0
        %444 = vmatpush1.msra.mxu0 0.0
        %445 = vmatprep.subr.mxu0 0.0
        %446 = vmatpush1.msra.mxu0 0.0
        %447 = vmatprep.subr.mxu0 0.0
        %448 = vmatpush1.msra.mxu0 0.0
        %449 = vmatprep.subr.mxu0 0.0
        %450 = vmatpush1.msra.mxu0 0.0
        %451 = vmatprep.subr.mxu0 0.0
        %452 = vmatpush1.msra.mxu0 0.0
        %453 = vmatprep.subr.mxu0 0.0
        %454 = vmatpush1.msra.mxu0 0.0
        %455 = vmatprep.subr.mxu0 0.0
        %456 = vmatpush1.msra.mxu0 0.0
        %457 = vmatprep.subr.mxu0 0.0
        %458 = vmatpush1.msra.mxu0 0.0
        %459 = vmatprep.subr.mxu0 0.0
        %v460 = vand.u32 %v351, 4294901760
        %v461 = vsub.f32 %v351, %v460
        %v462 = vand.u32 %v461, 4294901760
        %v463 = vsub.f32 %v461, %v462
        %v464 = vand.u32 %v463, 4294901760
        %465 = vmatpush1.msra.mxu0 %v464
        %466 = vmatprep.subr.mxu0 0.0
        %v467 = vand.u32 %v350, 4294901760
        %v468 = vsub.f32 %v350, %v467
        %v469 = vand.u32 %v468, 4294901760
        %v470 = vsub.f32 %v468, %v469
        %v471 = vand.u32 %v470, 4294901760
        %472 = vmatpush1.msra.mxu0 %v471
        %473 = vmatprep.subr.mxu0 0.0
        %v474 = vand.u32 %v349, 4294901760
        %v475 = vsub.f32 %v349, %v474
        %v476 = vand.u32 %v475, 4294901760
        %v477 = vsub.f32 %v475, %v476
        %v478 = vand.u32 %v477, 4294901760
        %479 = vmatpush1.msra.mxu0 %v478
        %480 = vmatprep.subr.mxu0 0.0
        %v481 = vand.u32 %v348, 4294901760
        %v482 = vsub.f32 %v348, %v481
        %v483 = vand.u32 %v482, 4294901760
        %v484 = vsub.f32 %v482, %v483
        %v485 = vand.u32 %v484, 4294901760
        %486 = vmatpush1.msra.mxu0 %v485
        %487 = vmatprep.subr.mxu0 0.0
        %488 = vmatpush2.msra.mxu0 0.0
        %489 = vmatprep.subr.mxu0 0.0
        %490 = vmatpush2.msra.mxu0 0.0
        %491 = vmatprep.subr.mxu0 0.0
        %492 = vmatpush2.msra.mxu0 0.0
        %493 = vmatprep.subr.mxu0 0.0
        %494 = vmatpush2.msra.mxu0 0.0
        %495 = vmatprep.subr.mxu0 0.0
        %496 = vmatpush2.msra.mxu0 0.0
        %497 = vmatprep.subr.mxu0 0.0
        %498 = vmatpush2.msra.mxu0 0.0
        %499 = vmatprep.subr.mxu0 0.0
        %500 = vmatpush2.msra.mxu0 0.0
        %501 = vmatprep.subr.mxu0 0.0
        %502 = vmatpush2.msra.mxu0 0.0
        %503 = vmatprep.subr.mxu0 0.0
        %504 = vmatpush2.msra.mxu0 0.0
        %505 = vmatprep.subr.mxu0 0.0
        %506 = vmatpush2.msra.mxu0 0.0
        %507 = vmatprep.subr.mxu0 0.0
        %508 = vmatpush2.msra.mxu0 0.0
        %509 = vmatprep.subr.mxu0 0.0
        %510 = vmatpush2.msra.mxu0 0.0
        %511 = vmatprep.subr.mxu0 0.0
        %512 = vmatpush2.msra.mxu0 0.0
        %513 = vmatprep.subr.mxu0 0.0
        %514 = vmatpush2.msra.mxu0 0.0
        %515 = vmatprep.subr.mxu0 0.0
        %516 = vmatpush2.msra.mxu0 0.0
        %517 = vmatprep.subr.mxu0 0.0
        %518 = vmatpush2.msra.mxu0 0.0
        %519 = vmatprep.mubr.f32.mxu0 0.0
        %v520 = vand.u32 %v354, 4294901760
        %521 = vmatmul.mubr.f32.gmra.mxu0 %v520
        %v522 = vpop.f32.mrf.mxu0
        %v523 = vadd.f32 %v432, %v522
        %v524 = vpop.f32.mrf.mxu0
        %525 = vdwg.mxu0
        %526 = vmatprep.subr.mxu0 0.0
        %527 = vmatpush1.msra.mxu0 0.0
        %528 = vmatprep.subr.mxu0 0.0
        %529 = vmatpush1.msra.mxu0 0.0
        %530 = vmatprep.subr.mxu0 0.0
        %531 = vmatpush1.msra.mxu0 0.0
        %532 = vmatprep.subr.mxu0 0.0
        %533 = vmatpush1.msra.mxu0 0.0
        %534 = vmatprep.subr.mxu0 0.0
        %535 = vmatpush1.msra.mxu0 0.0
        %536 = vmatprep.subr.mxu0 0.0
        %537 = vmatpush1.msra.mxu0 0.0
        %538 = vmatprep.subr.mxu0 0.0
        %539 = vmatpush1.msra.mxu0 0.0
        %540 = vmatprep.subr.mxu0 0.0
        %541 = vmatpush1.msra.mxu0 0.0
        %542 = vmatprep.subr.mxu0 0.0
        %543 = vmatpush1.msra.mxu0 0.0
        %544 = vmatprep.subr.mxu0 0.0
        %545 = vmatpush1.msra.mxu0 0.0
        %546 = vmatprep.subr.mxu0 0.0
        %547 = vmatpush1.msra.mxu0 0.0
        %548 = vmatprep.subr.mxu0 0.0
        %549 = vmatpush1.msra.mxu0 0.0
        %550 = vmatprep.subr.mxu0 0.0
        %v551 = vand.u32 %v351, 4294901760
        %v552 = vsub.f32 %v351, %v551
        %553 = vmatpush1.msra.mxu0 %v552
        %554 = vmatprep.subr.mxu0 0.0
        %v555 = vand.u32 %v350, 4294901760
        %v556 = vsub.f32 %v350, %v555
        %557 = vmatpush1.msra.mxu0 %v556
        %558 = vmatprep.subr.mxu0 0.0
        %v559 = vand.u32 %v349, 4294901760
        %v560 = vsub.f32 %v349, %v559
        %561 = vmatpush1.msra.mxu0 %v560
        %562 = vmatprep.subr.mxu0 0.0
        %v563 = vand.u32 %v348, 4294901760
        %v564 = vsub.f32 %v348, %v563
        %565 = vmatpush1.msra.mxu0 %v564
        %566 = vmatprep.subr.mxu0 0.0
        %567 = vmatpush2.msra.mxu0 0.0
        %568 = vmatprep.subr.mxu0 0.0
        %569 = vmatpush2.msra.mxu0 0.0
        %570 = vmatprep.subr.mxu0 0.0
        %571 = vmatpush2.msra.mxu0 0.0
        %572 = vmatprep.subr.mxu0 0.0
        %573 = vmatpush2.msra.mxu0 0.0
        %574 = vmatprep.subr.mxu0 0.0
        %575 = vmatpush2.msra.mxu0 0.0
        %576 = vmatprep.subr.mxu0 0.0
        %577 = vmatpush2.msra.mxu0 0.0
        %578 = vmatprep.subr.mxu0 0.0
        %579 = vmatpush2.msra.mxu0 0.0
        %580 = vmatprep.subr.mxu0 0.0
        %581 = vmatpush2.msra.mxu0 0.0
        %582 = vmatprep.subr.mxu0 0.0
        %583 = vmatpush2.msra.mxu0 0.0
        %584 = vmatprep.subr.mxu0 0.0
        %585 = vmatpush2.msra.mxu0 0.0
        %586 = vmatprep.subr.mxu0 0.0
        %587 = vmatpush2.msra.mxu0 0.0
        %588 = vmatprep.subr.mxu0 0.0
        %589 = vmatpush2.msra.mxu0 0.0
        %590 = vmatprep.subr.mxu0 0.0
        %591 = vmatpush2.msra.mxu0 0.0
        %592 = vmatprep.subr.mxu0 0.0
        %593 = vmatpush2.msra.mxu0 0.0
        %594 = vmatprep.subr.mxu0 0.0
        %595 = vmatpush2.msra.mxu0 0.0
        %596 = vmatprep.subr.mxu0 0.0
        %597 = vmatpush2.msra.mxu0 0.0
        %598 = vmatprep.mubr.f32.mxu0 0.0
        %v599 = vand.u32 %v354, 4294901760
        %v600 = vsub.f32 %v354, %v599
        %601 = vmatmul.mubr.f32.gmra.mxu0 %v600
        %v602 = vpop.f32.mrf.mxu0
        %v603 = vadd.f32 %v523, %v602
        %v604 = vpop.f32.mrf.mxu0
        %605 = vdwg.mxu0
        %606 = vmatprep.subr.mxu0 0.0
        %607 = vmatpush1.msra.mxu0 0.0
        %608 = vmatprep.subr.mxu0 0.0
        %609 = vmatpush1.msra.mxu0 0.0
        %610 = vmatprep.subr.mxu0 0.0
        %611 = vmatpush1.msra.mxu0 0.0
        %612 = vmatprep.subr.mxu0 0.0
        %613 = vmatpush1.msra.mxu0 0.0
        %614 = vmatprep.subr.mxu0 0.0
        %615 = vmatpush1.msra.mxu0 0.0
        %616 = vmatprep.subr.mxu0 0.0
        %617 = vmatpush1.msra.mxu0 0.0
        %618 = vmatprep.subr.mxu0 0.0
        %619 = vmatpush1.msra.mxu0 0.0
        %620 = vmatprep.subr.mxu0 0.0
        %621 = vmatpush1.msra.mxu0 0.0
        %622 = vmatprep.subr.mxu0 0.0
        %623 = vmatpush1.msra.mxu0 0.0
        %624 = vmatprep.subr.mxu0 0.0
        %625 = vmatpush1.msra.mxu0 0.0
        %626 = vmatprep.subr.mxu0 0.0
        %627 = vmatpush1.msra.mxu0 0.0
        %628 = vmatprep.subr.mxu0 0.0
        %629 = vmatpush1.msra.mxu0 0.0
        %630 = vmatprep.subr.mxu0 0.0
        %v631 = vand.u32 %v351, 4294901760
        %632 = vmatpush1.msra.mxu0 %v631
        %633 = vmatprep.subr.mxu0 0.0
        %v634 = vand.u32 %v350, 4294901760
        %635 = vmatpush1.msra.mxu0 %v634
        %636 = vmatprep.subr.mxu0 0.0
        %v637 = vand.u32 %v349, 4294901760
        %638 = vmatpush1.msra.mxu0 %v637
        %639 = vmatprep.subr.mxu0 0.0
        %v640 = vand.u32 %v348, 4294901760
        %641 = vmatpush1.msra.mxu0 %v640
        %642 = vmatprep.subr.mxu0 0.0
        %643 = vmatpush2.msra.mxu0 0.0
        %644 = vmatprep.subr.mxu0 0.0
        %645 = vmatpush2.msra.mxu0 0.0
        %646 = vmatprep.subr.mxu0 0.0
        %647 = vmatpush2.msra.mxu0 0.0
        %648 = vmatprep.subr.mxu0 0.0
        %649 = vmatpush2.msra.mxu0 0.0
        %650 = vmatprep.subr.mxu0 0.0
        %651 = vmatpush2.msra.mxu0 0.0
        %652 = vmatprep.subr.mxu0 0.0
        %653 = vmatpush2.msra.mxu0 0.0
        %654 = vmatprep.subr.mxu0 0.0
        %655 = vmatpush2.msra.mxu0 0.0
        %656 = vmatprep.subr.mxu0 0.0
        %657 = vmatpush2.msra.mxu0 0.0
        %658 = vmatprep.subr.mxu0 0.0
        %659 = vmatpush2.msra.mxu0 0.0
        %660 = vmatprep.subr.mxu0 0.0
        %661 = vmatpush2.msra.mxu0 0.0
        %662 = vmatprep.subr.mxu0 0.0
        %663 = vmatpush2.msra.mxu0 0.0
        %664 = vmatprep.subr.mxu0 0.0
        %665 = vmatpush2.msra.mxu0 0.0
        %666 = vmatprep.subr.mxu0 0.0
        %667 = vmatpush2.msra.mxu0 0.0
        %668 = vmatprep.subr.mxu0 0.0
        %669 = vmatpush2.msra.mxu0 0.0
        %670 = vmatprep.subr.mxu0 0.0
        %671 = vmatpush2.msra.mxu0 0.0
        %672 = vmatprep.subr.mxu0 0.0
        %673 = vmatpush2.msra.mxu0 0.0
        %674 = vmatprep.mubr.f32.mxu0 0.0
        %v675 = vand.u32 %v354, 4294901760
        %v676 = vsub.f32 %v354, %v675
        %v677 = vand.u32 %v676, 4294901760
        %678 = vmatmul.mubr.f32.gmra.mxu0 %v677
        %v679 = vpop.f32.mrf.mxu0
        %v680 = vadd.f32 %v603, %v679
        %v681 = vpop.f32.mrf.mxu0
        %682 = vdwg.mxu0
        %683 = vmatprep.subr.mxu0 0.0
        %684 = vmatpush1.msra.mxu0 0.0
        %685 = vmatprep.subr.mxu0 0.0
        %686 = vmatpush1.msra.mxu0 0.0
        %687 = vmatprep.subr.mxu0 0.0
        %688 = vmatpush1.msra.mxu0 0.0
        %689 = vmatprep.subr.mxu0 0.0
        %690 = vmatpush1.msra.mxu0 0.0
        %691 = vmatprep.subr.mxu0 0.0
        %692 = vmatpush1.msra.mxu0 0.0
        %693 = vmatprep.subr.mxu0 0.0
        %694 = vmatpush1.msra.mxu0 0.0
        %695 = vmatprep.subr.mxu0 0.0
        %696 = vmatpush1.msra.mxu0 0.0
        %697 = vmatprep.subr.mxu0 0.0
        %698 = vmatpush1.msra.mxu0 0.0
        %699 = vmatprep.subr.mxu0 0.0
        %700 = vmatpush1.msra.mxu0 0.0
        %701 = vmatprep.subr.mxu0 0.0
        %702 = vmatpush1.msra.mxu0 0.0
        %703 = vmatprep.subr.mxu0 0.0
        %704 = vmatpush1.msra.mxu0 0.0
        %705 = vmatprep.subr.mxu0 0.0
        %706 = vmatpush1.msra.mxu0 0.0
        %707 = vmatprep.subr.mxu0 0.0
        %v708 = vand.u32 %v351, 4294901760
        %v709 = vsub.f32 %v351, %v708
        %v710 = vand.u32 %v709, 4294901760
        %711 = vmatpush1.msra.mxu0 %v710
        %712 = vmatprep.subr.mxu0 0.0
        %v713 = vand.u32 %v350, 4294901760
        %v714 = vsub.f32 %v350, %v713
        %v715 = vand.u32 %v714, 4294901760
        %716 = vmatpush1.msra.mxu0 %v715
        %717 = vmatprep.subr.mxu0 0.0
        %v718 = vand.u32 %v349, 4294901760
        %v719 = vsub.f32 %v349, %v718
        %v720 = vand.u32 %v719, 4294901760
        %721 = vmatpush1.msra.mxu0 %v720
        %722 = vmatprep.subr.mxu0 0.0
        %v723 = vand.u32 %v348, 4294901760
        %v724 = vsub.f32 %v348, %v723
        %v725 = vand.u32 %v724, 4294901760
        %726 = vmatpush1.msra.mxu0 %v725
        %727 = vmatprep.subr.mxu0 0.0
        %728 = vmatpush2.msra.mxu0 0.0
        %729 = vmatprep.subr.mxu0 0.0
        %730 = vmatpush2.msra.mxu0 0.0
        %731 = vmatprep.subr.mxu0 0.0
        %732 = vmatpush2.msra.mxu0 0.0
        %733 = vmatprep.subr.mxu0 0.0
        %734 = vmatpush2.msra.mxu0 0.0
        %735 = vmatprep.subr.mxu0 0.0
        %736 = vmatpush2.msra.mxu0 0.0
        %737 = vmatprep.subr.mxu0 0.0
        %738 = vmatpush2.msra.mxu0 0.0
        %739 = vmatprep.subr.mxu0 0.0
        %740 = vmatpush2.msra.mxu0 0.0
        %741 = vmatprep.subr.mxu0 0.0
        %742 = vmatpush2.msra.mxu0 0.0
        %743 = vmatprep.subr.mxu0 0.0
        %744 = vmatpush2.msra.mxu0 0.0
        %745 = vmatprep.subr.mxu0 0.0
        %746 = vmatpush2.msra.mxu0 0.0
        %747 = vmatprep.subr.mxu0 0.0
        %748 = vmatpush2.msra.mxu0 0.0
        %749 = vmatprep.subr.mxu0 0.0
        %750 = vmatpush2.msra.mxu0 0.0
        %751 = vmatprep.subr.mxu0 0.0
        %752 = vmatpush2.msra.mxu0 0.0
        %753 = vmatprep.subr.mxu0 0.0
        %754 = vmatpush2.msra.mxu0 0.0
        %755 = vmatprep.subr.mxu0 0.0
        %756 = vmatpush2.msra.mxu0 0.0
        %757 = vmatprep.subr.mxu0 0.0
        %758 = vmatpush2.msra.mxu0 0.0
        %759 = vmatprep.mubr.f32.mxu0 0.0
        %v760 = vand.u32 %v354, 4294901760
        %761 = vmatmul.mubr.f32.gmra.mxu0 %v760
        %v762 = vpop.f32.mrf.mxu0
        %v763 = vadd.f32 %v680, %v762
        %v764 = vpop.f32.mrf.mxu0
        %765 = vdwg.mxu0
        %766 = vmatprep.subr.mxu0 0.0
        %767 = vmatpush1.msra.mxu0 0.0
        %768 = vmatprep.subr.mxu0 0.0
        %769 = vmatpush1.msra.mxu0 0.0
        %770 = vmatprep.subr.mxu0 0.0
        %771 = vmatpush1.msra.mxu0 0.0
        %772 = vmatprep.subr.mxu0 0.0
        %773 = vmatpush1.msra.mxu0 0.0
        %774 = vmatprep.subr.mxu0 0.0
        %775 = vmatpush1.msra.mxu0 0.0
        %776 = vmatprep.subr.mxu0 0.0
        %777 = vmatpush1.msra.mxu0 0.0
        %778 = vmatprep.subr.mxu0 0.0
        %779 = vmatpush1.msra.mxu0 0.0
        %780 = vmatprep.subr.mxu0 0.0
        %781 = vmatpush1.msra.mxu0 0.0
        %782 = vmatprep.subr.mxu0 0.0
        %783 = vmatpush1.msra.mxu0 0.0
        %784 = vmatprep.subr.mxu0 0.0
        %785 = vmatpush1.msra.mxu0 0.0
        %786 = vmatprep.subr.mxu0 0.0
        %787 = vmatpush1.msra.mxu0 0.0
        %788 = vmatprep.subr.mxu0 0.0
        %789 = vmatpush1.msra.mxu0 0.0
        %790 = vmatprep.subr.mxu0 0.0
        %v791 = vand.u32 %v351, 4294901760
        %792 = vmatpush1.msra.mxu0 %v791
        %793 = vmatprep.subr.mxu0 0.0
        %v794 = vand.u32 %v350, 4294901760
        %795 = vmatpush1.msra.mxu0 %v794
        %796 = vmatprep.subr.mxu0 0.0
        %v797 = vand.u32 %v349, 4294901760
        %798 = vmatpush1.msra.mxu0 %v797
        %799 = vmatprep.subr.mxu0 0.0
        %v800 = vand.u32 %v348, 4294901760
        %801 = vmatpush1.msra.mxu0 %v800
        %802 = vmatprep.subr.mxu0 0.0
        %803 = vmatpush2.msra.mxu0 0.0
        %804 = vmatprep.subr.mxu0 0.0
        %805 = vmatpush2.msra.mxu0 0.0
        %806 = vmatprep.subr.mxu0 0.0
        %807 = vmatpush2.msra.mxu0 0.0
        %808 = vmatprep.subr.mxu0 0.0
        %809 = vmatpush2.msra.mxu0 0.0
        %810 = vmatprep.subr.mxu0 0.0
        %811 = vmatpush2.msra.mxu0 0.0
        %812 = vmatprep.subr.mxu0 0.0
        %813 = vmatpush2.msra.mxu0 0.0
        %814 = vmatprep.subr.mxu0 0.0
        %815 = vmatpush2.msra.mxu0 0.0
        %816 = vmatprep.subr.mxu0 0.0
        %817 = vmatpush2.msra.mxu0 0.0
        %818 = vmatprep.subr.mxu0 0.0
        %819 = vmatpush2.msra.mxu0 0.0
        %820 = vmatprep.subr.mxu0 0.0
        %821 = vmatpush2.msra.mxu0 0.0
        %822 = vmatprep.subr.mxu0 0.0
        %823 = vmatpush2.msra.mxu0 0.0
        %824 = vmatprep.subr.mxu0 0.0
        %825 = vmatpush2.msra.mxu0 0.0
        %826 = vmatprep.subr.mxu0 0.0
        %827 = vmatpush2.msra.mxu0 0.0
        %828 = vmatprep.subr.mxu0 0.0
        %829 = vmatpush2.msra.mxu0 0.0
        %830 = vmatprep.subr.mxu0 0.0
        %831 = vmatpush2.msra.mxu0 0.0
        %832 = vmatprep.subr.mxu0 0.0
        %833 = vmatpush2.msra.mxu0 0.0
        %834 = vmatprep.mubr.f32.mxu0 0.0
        %v835 = vand.u32 %v354, 4294901760
        %836 = vmatmul.mubr.f32.gmra.mxu0 %v835
        %v837 = vpop.f32.mrf.mxu0
        %v838 = vadd.f32 %v763, %v837
        %v839 = vpop.f32.mrf.mxu0
        %840 = vdwg.mxu0
        %v841 = vld [vmem:[%s3] sm:$0xff]
        %v842 = vld [vmem:[%s3 + $0x8] sm:$0xff]
        %v843 = vld [vmem:[%s3 + $0x10] sm:$0xff]
        %v844 = vld [vmem:[%s3 + $0x18] sm:$0xff]
        %v845 = vld [vmem:[%s4] sm:$0xff]
        %v846 = vld [vmem:[%s4 + $0x8] sm:$0xff]
        %v847 = vld [vmem:[%s4 + $0x10] sm:$0xff]
        %v848 = vld [vmem:[%s4 + $0x18] sm:$0xff]
        %v850 = vsel %vm352, %v838, 0
        %852 = vmatprep.subr.mxu0 0.0
        %853 = vmatpush1.msra.mxu0 0.0
        %854 = vmatprep.subr.mxu0 0.0
        %855 = vmatpush1.msra.mxu0 0.0
        %856 = vmatprep.subr.mxu0 0.0
        %857 = vmatpush1.msra.mxu0 0.0
        %858 = vmatprep.subr.mxu0 0.0
        %859 = vmatpush1.msra.mxu0 0.0
        %860 = vmatprep.subr.mxu0 0.0
        %861 = vmatpush1.msra.mxu0 0.0
        %862 = vmatprep.subr.mxu0 0.0
        %863 = vmatpush1.msra.mxu0 0.0
        %864 = vmatprep.subr.mxu0 0.0
        %865 = vmatpush1.msra.mxu0 0.0
        %866 = vmatprep.subr.mxu0 0.0
        %867 = vmatpush1.msra.mxu0 0.0
        %868 = vmatprep.subr.mxu0 0.0
        %869 = vmatpush1.msra.mxu0 0.0
        %870 = vmatprep.subr.mxu0 0.0
        %871 = vmatpush1.msra.mxu0 0.0
        %872 = vmatprep.subr.mxu0 0.0
        %873 = vmatpush1.msra.mxu0 0.0
        %874 = vmatprep.subr.mxu0 0.0
        %875 = vmatpush1.msra.mxu0 0.0
        %876 = vmatprep.subr.mxu0 0.0
        %v877 = vand.u32 %v848, 4294901760
        %878 = vmatpush1.msra.mxu0 %v877
        %879 = vmatprep.subr.mxu0 0.0
        %v880 = vand.u32 %v847, 4294901760
        %881 = vmatpush1.msra.mxu0 %v880
        %882 = vmatprep.subr.mxu0 0.0
        %v883 = vand.u32 %v846, 4294901760
        %884 = vmatpush1.msra.mxu0 %v883
        %885 = vmatprep.subr.mxu0 0.0
        %v886 = vand.u32 %v845, 4294901760
        %887 = vmatpush1.msra.mxu0 %v886
        %888 = vmatprep.subr.mxu0 0.0
        %889 = vmatpush2.msra.mxu0 0.0
        %890 = vmatprep.subr.mxu0 0.0
        %891 = vmatpush2.msra.mxu0 0.0
        %892 = vmatprep.subr.mxu0 0.0
        %893 = vmatpush2.msra.mxu0 0.0
        %894 = vmatprep.subr.mxu0 0.0
        %895 = vmatpush2.msra.mxu0 0.0
        %896 = vmatprep.subr.mxu0 0.0
        %897 = vmatpush2.msra.mxu0 0.0
        %898 = vmatprep.subr.mxu0 0.0
        %899 = vmatpush2.msra.mxu0 0.0
        %900 = vmatprep.subr.mxu0 0.0
        %901 = vmatpush2.msra.mxu0 0.0
        %902 = vmatprep.subr.mxu0 0.0
        %903 = vmatpush2.msra.mxu0 0.0
        %904 = vmatprep.subr.mxu0 0.0
        %905 = vmatpush2.msra.mxu0 0.0
        %906 = vmatprep.subr.mxu0 0.0
        %907 = vmatpush2.msra.mxu0 0.0
        %908 = vmatprep.subr.mxu0 0.0
        %909 = vmatpush2.msra.mxu0 0.0
        %910 = vmatprep.subr.mxu0 0.0
        %911 = vmatpush2.msra.mxu0 0.0
        %912 = vmatprep.subr.mxu0 0.0
        %913 = vmatpush2.msra.mxu0 0.0
        %914 = vmatprep.subr.mxu0 0.0
        %915 = vmatpush2.msra.mxu0 0.0
        %916 = vmatprep.subr.mxu0 0.0
        %917 = vmatpush2.msra.mxu0 0.0
        %918 = vmatprep.subr.mxu0 0.0
        %919 = vmatpush2.msra.mxu0 0.0
        %920 = vmatprep.mubr.f32.mxu0 0.0
        %v921 = vand.u32 %v850, 4294901760
        %v922 = vsub.f32 %v850, %v921
        %v923 = vand.u32 %v922, 4294901760
        %v924 = vsub.f32 %v922, %v923
        %v925 = vand.u32 %v924, 4294901760
        %926 = vmatmul.mubr.f32.gmra.mxu0 %v925
        %v927 = vpop.f32.mrf.mxu0
        %v928 = vadd.f32 0.0, %v927
        %v929 = vpop.f32.mrf.mxu0
        %930 = vdwg.mxu0
        %931 = vmatprep.subr.mxu0 0.0
        %932 = vmatpush1.msra.mxu0 0.0
        %933 = vmatprep.subr.mxu0 0.0
        %934 = vmatpush1.msra.mxu0 0.0
        %935 = vmatprep.subr.mxu0 0.0
        %936 = vmatpush1.msra.mxu0 0.0
        %937 = vmatprep.subr.mxu0 0.0
        %938 = vmatpush1.msra.mxu0 0.0
        %939 = vmatprep.subr.mxu0 0.0
        %940 = vmatpush1.msra.mxu0 0.0
        %941 = vmatprep.subr.mxu0 0.0
        %942 = vmatpush1.msra.mxu0 0.0
        %943 = vmatprep.subr.mxu0 0.0
        %944 = vmatpush1.msra.mxu0 0.0
        %945 = vmatprep.subr.mxu0 0.0
        %946 = vmatpush1.msra.mxu0 0.0
        %947 = vmatprep.subr.mxu0 0.0
        %948 = vmatpush1.msra.mxu0 0.0
        %949 = vmatprep.subr.mxu0 0.0
        %950 = vmatpush1.msra.mxu0 0.0
        %951 = vmatprep.subr.mxu0 0.0
        %952 = vmatpush1.msra.mxu0 0.0
        %953 = vmatprep.subr.mxu0 0.0
        %954 = vmatpush1.msra.mxu0 0.0
        %955 = vmatprep.subr.mxu0 0.0
        %v956 = vand.u32 %v848, 4294901760
        %v957 = vsub.f32 %v848, %v956
        %v958 = vand.u32 %v957, 4294901760
        %v959 = vsub.f32 %v957, %v958
        %v960 = vand.u32 %v959, 4294901760
        %961 = vmatpush1.msra.mxu0 %v960
        %962 = vmatprep.subr.mxu0 0.0
        %v963 = vand.u32 %v847, 4294901760
        %v964 = vsub.f32 %v847, %v963
        %v965 = vand.u32 %v964, 4294901760
        %v966 = vsub.f32 %v964, %v965
        %v967 = vand.u32 %v966, 4294901760
        %968 = vmatpush1.msra.mxu0 %v967
        %969 = vmatprep.subr.mxu0 0.0
        %v970 = vand.u32 %v846, 4294901760
        %v971 = vsub.f32 %v846, %v970
        %v972 = vand.u32 %v971, 4294901760
        %v973 = vsub.f32 %v971, %v972
        %v974 = vand.u32 %v973, 4294901760
        %975 = vmatpush1.msra.mxu0 %v974
        %976 = vmatprep.subr.mxu0 0.0
        %v977 = vand.u32 %v845, 4294901760
        %v978 = vsub.f32 %v845, %v977
        %v979 = vand.u32 %v978, 4294901760
        %v980 = vsub.f32 %v978, %v979
        %v981 = vand.u32 %v980, 4294901760
        %982 = vmatpush1.msra.mxu0 %v981
        %983 = vmatprep.subr.mxu0 0.0
        %984 = vmatpush2.msra.mxu0 0.0
        %985 = vmatprep.subr.mxu0 0.0
        %986 = vmatpush2.msra.mxu0 0.0
        %987 = vmatprep.subr.mxu0 0.0
        %988 = vmatpush2.msra.mxu0 0.0
        %989 = vmatprep.subr.mxu0 0.0
        %990 = vmatpush2.msra.mxu0 0.0
        %991 = vmatprep.subr.mxu0 0.0
        %992 = vmatpush2.msra.mxu0 0.0
        %993 = vmatprep.subr.mxu0 0.0
        %994 = vmatpush2.msra.mxu0 0.0
        %995 = vmatprep.subr.mxu0 0.0
        %996 = vmatpush2.msra.mxu0 0.0
        %997 = vmatprep.subr.mxu0 0.0
        %998 = vmatpush2.msra.mxu0 0.0
        %999 = vmatprep.subr.mxu0 0.0
        %1000 = vmatpush2.msra.mxu0 0.0
        %1001 = vmatprep.subr.mxu0 0.0
        %1002 = vmatpush2.msra.mxu0 0.0
        %1003 = vmatprep.subr.mxu0 0.0
        %1004 = vmatpush2.msra.mxu0 0.0
        %1005 = vmatprep.subr.mxu0 0.0
        %1006 = vmatpush2.msra.mxu0 0.0
        %1007 = vmatprep.subr.mxu0 0.0
        %1008 = vmatpush2.msra.mxu0 0.0
        %1009 = vmatprep.subr.mxu0 0.0
        %1010 = vmatpush2.msra.mxu0 0.0
        %1011 = vmatprep.subr.mxu0 0.0
        %1012 = vmatpush2.msra.mxu0 0.0
        %1013 = vmatprep.subr.mxu0 0.0
        %1014 = vmatpush2.msra.mxu0 0.0
        %1015 = vmatprep.mubr.f32.mxu0 0.0
        %v1016 = vand.u32 %v850, 4294901760
        %1017 = vmatmul.mubr.f32.gmra.mxu0 %v1016
        %v1018 = vpop.f32.mrf.mxu0
        %v1019 = vadd.f32 %v928, %v1018
        %v1020 = vpop.f32.mrf.mxu0
        %1021 = vdwg.mxu0
        %1022 = vmatprep.subr.mxu0 0.0
        %1023 = vmatpush1.msra.mxu0 0.0
        %1024 = vmatprep.subr.mxu0 0.0
        %1025 = vmatpush1.msra.mxu0 0.0
        %1026 = vmatprep.subr.mxu0 0.0
        %1027 = vmatpush1.msra.mxu0 0.0
        %1028 = vmatprep.subr.mxu0 0.0
        %1029 = vmatpush1.msra.mxu0 0.0
        %1030 = vmatprep.subr.mxu0 0.0
        %1031 = vmatpush1.msra.mxu0 0.0
        %1032 = vmatprep.subr.mxu0 0.0
        %1033 = vmatpush1.msra.mxu0 0.0
        %1034 = vmatprep.subr.mxu0 0.0
        %1035 = vmatpush1.msra.mxu0 0.0
        %1036 = vmatprep.subr.mxu0 0.0
        %1037 = vmatpush1.msra.mxu0 0.0
        %1038 = vmatprep.subr.mxu0 0.0
        %1039 = vmatpush1.msra.mxu0 0.0
        %1040 = vmatprep.subr.mxu0 0.0
        %1041 = vmatpush1.msra.mxu0 0.0
        %1042 = vmatprep.subr.mxu0 0.0
        %1043 = vmatpush1.msra.mxu0 0.0
        %1044 = vmatprep.subr.mxu0 0.0
        %1045 = vmatpush1.msra.mxu0 0.0
        %1046 = vmatprep.subr.mxu0 0.0
        %v1047 = vand.u32 %v848, 4294901760
        %v1048 = vsub.f32 %v848, %v1047
        %1049 = vmatpush1.msra.mxu0 %v1048
        %1050 = vmatprep.subr.mxu0 0.0
        %v1051 = vand.u32 %v847, 4294901760
        %v1052 = vsub.f32 %v847, %v1051
        %1053 = vmatpush1.msra.mxu0 %v1052
        %1054 = vmatprep.subr.mxu0 0.0
        %v1055 = vand.u32 %v846, 4294901760
        %v1056 = vsub.f32 %v846, %v1055
        %1057 = vmatpush1.msra.mxu0 %v1056
        %1058 = vmatprep.subr.mxu0 0.0
        %v1059 = vand.u32 %v845, 4294901760
        %v1060 = vsub.f32 %v845, %v1059
        %1061 = vmatpush1.msra.mxu0 %v1060
        %1062 = vmatprep.subr.mxu0 0.0
        %1063 = vmatpush2.msra.mxu0 0.0
        %1064 = vmatprep.subr.mxu0 0.0
        %1065 = vmatpush2.msra.mxu0 0.0
        %1066 = vmatprep.subr.mxu0 0.0
        %1067 = vmatpush2.msra.mxu0 0.0
        %1068 = vmatprep.subr.mxu0 0.0
        %1069 = vmatpush2.msra.mxu0 0.0
        %1070 = vmatprep.subr.mxu0 0.0
        %1071 = vmatpush2.msra.mxu0 0.0
        %1072 = vmatprep.subr.mxu0 0.0
        %1073 = vmatpush2.msra.mxu0 0.0
        %1074 = vmatprep.subr.mxu0 0.0
        %1075 = vmatpush2.msra.mxu0 0.0
        %1076 = vmatprep.subr.mxu0 0.0
        %1077 = vmatpush2.msra.mxu0 0.0
        %1078 = vmatprep.subr.mxu0 0.0
        %1079 = vmatpush2.msra.mxu0 0.0
        %1080 = vmatprep.subr.mxu0 0.0
        %1081 = vmatpush2.msra.mxu0 0.0
        %1082 = vmatprep.subr.mxu0 0.0
        %1083 = vmatpush2.msra.mxu0 0.0
        %1084 = vmatprep.subr.mxu0 0.0
        %1085 = vmatpush2.msra.mxu0 0.0
        %1086 = vmatprep.subr.mxu0 0.0
        %1087 = vmatpush2.msra.mxu0 0.0
        %1088 = vmatprep.subr.mxu0 0.0
        %1089 = vmatpush2.msra.mxu0 0.0
        %1090 = vmatprep.subr.mxu0 0.0
        %1091 = vmatpush2.msra.mxu0 0.0
        %1092 = vmatprep.subr.mxu0 0.0
        %1093 = vmatpush2.msra.mxu0 0.0
        %1094 = vmatprep.mubr.f32.mxu0 0.0
        %v1095 = vand.u32 %v850, 4294901760
        %v1096 = vsub.f32 %v850, %v1095
        %1097 = vmatmul.mubr.f32.gmra.mxu0 %v1096
        %v1098 = vpop.f32.mrf.mxu0
        %v1099 = vadd.f32 %v1019, %v1098
        %v1100 = vpop.f32.mrf.mxu0
        %1101 = vdwg.mxu0
        %1102 = vmatprep.subr.mxu0 0.0
        %1103 = vmatpush1.msra.mxu0 0.0
        %1104 = vmatprep.subr.mxu0 0.0
        %1105 = vmatpush1.msra.mxu0 0.0
        %1106 = vmatprep.subr.mxu0 0.0
        %1107 = vmatpush1.msra.mxu0 0.0
        %1108 = vmatprep.subr.mxu0 0.0
        %1109 = vmatpush1.msra.mxu0 0.0
        %1110 = vmatprep.subr.mxu0 0.0
        %1111 = vmatpush1.msra.mxu0 0.0
        %1112 = vmatprep.subr.mxu0 0.0
        %1113 = vmatpush1.msra.mxu0 0.0
        %1114 = vmatprep.subr.mxu0 0.0
        %1115 = vmatpush1.msra.mxu0 0.0
        %1116 = vmatprep.subr.mxu0 0.0
        %1117 = vmatpush1.msra.mxu0 0.0
        %1118 = vmatprep.subr.mxu0 0.0
        %1119 = vmatpush1.msra.mxu0 0.0
        %1120 = vmatprep.subr.mxu0 0.0
        %1121 = vmatpush1.msra.mxu0 0.0
        %1122 = vmatprep.subr.mxu0 0.0
        %1123 = vmatpush1.msra.mxu0 0.0
        %1124 = vmatprep.subr.mxu0 0.0
        %1125 = vmatpush1.msra.mxu0 0.0
        %1126 = vmatprep.subr.mxu0 0.0
        %v1127 = vand.u32 %v848, 4294901760
        %1128 = vmatpush1.msra.mxu0 %v1127
        %1129 = vmatprep.subr.mxu0 0.0
        %v1130 = vand.u32 %v847, 4294901760
        %1131 = vmatpush1.msra.mxu0 %v1130
        %1132 = vmatprep.subr.mxu0 0.0
        %v1133 = vand.u32 %v846, 4294901760
        %1134 = vmatpush1.msra.mxu0 %v1133
        %1135 = vmatprep.subr.mxu0 0.0
        %v1136 = vand.u32 %v845, 4294901760
        %1137 = vmatpush1.msra.mxu0 %v1136
        %1138 = vmatprep.subr.mxu0 0.0
        %1139 = vmatpush2.msra.mxu0 0.0
        %1140 = vmatprep.subr.mxu0 0.0
        %1141 = vmatpush2.msra.mxu0 0.0
        %1142 = vmatprep.subr.mxu0 0.0
        %1143 = vmatpush2.msra.mxu0 0.0
        %1144 = vmatprep.subr.mxu0 0.0
        %1145 = vmatpush2.msra.mxu0 0.0
        %1146 = vmatprep.subr.mxu0 0.0
        %1147 = vmatpush2.msra.mxu0 0.0
        %1148 = vmatprep.subr.mxu0 0.0
        %1149 = vmatpush2.msra.mxu0 0.0
        %1150 = vmatprep.subr.mxu0 0.0
        %1151 = vmatpush2.msra.mxu0 0.0
        %1152 = vmatprep.subr.mxu0 0.0
        %1153 = vmatpush2.msra.mxu0 0.0
        %1154 = vmatprep.subr.mxu0 0.0
        %1155 = vmatpush2.msra.mxu0 0.0
        %1156 = vmatprep.subr.mxu0 0.0
        %1157 = vmatpush2.msra.mxu0 0.0
        %1158 = vmatprep.subr.mxu0 0.0
        %1159 = vmatpush2.msra.mxu0 0.0
        %1160 = vmatprep.subr.mxu0 0.0
        %1161 = vmatpush2.msra.mxu0 0.0
        %1162 = vmatprep.subr.mxu0 0.0
        %1163 = vmatpush2.msra.mxu0 0.0
        %1164 = vmatprep.subr.mxu0 0.0
        %1165 = vmatpush2.msra.mxu0 0.0
        %1166 = vmatprep.subr.mxu0 0.0
        %1167 = vmatpush2.msra.mxu0 0.0
        %1168 = vmatprep.subr.mxu0 0.0
        %1169 = vmatpush2.msra.mxu0 0.0
        %1170 = vmatprep.mubr.f32.mxu0 0.0
        %v1171 = vand.u32 %v850, 4294901760
        %v1172 = vsub.f32 %v850, %v1171
        %v1173 = vand.u32 %v1172, 4294901760
        %1174 = vmatmul.mubr.f32.gmra.mxu0 %v1173
        %v1175 = vpop.f32.mrf.mxu0
        %v1176 = vadd.f32 %v1099, %v1175
        %v1177 = vpop.f32.mrf.mxu0
        %1178 = vdwg.mxu0
        %1179 = vmatprep.subr.mxu0 0.0
        %1180 = vmatpush1.msra.mxu0 0.0
        %1181 = vmatprep.subr.mxu0 0.0
        %1182 = vmatpush1.msra.mxu0 0.0
        %1183 = vmatprep.subr.mxu0 0.0
        %1184 = vmatpush1.msra.mxu0 0.0
        %1185 = vmatprep.subr.mxu0 0.0
        %1186 = vmatpush1.msra.mxu0 0.0
        %1187 = vmatprep.subr.mxu0 0.0
        %1188 = vmatpush1.msra.mxu0 0.0
        %1189 = vmatprep.subr.mxu0 0.0
        %1190 = vmatpush1.msra.mxu0 0.0
        %1191 = vmatprep.subr.mxu0 0.0
        %1192 = vmatpush1.msra.mxu0 0.0
        %1193 = vmatprep.subr.mxu0 0.0
        %1194 = vmatpush1.msra.mxu0 0.0
        %1195 = vmatprep.subr.mxu0 0.0
        %1196 = vmatpush1.msra.mxu0 0.0
        %1197 = vmatprep.subr.mxu0 0.0
        %1198 = vmatpush1.msra.mxu0 0.0
        %1199 = vmatprep.subr.mxu0 0.0
        %1200 = vmatpush1.msra.mxu0 0.0
        %1201 = vmatprep.subr.mxu0 0.0
        %1202 = vmatpush1.msra.mxu0 0.0
        %1203 = vmatprep.subr.mxu0 0.0
        %v1204 = vand.u32 %v848, 4294901760
        %v1205 = vsub.f32 %v848, %v1204
        %v1206 = vand.u32 %v1205, 4294901760
        %1207 = vmatpush1.msra.mxu0 %v1206
        %1208 = vmatprep.subr.mxu0 0.0
        %v1209 = vand.u32 %v847, 4294901760
        %v1210 = vsub.f32 %v847, %v1209
        %v1211 = vand.u32 %v1210, 4294901760
        %1212 = vmatpush1.msra.mxu0 %v1211
        %1213 = vmatprep.subr.mxu0 0.0
        %v1214 = vand.u32 %v846, 4294901760
        %v1215 = vsub.f32 %v846, %v1214
        %v1216 = vand.u32 %v1215, 4294901760
        %1217 = vmatpush1.msra.mxu0 %v1216
        %1218 = vmatprep.subr.mxu0 0.0
        %v1219 = vand.u32 %v845, 4294901760
        %v1220 = vsub.f32 %v845, %v1219
        %v1221 = vand.u32 %v1220, 4294901760
        %1222 = vmatpush1.msra.mxu0 %v1221
        %1223 = vmatprep.subr.mxu0 0.0
        %1224 = vmatpush2.msra.mxu0 0.0
        %1225 = vmatprep.subr.mxu0 0.0
        %1226 = vmatpush2.msra.mxu0 0.0
        %1227 = vmatprep.subr.mxu0 0.0
        %1228 = vmatpush2.msra.mxu0 0.0
        %1229 = vmatprep.subr.mxu0 0.0
        %1230 = vmatpush2.msra.mxu0 0.0
        %1231 = vmatprep.subr.mxu0 0.0
        %1232 = vmatpush2.msra.mxu0 0.0
        %1233 = vmatprep.subr.mxu0 0.0
        %1234 = vmatpush2.msra.mxu0 0.0
        %1235 = vmatprep.subr.mxu0 0.0
        %1236 = vmatpush2.msra.mxu0 0.0
        %1237 = vmatprep.subr.mxu0 0.0
        %1238 = vmatpush2.msra.mxu0 0.0
        %1239 = vmatprep.subr.mxu0 0.0
        %1240 = vmatpush2.msra.mxu0 0.0
        %1241 = vmatprep.subr.mxu0 0.0
        %1242 = vmatpush2.msra.mxu0 0.0
        %1243 = vmatprep.subr.mxu0 0.0
        %1244 = vmatpush2.msra.mxu0 0.0
        %1245 = vmatprep.subr.mxu0 0.0
        %1246 = vmatpush2.msra.mxu0 0.0
        %1247 = vmatprep.subr.mxu0 0.0
        %1248 = vmatpush2.msra.mxu0 0.0
        %1249 = vmatprep.subr.mxu0 0.0
        %1250 = vmatpush2.msra.mxu0 0.0
        %1251 = vmatprep.subr.mxu0 0.0
        %1252 = vmatpush2.msra.mxu0 0.0
        %1253 = vmatprep.subr.mxu0 0.0
        %1254 = vmatpush2.msra.mxu0 0.0
        %1255 = vmatprep.mubr.f32.mxu0 0.0
        %v1256 = vand.u32 %v850, 4294901760
        %1257 = vmatmul.mubr.f32.gmra.mxu0 %v1256
        %v1258 = vpop.f32.mrf.mxu0
        %v1259 = vadd.f32 %v1176, %v1258
        %v1260 = vpop.f32.mrf.mxu0
        %1261 = vdwg.mxu0
        %1262 = vmatprep.subr.mxu0 0.0
        %1263 = vmatpush1.msra.mxu0 0.0
        %1264 = vmatprep.subr.mxu0 0.0
        %1265 = vmatpush1.msra.mxu0 0.0
        %1266 = vmatprep.subr.mxu0 0.0
        %1267 = vmatpush1.msra.mxu0 0.0
        %1268 = vmatprep.subr.mxu0 0.0
        %1269 = vmatpush1.msra.mxu0 0.0
        %1270 = vmatprep.subr.mxu0 0.0
        %1271 = vmatpush1.msra.mxu0 0.0
        %1272 = vmatprep.subr.mxu0 0.0
        %1273 = vmatpush1.msra.mxu0 0.0
        %1274 = vmatprep.subr.mxu0 0.0
        %1275 = vmatpush1.msra.mxu0 0.0
        %1276 = vmatprep.subr.mxu0 0.0
        %1277 = vmatpush1.msra.mxu0 0.0
        %1278 = vmatprep.subr.mxu0 0.0
        %1279 = vmatpush1.msra.mxu0 0.0
        %1280 = vmatprep.subr.mxu0 0.0
        %1281 = vmatpush1.msra.mxu0 0.0
        %1282 = vmatprep.subr.mxu0 0.0
        %1283 = vmatpush1.msra.mxu0 0.0
        %1284 = vmatprep.subr.mxu0 0.0
        %1285 = vmatpush1.msra.mxu0 0.0
        %1286 = vmatprep.subr.mxu0 0.0
        %v1287 = vand.u32 %v848, 4294901760
        %1288 = vmatpush1.msra.mxu0 %v1287
        %1289 = vmatprep.subr.mxu0 0.0
        %v1290 = vand.u32 %v847, 4294901760
        %1291 = vmatpush1.msra.mxu0 %v1290
        %1292 = vmatprep.subr.mxu0 0.0
        %v1293 = vand.u32 %v846, 4294901760
        %1294 = vmatpush1.msra.mxu0 %v1293
        %1295 = vmatprep.subr.mxu0 0.0
        %v1296 = vand.u32 %v845, 4294901760
        %1297 = vmatpush1.msra.mxu0 %v1296
        %1298 = vmatprep.subr.mxu0 0.0
        %1299 = vmatpush2.msra.mxu0 0.0
        %1300 = vmatprep.subr.mxu0 0.0
        %1301 = vmatpush2.msra.mxu0 0.0
        %1302 = vmatprep.subr.mxu0 0.0
        %1303 = vmatpush2.msra.mxu0 0.0
        %1304 = vmatprep.subr.mxu0 0.0
        %1305 = vmatpush2.msra.mxu0 0.0
        %1306 = vmatprep.subr.mxu0 0.0
        %1307 = vmatpush2.msra.mxu0 0.0
        %1308 = vmatprep.subr.mxu0 0.0
        %1309 = vmatpush2.msra.mxu0 0.0
        %1310 = vmatprep.subr.mxu0 0.0
        %1311 = vmatpush2.msra.mxu0 0.0
        %1312 = vmatprep.subr.mxu0 0.0
        %1313 = vmatpush2.msra.mxu0 0.0
        %1314 = vmatprep.subr.mxu0 0.0
        %1315 = vmatpush2.msra.mxu0 0.0
        %1316 = vmatprep.subr.mxu0 0.0
        %1317 = vmatpush2.msra.mxu0 0.0
        %1318 = vmatprep.subr.mxu0 0.0
        %1319 = vmatpush2.msra.mxu0 0.0
        %1320 = vmatprep.subr.mxu0 0.0
        %1321 = vmatpush2.msra.mxu0 0.0
        %1322 = vmatprep.subr.mxu0 0.0
        %1323 = vmatpush2.msra.mxu0 0.0
        %1324 = vmatprep.subr.mxu0 0.0
        %1325 = vmatpush2.msra.mxu0 0.0
        %1326 = vmatprep.subr.mxu0 0.0
        %1327 = vmatpush2.msra.mxu0 0.0
        %1328 = vmatprep.subr.mxu0 0.0
        %1329 = vmatpush2.msra.mxu0 0.0
        %1330 = vmatprep.mubr.f32.mxu0 0.0
        %v1331 = vand.u32 %v850, 4294901760
        %1332 = vmatmul.mubr.f32.gmra.mxu0 %v1331
        %v1333 = vpop.f32.mrf.mxu0
        %v1334 = vadd.f32 %v1259, %v1333
        %v1335 = vpop.f32.mrf.mxu0
        %1336 = vdwg.mxu0
        %v1337 = vmul.f32 %v1334, %v347
        %vm1338 = vcmask 64512
        %v1340 = vsel %vm1338, 1.0, 0
        %1342 = vmatprep.subr.mxu0 0.0
        %1343 = vmatpush1.msra.mxu0 0.0
        %1344 = vmatprep.subr.mxu0 0.0
        %1345 = vmatpush1.msra.mxu0 0.0
        %1346 = vmatprep.subr.mxu0 0.0
        %1347 = vmatpush1.msra.mxu0 0.0
        %1348 = vmatprep.subr.mxu0 0.0
        %1349 = vmatpush1.msra.mxu0 0.0
        %1350 = vmatprep.subr.mxu0 0.0
        %1351 = vmatpush1.msra.mxu0 0.0
        %1352 = vmatprep.subr.mxu0 0.0
        %1353 = vmatpush1.msra.mxu0 0.0
        %1354 = vmatprep.subr.mxu0 0.0
        %1355 = vmatpush1.msra.mxu0 0.0
        %1356 = vmatprep.subr.mxu0 0.0
        %1357 = vmatpush1.msra.mxu0 0.0
        %1358 = vmatprep.subr.mxu0 0.0
        %1359 = vmatpush1.msra.mxu0 0.0
        %1360 = vmatprep.subr.mxu0 0.0
        %1361 = vmatpush1.msra.mxu0 0.0
        %1362 = vmatprep.subr.mxu0 0.0
        %1363 = vmatpush1.msra.mxu0 0.0
        %1364 = vmatprep.subr.mxu0 0.0
        %1365 = vmatpush1.msra.mxu0 0.0
        %1366 = vmatprep.subr.mxu0 0.0
        %1367 = vmatpush1.msra.mxu0 0.0
        %1368 = vmatprep.subr.mxu0 0.0
        %1369 = vmatpush1.msra.mxu0 0.0
        %1370 = vmatprep.subr.mxu0 0.0
        %1371 = vmatpush1.msra.mxu0 0.0
        %1372 = vmatprep.subr.mxu0 0.0
        %v1373 = vand.u32 %v1337, 4294901760
        %1374 = vmatpush1.msra.mxu0 %v1373
        %1375 = vmatprep.subr.mxu0 0.0
        %1376 = vmatpush2.msra.mxu0 0.0
        %1377 = vmatprep.subr.mxu0 0.0
        %1378 = vmatpush2.msra.mxu0 0.0
        %1379 = vmatprep.subr.mxu0 0.0
        %1380 = vmatpush2.msra.mxu0 0.0
        %1381 = vmatprep.subr.mxu0 0.0
        %1382 = vmatpush2.msra.mxu0 0.0
        %1383 = vmatprep.subr.mxu0 0.0
        %1384 = vmatpush2.msra.mxu0 0.0
        %1385 = vmatprep.subr.mxu0 0.0
        %1386 = vmatpush2.msra.mxu0 0.0
        %1387 = vmatprep.subr.mxu0 0.0
        %1388 = vmatpush2.msra.mxu0 0.0
        %1389 = vmatprep.subr.mxu0 0.0
        %1390 = vmatpush2.msra.mxu0 0.0
        %1391 = vmatprep.subr.mxu0 0.0
        %1392 = vmatpush2.msra.mxu0 0.0
        %1393 = vmatprep.subr.mxu0 0.0
        %1394 = vmatpush2.msra.mxu0 0.0
        %1395 = vmatprep.subr.mxu0 0.0
        %1396 = vmatpush2.msra.mxu0 0.0
        %1397 = vmatprep.subr.mxu0 0.0
        %1398 = vmatpush2.msra.mxu0 0.0
        %1399 = vmatprep.subr.mxu0 0.0
        %1400 = vmatpush2.msra.mxu0 0.0
        %1401 = vmatprep.subr.mxu0 0.0
        %1402 = vmatpush2.msra.mxu0 0.0
        %1403 = vmatprep.subr.mxu0 0.0
        %1404 = vmatpush2.msra.mxu0 0.0
        %1405 = vmatprep.subr.mxu0 0.0
        %1406 = vmatpush2.msra.mxu0 0.0
        %1407 = vmatprep.mubr.f32.mxu0 0.0
        %v1408 = vand.u32 %v1340, 4294901760
        %v1409 = vsub.f32 %v1340, %v1408
        %v1410 = vand.u32 %v1409, 4294901760
        %v1411 = vsub.f32 %v1409, %v1410
        %v1412 = vand.u32 %v1411, 4294901760
        %1413 = vmatmul.mubr.f32.gmra.mxu0 %v1412
        %v1414 = vpop.f32.mrf.mxu0
        %v1415 = vadd.f32 0.0, %v1414
        %v1416 = vpop.f32.mrf.mxu0
        %1417 = vdwg.mxu0
        %1418 = vmatprep.subr.mxu0 0.0
        %1419 = vmatpush1.msra.mxu0 0.0
        %1420 = vmatprep.subr.mxu0 0.0
        %1421 = vmatpush1.msra.mxu0 0.0
        %1422 = vmatprep.subr.mxu0 0.0
        %1423 = vmatpush1.msra.mxu0 0.0
        %1424 = vmatprep.subr.mxu0 0.0
        %1425 = vmatpush1.msra.mxu0 0.0
        %1426 = vmatprep.subr.mxu0 0.0
        %1427 = vmatpush1.msra.mxu0 0.0
        %1428 = vmatprep.subr.mxu0 0.0
        %1429 = vmatpush1.msra.mxu0 0.0
        %1430 = vmatprep.subr.mxu0 0.0
        %1431 = vmatpush1.msra.mxu0 0.0
        %1432 = vmatprep.subr.mxu0 0.0
        %1433 = vmatpush1.msra.mxu0 0.0
        %1434 = vmatprep.subr.mxu0 0.0
        %1435 = vmatpush1.msra.mxu0 0.0
        %1436 = vmatprep.subr.mxu0 0.0
        %1437 = vmatpush1.msra.mxu0 0.0
        %1438 = vmatprep.subr.mxu0 0.0
        %1439 = vmatpush1.msra.mxu0 0.0
        %1440 = vmatprep.subr.mxu0 0.0
        %1441 = vmatpush1.msra.mxu0 0.0
        %1442 = vmatprep.subr.mxu0 0.0
        %1443 = vmatpush1.msra.mxu0 0.0
        %1444 = vmatprep.subr.mxu0 0.0
        %1445 = vmatpush1.msra.mxu0 0.0
        %1446 = vmatprep.subr.mxu0 0.0
        %1447 = vmatpush1.msra.mxu0 0.0
        %1448 = vmatprep.subr.mxu0 0.0
        %v1449 = vand.u32 %v1337, 4294901760
        %v1450 = vsub.f32 %v1337, %v1449
        %v1451 = vand.u32 %v1450, 4294901760
        %v1452 = vsub.f32 %v1450, %v1451
        %v1453 = vand.u32 %v1452, 4294901760
        %1454 = vmatpush1.msra.mxu0 %v1453
        %1455 = vmatprep.subr.mxu0 0.0
        %1456 = vmatpush2.msra.mxu0 0.0
        %1457 = vmatprep.subr.mxu0 0.0
        %1458 = vmatpush2.msra.mxu0 0.0
        %1459 = vmatprep.subr.mxu0 0.0
        %1460 = vmatpush2.msra.mxu0 0.0
        %1461 = vmatprep.subr.mxu0 0.0
        %1462 = vmatpush2.msra.mxu0 0.0
        %1463 = vmatprep.subr.mxu0 0.0
        %1464 = vmatpush2.msra.mxu0 0.0
        %1465 = vmatprep.subr.mxu0 0.0
        %1466 = vmatpush2.msra.mxu0 0.0
        %1467 = vmatprep.subr.mxu0 0.0
        %1468 = vmatpush2.msra.mxu0 0.0
        %1469 = vmatprep.subr.mxu0 0.0
        %1470 = vmatpush2.msra.mxu0 0.0
        %1471 = vmatprep.subr.mxu0 0.0
        %1472 = vmatpush2.msra.mxu0 0.0
        %1473 = vmatprep.subr.mxu0 0.0
        %1474 = vmatpush2.msra.mxu0 0.0
        %1475 = vmatprep.subr.mxu0 0.0
        %1476 = vmatpush2.msra.mxu0 0.0
        %1477 = vmatprep.subr.mxu0 0.0
        %1478 = vmatpush2.msra.mxu0 0.0
        %1479 = vmatprep.subr.mxu0 0.0
        %1480 = vmatpush2.msra.mxu0 0.0
        %1481 = vmatprep.subr.mxu0 0.0
        %1482 = vmatpush2.msra.mxu0 0.0
        %1483 = vmatprep.subr.mxu0 0.0
        %1484 = vmatpush2.msra.mxu0 0.0
        %1485 = vmatprep.subr.mxu0 0.0
        %1486 = vmatpush2.msra.mxu0 0.0
        %1487 = vmatprep.mubr.f32.mxu0 0.0
        %v1488 = vand.u32 %v1340, 4294901760
        %1489 = vmatmul.mubr.f32.gmra.mxu0 %v1488
        %v1490 = vpop.f32.mrf.mxu0
        %v1491 = vadd.f32 %v1415, %v1490
        %v1492 = vpop.f32.mrf.mxu0
        %1493 = vdwg.mxu0
        %1494 = vmatprep.subr.mxu0 0.0
        %1495 = vmatpush1.msra.mxu0 0.0
        %1496 = vmatprep.subr.mxu0 0.0
        %1497 = vmatpush1.msra.mxu0 0.0
        %1498 = vmatprep.subr.mxu0 0.0
        %1499 = vmatpush1.msra.mxu0 0.0
        %1500 = vmatprep.subr.mxu0 0.0
        %1501 = vmatpush1.msra.mxu0 0.0
        %1502 = vmatprep.subr.mxu0 0.0
        %1503 = vmatpush1.msra.mxu0 0.0
        %1504 = vmatprep.subr.mxu0 0.0
        %1505 = vmatpush1.msra.mxu0 0.0
        %1506 = vmatprep.subr.mxu0 0.0
        %1507 = vmatpush1.msra.mxu0 0.0
        %1508 = vmatprep.subr.mxu0 0.0
        %1509 = vmatpush1.msra.mxu0 0.0
        %1510 = vmatprep.subr.mxu0 0.0
        %1511 = vmatpush1.msra.mxu0 0.0
        %1512 = vmatprep.subr.mxu0 0.0
        %1513 = vmatpush1.msra.mxu0 0.0
        %1514 = vmatprep.subr.mxu0 0.0
        %1515 = vmatpush1.msra.mxu0 0.0
        %1516 = vmatprep.subr.mxu0 0.0
        %1517 = vmatpush1.msra.mxu0 0.0
        %1518 = vmatprep.subr.mxu0 0.0
        %1519 = vmatpush1.msra.mxu0 0.0
        %1520 = vmatprep.subr.mxu0 0.0
        %1521 = vmatpush1.msra.mxu0 0.0
        %1522 = vmatprep.subr.mxu0 0.0
        %1523 = vmatpush1.msra.mxu0 0.0
        %1524 = vmatprep.subr.mxu0 0.0
        %v1525 = vand.u32 %v1337, 4294901760
        %v1526 = vsub.f32 %v1337, %v1525
        %1527 = vmatpush1.msra.mxu0 %v1526
        %1528 = vmatprep.subr.mxu0 0.0
        %1529 = vmatpush2.msra.mxu0 0.0
        %1530 = vmatprep.subr.mxu0 0.0
        %1531 = vmatpush2.msra.mxu0 0.0
        %1532 = vmatprep.subr.mxu0 0.0
        %1533 = vmatpush2.msra.mxu0 0.0
        %1534 = vmatprep.subr.mxu0 0.0
        %1535 = vmatpush2.msra.mxu0 0.0
        %1536 = vmatprep.subr.mxu0 0.0
        %1537 = vmatpush2.msra.mxu0 0.0
        %1538 = vmatprep.subr.mxu0 0.0
        %1539 = vmatpush2.msra.mxu0 0.0
        %1540 = vmatprep.subr.mxu0 0.0
        %1541 = vmatpush2.msra.mxu0 0.0
        %1542 = vmatprep.subr.mxu0 0.0
        %1543 = vmatpush2.msra.mxu0 0.0
        %1544 = vmatprep.subr.mxu0 0.0
        %1545 = vmatpush2.msra.mxu0 0.0
        %1546 = vmatprep.subr.mxu0 0.0
        %1547 = vmatpush2.msra.mxu0 0.0
        %1548 = vmatprep.subr.mxu0 0.0
        %1549 = vmatpush2.msra.mxu0 0.0
        %1550 = vmatprep.subr.mxu0 0.0
        %1551 = vmatpush2.msra.mxu0 0.0
        %1552 = vmatprep.subr.mxu0 0.0
        %1553 = vmatpush2.msra.mxu0 0.0
        %1554 = vmatprep.subr.mxu0 0.0
        %1555 = vmatpush2.msra.mxu0 0.0
        %1556 = vmatprep.subr.mxu0 0.0
        %1557 = vmatpush2.msra.mxu0 0.0
        %1558 = vmatprep.subr.mxu0 0.0
        %1559 = vmatpush2.msra.mxu0 0.0
        %1560 = vmatprep.mubr.f32.mxu0 0.0
        %v1561 = vand.u32 %v1340, 4294901760
        %v1562 = vsub.f32 %v1340, %v1561
        %1563 = vmatmul.mubr.f32.gmra.mxu0 %v1562
        %v1564 = vpop.f32.mrf.mxu0
        %v1565 = vadd.f32 %v1491, %v1564
        %v1566 = vpop.f32.mrf.mxu0
        %1567 = vdwg.mxu0
        %1568 = vmatprep.subr.mxu0 0.0
        %1569 = vmatpush1.msra.mxu0 0.0
        %1570 = vmatprep.subr.mxu0 0.0
        %1571 = vmatpush1.msra.mxu0 0.0
        %1572 = vmatprep.subr.mxu0 0.0
        %1573 = vmatpush1.msra.mxu0 0.0
        %1574 = vmatprep.subr.mxu0 0.0
        %1575 = vmatpush1.msra.mxu0 0.0
        %1576 = vmatprep.subr.mxu0 0.0
        %1577 = vmatpush1.msra.mxu0 0.0
        %1578 = vmatprep.subr.mxu0 0.0
        %1579 = vmatpush1.msra.mxu0 0.0
        %1580 = vmatprep.subr.mxu0 0.0
        %1581 = vmatpush1.msra.mxu0 0.0
        %1582 = vmatprep.subr.mxu0 0.0
        %1583 = vmatpush1.msra.mxu0 0.0
        %1584 = vmatprep.subr.mxu0 0.0
        %1585 = vmatpush1.msra.mxu0 0.0
        %1586 = vmatprep.subr.mxu0 0.0
        %1587 = vmatpush1.msra.mxu0 0.0
        %1588 = vmatprep.subr.mxu0 0.0
        %1589 = vmatpush1.msra.mxu0 0.0
        %1590 = vmatprep.subr.mxu0 0.0
        %1591 = vmatpush1.msra.mxu0 0.0
        %1592 = vmatprep.subr.mxu0 0.0
        %1593 = vmatpush1.msra.mxu0 0.0
        %1594 = vmatprep.subr.mxu0 0.0
        %1595 = vmatpush1.msra.mxu0 0.0
        %1596 = vmatprep.subr.mxu0 0.0
        %1597 = vmatpush1.msra.mxu0 0.0
        %1598 = vmatprep.subr.mxu0 0.0
        %v1599 = vand.u32 %v1337, 4294901760
        %1600 = vmatpush1.msra.mxu0 %v1599
        %1601 = vmatprep.subr.mxu0 0.0
        %1602 = vmatpush2.msra.mxu0 0.0
        %1603 = vmatprep.subr.mxu0 0.0
        %1604 = vmatpush2.msra.mxu0 0.0
        %1605 = vmatprep.subr.mxu0 0.0
        %1606 = vmatpush2.msra.mxu0 0.0
        %1607 = vmatprep.subr.mxu0 0.0
        %1608 = vmatpush2.msra.mxu0 0.0
        %1609 = vmatprep.subr.mxu0 0.0
        %1610 = vmatpush2.msra.mxu0 0.0
        %1611 = vmatprep.subr.mxu0 0.0
        %1612 = vmatpush2.msra.mxu0 0.0
        %1613 = vmatprep.subr.mxu0 0.0
        %1614 = vmatpush2.msra.mxu0 0.0
        %1615 = vmatprep.subr.mxu0 0.0
        %1616 = vmatpush2.msra.mxu0 0.0
        %1617 = vmatprep.subr.mxu0 0.0
        %1618 = vmatpush2.msra.mxu0 0.0
        %1619 = vmatprep.subr.mxu0 0.0
        %1620 = vmatpush2.msra.mxu0 0.0
        %1621 = vmatprep.subr.mxu0 0.0
        %1622 = vmatpush2.msra.mxu0 0.0
        %1623 = vmatprep.subr.mxu0 0.0
        %1624 = vmatpush2.msra.mxu0 0.0
        %1625 = vmatprep.subr.mxu0 0.0
        %1626 = vmatpush2.msra.mxu0 0.0
        %1627 = vmatprep.subr.mxu0 0.0
        %1628 = vmatpush2.msra.mxu0 0.0
        %1629 = vmatprep.subr.mxu0 0.0
        %1630 = vmatpush2.msra.mxu0 0.0
        %1631 = vmatprep.subr.mxu0 0.0
        %1632 = vmatpush2.msra.mxu0 0.0
        %1633 = vmatprep.mubr.f32.mxu0 0.0
        %v1634 = vand.u32 %v1340, 4294901760
        %v1635 = vsub.f32 %v1340, %v1634
        %v1636 = vand.u32 %v1635, 4294901760
        %1637 = vmatmul.mubr.f32.gmra.mxu0 %v1636
        %v1638 = vpop.f32.mrf.mxu0
        %v1639 = vadd.f32 %v1565, %v1638
        %v1640 = vpop.f32.mrf.mxu0
        %1641 = vdwg.mxu0
        %1642 = vmatprep.subr.mxu0 0.0
        %1643 = vmatpush1.msra.mxu0 0.0
        %1644 = vmatprep.subr.mxu0 0.0
        %1645 = vmatpush1.msra.mxu0 0.0
        %1646 = vmatprep.subr.mxu0 0.0
        %1647 = vmatpush1.msra.mxu0 0.0
        %1648 = vmatprep.subr.mxu0 0.0
        %1649 = vmatpush1.msra.mxu0 0.0
        %1650 = vmatprep.subr.mxu0 0.0
        %1651 = vmatpush1.msra.mxu0 0.0
        %1652 = vmatprep.subr.mxu0 0.0
        %1653 = vmatpush1.msra.mxu0 0.0
        %1654 = vmatprep.subr.mxu0 0.0
        %1655 = vmatpush1.msra.mxu0 0.0
        %1656 = vmatprep.subr.mxu0 0.0
        %1657 = vmatpush1.msra.mxu0 0.0
        %1658 = vmatprep.subr.mxu0 0.0
        %1659 = vmatpush1.msra.mxu0 0.0
        %1660 = vmatprep.subr.mxu0 0.0
        %1661 = vmatpush1.msra.mxu0 0.0
        %1662 = vmatprep.subr.mxu0 0.0
        %1663 = vmatpush1.msra.mxu0 0.0
        %1664 = vmatprep.subr.mxu0 0.0
        %1665 = vmatpush1.msra.mxu0 0.0
        %1666 = vmatprep.subr.mxu0 0.0
        %1667 = vmatpush1.msra.mxu0 0.0
        %1668 = vmatprep.subr.mxu0 0.0
        %1669 = vmatpush1.msra.mxu0 0.0
        %1670 = vmatprep.subr.mxu0 0.0
        %1671 = vmatpush1.msra.mxu0 0.0
        %1672 = vmatprep.subr.mxu0 0.0
        %v1673 = vand.u32 %v1337, 4294901760
        %v1674 = vsub.f32 %v1337, %v1673
        %v1675 = vand.u32 %v1674, 4294901760
        %1676 = vmatpush1.msra.mxu0 %v1675
        %1677 = vmatprep.subr.mxu0 0.0
        %1678 = vmatpush2.msra.mxu0 0.0
        %1679 = vmatprep.subr.mxu0 0.0
        %1680 = vmatpush2.msra.mxu0 0.0
        %1681 = vmatprep.subr.mxu0 0.0
        %1682 = vmatpush2.msra.mxu0 0.0
        %1683 = vmatprep.subr.mxu0 0.0
        %1684 = vmatpush2.msra.mxu0 0.0
        %1685 = vmatprep.subr.mxu0 0.0
        %1686 = vmatpush2.msra.mxu0 0.0
        %1687 = vmatprep.subr.mxu0 0.0
        %1688 = vmatpush2.msra.mxu0 0.0
        %1689 = vmatprep.subr.mxu0 0.0
        %1690 = vmatpush2.msra.mxu0 0.0
        %1691 = vmatprep.subr.mxu0 0.0
        %1692 = vmatpush2.msra.mxu0 0.0
        %1693 = vmatprep.subr.mxu0 0.0
        %1694 = vmatpush2.msra.mxu0 0.0
        %1695 = vmatprep.subr.mxu0 0.0
        %1696 = vmatpush2.msra.mxu0 0.0
        %1697 = vmatprep.subr.mxu0 0.0
        %1698 = vmatpush2.msra.mxu0 0.0
        %1699 = vmatprep.subr.mxu0 0.0
        %1700 = vmatpush2.msra.mxu0 0.0
        %1701 = vmatprep.subr.mxu0 0.0
        %1702 = vmatpush2.msra.mxu0 0.0
        %1703 = vmatprep.subr.mxu0 0.0
        %1704 = vmatpush2.msra.mxu0 0.0
        %1705 = vmatprep.subr.mxu0 0.0
        %1706 = vmatpush2.msra.mxu0 0.0
        %1707 = vmatprep.subr.mxu0 0.0
        %1708 = vmatpush2.msra.mxu0 0.0
        %1709 = vmatprep.mubr.f32.mxu0 0.0
        %v1710 = vand.u32 %v1340, 4294901760
        %1711 = vmatmul.mubr.f32.gmra.mxu0 %v1710
        %v1712 = vpop.f32.mrf.mxu0
        %v1713 = vadd.f32 %v1639, %v1712
        %v1714 = vpop.f32.mrf.mxu0
        %1715 = vdwg.mxu0
        %1716 = vmatprep.subr.mxu0 0.0
        %1717 = vmatpush1.msra.mxu0 0.0
        %1718 = vmatprep.subr.mxu0 0.0
        %1719 = vmatpush1.msra.mxu0 0.0
        %1720 = vmatprep.subr.mxu0 0.0
        %1721 = vmatpush1.msra.mxu0 0.0
        %1722 = vmatprep.subr.mxu0 0.0
        %1723 = vmatpush1.msra.mxu0 0.0
        %1724 = vmatprep.subr.mxu0 0.0
        %1725 = vmatpush1.msra.mxu0 0.0
        %1726 = vmatprep.subr.mxu0 0.0
        %1727 = vmatpush1.msra.mxu0 0.0
        %1728 = vmatprep.subr.mxu0 0.0
        %1729 = vmatpush1.msra.mxu0 0.0
        %1730 = vmatprep.subr.mxu0 0.0
        %1731 = vmatpush1.msra.mxu0 0.0
        %1732 = vmatprep.subr.mxu0 0.0
        %1733 = vmatpush1.msra.mxu0 0.0
        %1734 = vmatprep.subr.mxu0 0.0
        %1735 = vmatpush1.msra.mxu0 0.0
        %1736 = vmatprep.subr.mxu0 0.0
        %1737 = vmatpush1.msra.mxu0 0.0
        %1738 = vmatprep.subr.mxu0 0.0
        %1739 = vmatpush1.msra.mxu0 0.0
        %1740 = vmatprep.subr.mxu0 0.0
        %1741 = vmatpush1.msra.mxu0 0.0
        %1742 = vmatprep.subr.mxu0 0.0
        %1743 = vmatpush1.msra.mxu0 0.0
        %1744 = vmatprep.subr.mxu0 0.0
        %1745 = vmatpush1.msra.mxu0 0.0
        %1746 = vmatprep.subr.mxu0 0.0
        %v1747 = vand.u32 %v1337, 4294901760
        %1748 = vmatpush1.msra.mxu0 %v1747
        %1749 = vmatprep.subr.mxu0 0.0
        %1750 = vmatpush2.msra.mxu0 0.0
        %1751 = vmatprep.subr.mxu0 0.0
        %1752 = vmatpush2.msra.mxu0 0.0
        %1753 = vmatprep.subr.mxu0 0.0
        %1754 = vmatpush2.msra.mxu0 0.0
        %1755 = vmatprep.subr.mxu0 0.0
        %1756 = vmatpush2.msra.mxu0 0.0
        %1757 = vmatprep.subr.mxu0 0.0
        %1758 = vmatpush2.msra.mxu0 0.0
        %1759 = vmatprep.subr.mxu0 0.0
        %1760 = vmatpush2.msra.mxu0 0.0
        %1761 = vmatprep.subr.mxu0 0.0
        %1762 = vmatpush2.msra.mxu0 0.0
        %1763 = vmatprep.subr.mxu0 0.0
        %1764 = vmatpush2.msra.mxu0 0.0
        %1765 = vmatprep.subr.mxu0 0.0
        %1766 = vmatpush2.msra.mxu0 0.0
        %1767 = vmatprep.subr.mxu0 0.0
        %1768 = vmatpush2.msra.mxu0 0.0
        %1769 = vmatprep.subr.mxu0 0.0
        %1770 = vmatpush2.msra.mxu0 0.0
        %1771 = vmatprep.subr.mxu0 0.0
        %1772 = vmatpush2.msra.mxu0 0.0
        %1773 = vmatprep.subr.mxu0 0.0
        %1774 = vmatpush2.msra.mxu0 0.0
        %1775 = vmatprep.subr.mxu0 0.0
        %1776 = vmatpush2.msra.mxu0 0.0
        %1777 = vmatprep.subr.mxu0 0.0
        %1778 = vmatpush2.msra.mxu0 0.0
        %1779 = vmatprep.subr.mxu0 0.0
        %1780 = vmatpush2.msra.mxu0 0.0
        %1781 = vmatprep.mubr.f32.mxu0 0.0
        %v1782 = vand.u32 %v1340, 4294901760
        %1783 = vmatmul.mubr.f32.gmra.mxu0 %v1782
        %v1784 = vpop.f32.mrf.mxu0
        %v1785 = vadd.f32 %v1713, %v1784
        %v1786 = vpop.f32.mrf.mxu0
        %1787 = vdwg.mxu0
        %1788 = vmatprep.subr.mxu0 0.0
        %1789 = vmatpush1.msra.mxu0 0.0
        %1790 = vmatprep.subr.mxu0 0.0
        %1791 = vmatpush1.msra.mxu0 0.0
        %1792 = vmatprep.subr.mxu0 0.0
        %1793 = vmatpush1.msra.mxu0 0.0
        %1794 = vmatprep.subr.mxu0 0.0
        %1795 = vmatpush1.msra.mxu0 0.0
        %1796 = vmatprep.subr.mxu0 0.0
        %1797 = vmatpush1.msra.mxu0 0.0
        %1798 = vmatprep.subr.mxu0 0.0
        %1799 = vmatpush1.msra.mxu0 0.0
        %1800 = vmatprep.subr.mxu0 0.0
        %1801 = vmatpush1.msra.mxu0 0.0
        %1802 = vmatprep.subr.mxu0 0.0
        %1803 = vmatpush1.msra.mxu0 0.0
        %1804 = vmatprep.subr.mxu0 0.0
        %1805 = vmatpush1.msra.mxu0 0.0
        %1806 = vmatprep.subr.mxu0 0.0
        %1807 = vmatpush1.msra.mxu0 0.0
        %1808 = vmatprep.subr.mxu0 0.0
        %1809 = vmatpush1.msra.mxu0 0.0
        %1810 = vmatprep.subr.mxu0 0.0
        %1811 = vmatpush1.msra.mxu0 0.0
        %1812 = vmatprep.subr.mxu0 0.0
        %v1813 = vand.u32 %v844, 4294901760
        %1814 = vmatpush1.msra.mxu0 %v1813
        %1815 = vmatprep.subr.mxu0 0.0
        %v1816 = vand.u32 %v843, 4294901760
        %1817 = vmatpush1.msra.mxu0 %v1816
        %1818 = vmatprep.subr.mxu0 0.0
        %v1819 = vand.u32 %v842, 4294901760
        %1820 = vmatpush1.msra.mxu0 %v1819
        %1821 = vmatprep.subr.mxu0 0.0
        %v1822 = vand.u32 %v841, 4294901760
        %1823 = vmatpush1.msra.mxu0 %v1822
        %1824 = vmatprep.subr.mxu0 0.0
        %1825 = vmatpush2.msra.mxu0 0.0
        %1826 = vmatprep.subr.mxu0 0.0
        %1827 = vmatpush2.msra.mxu0 0.0
        %1828 = vmatprep.subr.mxu0 0.0
        %1829 = vmatpush2.msra.mxu0 0.0
        %1830 = vmatprep.subr.mxu0 0.0
        %1831 = vmatpush2.msra.mxu0 0.0
        %1832 = vmatprep.subr.mxu0 0.0
        %1833 = vmatpush2.msra.mxu0 0.0
        %1834 = vmatprep.subr.mxu0 0.0
        %1835 = vmatpush2.msra.mxu0 0.0
        %1836 = vmatprep.subr.mxu0 0.0
        %1837 = vmatpush2.msra.mxu0 0.0
        %1838 = vmatprep.subr.mxu0 0.0
        %1839 = vmatpush2.msra.mxu0 0.0
        %1840 = vmatprep.subr.mxu0 0.0
        %1841 = vmatpush2.msra.mxu0 0.0
        %1842 = vmatprep.subr.mxu0 0.0
        %1843 = vmatpush2.msra.mxu0 0.0
        %1844 = vmatprep.subr.mxu0 0.0
        %1845 = vmatpush2.msra.mxu0 0.0
        %1846 = vmatprep.subr.mxu0 0.0
        %1847 = vmatpush2.msra.mxu0 0.0
        %1848 = vmatprep.subr.mxu0 0.0
        %1849 = vmatpush2.msra.mxu0 0.0
        %1850 = vmatprep.subr.mxu0 0.0
        %1851 = vmatpush2.msra.mxu0 0.0
        %1852 = vmatprep.subr.mxu0 0.0
        %1853 = vmatpush2.msra.mxu0 0.0
        %1854 = vmatprep.subr.mxu0 0.0
        %1855 = vmatpush2.msra.mxu0 0.0
        %1856 = vmatprep.mubr.f32.mxu0 0.0
        %v1857 = vand.u32 %v850, 4294901760
        %v1858 = vsub.f32 %v850, %v1857
        %v1859 = vand.u32 %v1858, 4294901760
        %v1860 = vsub.f32 %v1858, %v1859
        %v1861 = vand.u32 %v1860, 4294901760
        %1862 = vmatmul.mubr.f32.gmra.mxu0 %v1861
        %v1863 = vpop.f32.mrf.mxu0
        %v1864 = vadd.f32 %v1785, %v1863
        %v1865 = vpop.f32.mrf.mxu0
        %1866 = vdwg.mxu0
        %1867 = vmatprep.subr.mxu0 0.0
        %1868 = vmatpush1.msra.mxu0 0.0
        %1869 = vmatprep.subr.mxu0 0.0
        %1870 = vmatpush1.msra.mxu0 0.0
        %1871 = vmatprep.subr.mxu0 0.0
        %1872 = vmatpush1.msra.mxu0 0.0
        %1873 = vmatprep.subr.mxu0 0.0
        %1874 = vmatpush1.msra.mxu0 0.0
        %1875 = vmatprep.subr.mxu0 0.0
        %1876 = vmatpush1.msra.mxu0 0.0
        %1877 = vmatprep.subr.mxu0 0.0
        %1878 = vmatpush1.msra.mxu0 0.0
        %1879 = vmatprep.subr.mxu0 0.0
        %1880 = vmatpush1.msra.mxu0 0.0
        %1881 = vmatprep.subr.mxu0 0.0
        %1882 = vmatpush1.msra.mxu0 0.0
        %1883 = vmatprep.subr.mxu0 0.0
        %1884 = vmatpush1.msra.mxu0 0.0
        %1885 = vmatprep.subr.mxu0 0.0
        %1886 = vmatpush1.msra.mxu0 0.0
        %1887 = vmatprep.subr.mxu0 0.0
        %1888 = vmatpush1.msra.mxu0 0.0
        %1889 = vmatprep.subr.mxu0 0.0
        %1890 = vmatpush1.msra.mxu0 0.0
        %1891 = vmatprep.subr.mxu0 0.0
        %v1892 = vand.u32 %v844, 4294901760
        %v1893 = vsub.f32 %v844, %v1892
        %v1894 = vand.u32 %v1893, 4294901760
        %v1895 = vsub.f32 %v1893, %v1894
        %v1896 = vand.u32 %v1895, 4294901760
        %1897 = vmatpush1.msra.mxu0 %v1896
        %1898 = vmatprep.subr.mxu0 0.0
        %v1899 = vand.u32 %v843, 4294901760
        %v1900 = vsub.f32 %v843, %v1899
        %v1901 = vand.u32 %v1900, 4294901760
        %v1902 = vsub.f32 %v1900, %v1901
        %v1903 = vand.u32 %v1902, 4294901760
        %1904 = vmatpush1.msra.mxu0 %v1903
        %1905 = vmatprep.subr.mxu0 0.0
        %v1906 = vand.u32 %v842, 4294901760
        %v1907 = vsub.f32 %v842, %v1906
        %v1908 = vand.u32 %v1907, 4294901760
        %v1909 = vsub.f32 %v1907, %v1908
        %v1910 = vand.u32 %v1909, 4294901760
        %1911 = vmatpush1.msra.mxu0 %v1910
        %1912 = vmatprep.subr.mxu0 0.0
        %v1913 = vand.u32 %v841, 4294901760
        %v1914 = vsub.f32 %v841, %v1913
        %v1915 = vand.u32 %v1914, 4294901760
        %v1916 = vsub.f32 %v1914, %v1915
        %v1917 = vand.u32 %v1916, 4294901760
        %1918 = vmatpush1.msra.mxu0 %v1917
        %1919 = vmatprep.subr.mxu0 0.0
        %1920 = vmatpush2.msra.mxu0 0.0
        %1921 = vmatprep.subr.mxu0 0.0
        %1922 = vmatpush2.msra.mxu0 0.0
        %1923 = vmatprep.subr.mxu0 0.0
        %1924 = vmatpush2.msra.mxu0 0.0
        %1925 = vmatprep.subr.mxu0 0.0
        %1926 = vmatpush2.msra.mxu0 0.0
        %1927 = vmatprep.subr.mxu0 0.0
        %1928 = vmatpush2.msra.mxu0 0.0
        %1929 = vmatprep.subr.mxu0 0.0
        %1930 = vmatpush2.msra.mxu0 0.0
        %1931 = vmatprep.subr.mxu0 0.0
        %1932 = vmatpush2.msra.mxu0 0.0
        %1933 = vmatprep.subr.mxu0 0.0
        %1934 = vmatpush2.msra.mxu0 0.0
        %1935 = vmatprep.subr.mxu0 0.0
        %1936 = vmatpush2.msra.mxu0 0.0
        %1937 = vmatprep.subr.mxu0 0.0
        %1938 = vmatpush2.msra.mxu0 0.0
        %1939 = vmatprep.subr.mxu0 0.0
        %1940 = vmatpush2.msra.mxu0 0.0
        %1941 = vmatprep.subr.mxu0 0.0
        %1942 = vmatpush2.msra.mxu0 0.0
        %1943 = vmatprep.subr.mxu0 0.0
        %1944 = vmatpush2.msra.mxu0 0.0
        %1945 = vmatprep.subr.mxu0 0.0
        %1946 = vmatpush2.msra.mxu0 0.0
        %1947 = vmatprep.subr.mxu0 0.0
        %1948 = vmatpush2.msra.mxu0 0.0
        %1949 = vmatprep.subr.mxu0 0.0
        %1950 = vmatpush2.msra.mxu0 0.0
        %1951 = vmatprep.mubr.f32.mxu0 0.0
        %v1952 = vand.u32 %v850, 4294901760
        %1953 = vmatmul.mubr.f32.gmra.mxu0 %v1952
        %v1954 = vpop.f32.mrf.mxu0
        %v1955 = vadd.f32 %v1864, %v1954
        %v1956 = vpop.f32.mrf.mxu0
        %1957 = vdwg.mxu0
        %1958 = vmatprep.subr.mxu0 0.0
        %1959 = vmatpush1.msra.mxu0 0.0
        %1960 = vmatprep.subr.mxu0 0.0
        %1961 = vmatpush1.msra.mxu0 0.0
        %1962 = vmatprep.subr.mxu0 0.0
        %1963 = vmatpush1.msra.mxu0 0.0
        %1964 = vmatprep.subr.mxu0 0.0
        %1965 = vmatpush1.msra.mxu0 0.0
        %1966 = vmatprep.subr.mxu0 0.0
        %1967 = vmatpush1.msra.mxu0 0.0
        %1968 = vmatprep.subr.mxu0 0.0
        %1969 = vmatpush1.msra.mxu0 0.0
        %1970 = vmatprep.subr.mxu0 0.0
        %1971 = vmatpush1.msra.mxu0 0.0
        %1972 = vmatprep.subr.mxu0 0.0
        %1973 = vmatpush1.msra.mxu0 0.0
        %1974 = vmatprep.subr.mxu0 0.0
        %1975 = vmatpush1.msra.mxu0 0.0
        %1976 = vmatprep.subr.mxu0 0.0
        %1977 = vmatpush1.msra.mxu0 0.0
        %1978 = vmatprep.subr.mxu0 0.0
        %1979 = vmatpush1.msra.mxu0 0.0
        %1980 = vmatprep.subr.mxu0 0.0
        %1981 = vmatpush1.msra.mxu0 0.0
        %1982 = vmatprep.subr.mxu0 0.0
        %v1983 = vand.u32 %v844, 4294901760
        %v1984 = vsub.f32 %v844, %v1983
        %1985 = vmatpush1.msra.mxu0 %v1984
        %1986 = vmatprep.subr.mxu0 0.0
        %v1987 = vand.u32 %v843, 4294901760
        %v1988 = vsub.f32 %v843, %v1987
        %1989 = vmatpush1.msra.mxu0 %v1988
        %1990 = vmatprep.subr.mxu0 0.0
        %v1991 = vand.u32 %v842, 4294901760
        %v1992 = vsub.f32 %v842, %v1991
        %1993 = vmatpush1.msra.mxu0 %v1992
        %1994 = vmatprep.subr.mxu0 0.0
        %v1995 = vand.u32 %v841, 4294901760
        %v1996 = vsub.f32 %v841, %v1995
        %1997 = vmatpush1.msra.mxu0 %v1996
        %1998 = vmatprep.subr.mxu0 0.0
        %1999 = vmatpush2.msra.mxu0 0.0
        %2000 = vmatprep.subr.mxu0 0.0
        %2001 = vmatpush2.msra.mxu0 0.0
        %2002 = vmatprep.subr.mxu0 0.0
        %2003 = vmatpush2.msra.mxu0 0.0
        %2004 = vmatprep.subr.mxu0 0.0
        %2005 = vmatpush2.msra.mxu0 0.0
        %2006 = vmatprep.subr.mxu0 0.0
        %2007 = vmatpush2.msra.mxu0 0.0
        %2008 = vmatprep.subr.mxu0 0.0
        %2009 = vmatpush2.msra.mxu0 0.0
        %2010 = vmatprep.subr.mxu0 0.0
        %2011 = vmatpush2.msra.mxu0 0.0
        %2012 = vmatprep.subr.mxu0 0.0
        %2013 = vmatpush2.msra.mxu0 0.0
        %2014 = vmatprep.subr.mxu0 0.0
        %2015 = vmatpush2.msra.mxu0 0.0
        %2016 = vmatprep.subr.mxu0 0.0
        %2017 = vmatpush2.msra.mxu0 0.0
        %2018 = vmatprep.subr.mxu0 0.0
        %2019 = vmatpush2.msra.mxu0 0.0
        %2020 = vmatprep.subr.mxu0 0.0
        %2021 = vmatpush2.msra.mxu0 0.0
        %2022 = vmatprep.subr.mxu0 0.0
        %2023 = vmatpush2.msra.mxu0 0.0
        %2024 = vmatprep.subr.mxu0 0.0
        %2025 = vmatpush2.msra.mxu0 0.0
        %2026 = vmatprep.subr.mxu0 0.0
        %2027 = vmatpush2.msra.mxu0 0.0
        %2028 = vmatprep.subr.mxu0 0.0
        %2029 = vmatpush2.msra.mxu0 0.0
        %2030 = vmatprep.mubr.f32.mxu0 0.0
        %v2031 = vand.u32 %v850, 4294901760
        %v2032 = vsub.f32 %v850, %v2031
        %2033 = vmatmul.mubr.f32.gmra.mxu0 %v2032
        %v2034 = vpop.f32.mrf.mxu0
        %v2035 = vadd.f32 %v1955, %v2034
        %v2036 = vpop.f32.mrf.mxu0
        %2037 = vdwg.mxu0
        %2038 = vmatprep.subr.mxu0 0.0
        %2039 = vmatpush1.msra.mxu0 0.0
        %2040 = vmatprep.subr.mxu0 0.0
        %2041 = vmatpush1.msra.mxu0 0.0
        %2042 = vmatprep.subr.mxu0 0.0
        %2043 = vmatpush1.msra.mxu0 0.0
        %2044 = vmatprep.subr.mxu0 0.0
        %2045 = vmatpush1.msra.mxu0 0.0
        %2046 = vmatprep.subr.mxu0 0.0
        %2047 = vmatpush1.msra.mxu0 0.0
        %2048 = vmatprep.subr.mxu0 0.0
        %2049 = vmatpush1.msra.mxu0 0.0
        %2050 = vmatprep.subr.mxu0 0.0
        %2051 = vmatpush1.msra.mxu0 0.0
        %2052 = vmatprep.subr.mxu0 0.0
        %2053 = vmatpush1.msra.mxu0 0.0
        %2054 = vmatprep.subr.mxu0 0.0
        %2055 = vmatpush1.msra.mxu0 0.0
        %2056 = vmatprep.subr.mxu0 0.0
        %2057 = vmatpush1.msra.mxu0 0.0
        %2058 = vmatprep.subr.mxu0 0.0
        %2059 = vmatpush1.msra.mxu0 0.0
        %2060 = vmatprep.subr.mxu0 0.0
        %2061 = vmatpush1.msra.mxu0 0.0
        %2062 = vmatprep.subr.mxu0 0.0
        %v2063 = vand.u32 %v844, 4294901760
        %2064 = vmatpush1.msra.mxu0 %v2063
        %2065 = vmatprep.subr.mxu0 0.0
        %v2066 = vand.u32 %v843, 4294901760
        %2067 = vmatpush1.msra.mxu0 %v2066
        %2068 = vmatprep.subr.mxu0 0.0
        %v2069 = vand.u32 %v842, 4294901760
        %2070 = vmatpush1.msra.mxu0 %v2069
        %2071 = vmatprep.subr.mxu0 0.0
        %v2072 = vand.u32 %v841, 4294901760
        %2073 = vmatpush1.msra.mxu0 %v2072
        %2074 = vmatprep.subr.mxu0 0.0
        %2075 = vmatpush2.msra.mxu0 0.0
        %2076 = vmatprep.subr.mxu0 0.0
        %2077 = vmatpush2.msra.mxu0 0.0
        %2078 = vmatprep.subr.mxu0 0.0
        %2079 = vmatpush2.msra.mxu0 0.0
        %2080 = vmatprep.subr.mxu0 0.0
        %2081 = vmatpush2.msra.mxu0 0.0
        %2082 = vmatprep.subr.mxu0 0.0
        %2083 = vmatpush2.msra.mxu0 0.0
        %2084 = vmatprep.subr.mxu0 0.0
        %2085 = vmatpush2.msra.mxu0 0.0
        %2086 = vmatprep.subr.mxu0 0.0
        %2087 = vmatpush2.msra.mxu0 0.0
        %2088 = vmatprep.subr.mxu0 0.0
        %2089 = vmatpush2.msra.mxu0 0.0
        %2090 = vmatprep.subr.mxu0 0.0
        %2091 = vmatpush2.msra.mxu0 0.0
        %2092 = vmatprep.subr.mxu0 0.0
        %2093 = vmatpush2.msra.mxu0 0.0
        %2094 = vmatprep.subr.mxu0 0.0
        %2095 = vmatpush2.msra.mxu0 0.0
        %2096 = vmatprep.subr.mxu0 0.0
        %2097 = vmatpush2.msra.mxu0 0.0
        %2098 = vmatprep.subr.mxu0 0.0
        %2099 = vmatpush2.msra.mxu0 0.0
        %2100 = vmatprep.subr.mxu0 0.0
        %2101 = vmatpush2.msra.mxu0 0.0
        %2102 = vmatprep.subr.mxu0 0.0
        %2103 = vmatpush2.msra.mxu0 0.0
        %2104 = vmatprep.subr.mxu0 0.0
        %2105 = vmatpush2.msra.mxu0 0.0
        %2106 = vmatprep.mubr.f32.mxu0 0.0
        %v2107 = vand.u32 %v850, 4294901760
        %v2108 = vsub.f32 %v850, %v2107
        %v2109 = vand.u32 %v2108, 4294901760
        %2110 = vmatmul.mubr.f32.gmra.mxu0 %v2109
        %v2111 = vpop.f32.mrf.mxu0
        %v2112 = vadd.f32 %v2035, %v2111
        %v2113 = vpop.f32.mrf.mxu0
        %2114 = vdwg.mxu0
        %2115 = vmatprep.subr.mxu0 0.0
        %2116 = vmatpush1.msra.mxu0 0.0
        %2117 = vmatprep.subr.mxu0 0.0
        %2118 = vmatpush1.msra.mxu0 0.0
        %2119 = vmatprep.subr.mxu0 0.0
        %2120 = vmatpush1.msra.mxu0 0.0
        %2121 = vmatprep.subr.mxu0 0.0
        %2122 = vmatpush1.msra.mxu0 0.0
        %2123 = vmatprep.subr.mxu0 0.0
        %2124 = vmatpush1.msra.mxu0 0.0
        %2125 = vmatprep.subr.mxu0 0.0
        %2126 = vmatpush1.msra.mxu0 0.0
        %2127 = vmatprep.subr.mxu0 0.0
        %2128 = vmatpush1.msra.mxu0 0.0
        %2129 = vmatprep.subr.mxu0 0.0
        %2130 = vmatpush1.msra.mxu0 0.0
        %2131 = vmatprep.subr.mxu0 0.0
        %2132 = vmatpush1.msra.mxu0 0.0
        %2133 = vmatprep.subr.mxu0 0.0
        %2134 = vmatpush1.msra.mxu0 0.0
        %2135 = vmatprep.subr.mxu0 0.0
        %2136 = vmatpush1.msra.mxu0 0.0
        %2137 = vmatprep.subr.mxu0 0.0
        %2138 = vmatpush1.msra.mxu0 0.0
        %2139 = vmatprep.subr.mxu0 0.0
        %v2140 = vand.u32 %v844, 4294901760
        %v2141 = vsub.f32 %v844, %v2140
        %v2142 = vand.u32 %v2141, 4294901760
        %2143 = vmatpush1.msra.mxu0 %v2142
        %2144 = vmatprep.subr.mxu0 0.0
        %v2145 = vand.u32 %v843, 4294901760
        %v2146 = vsub.f32 %v843, %v2145
        %v2147 = vand.u32 %v2146, 4294901760
        %2148 = vmatpush1.msra.mxu0 %v2147
        %2149 = vmatprep.subr.mxu0 0.0
        %v2150 = vand.u32 %v842, 4294901760
        %v2151 = vsub.f32 %v842, %v2150
        %v2152 = vand.u32 %v2151, 4294901760
        %2153 = vmatpush1.msra.mxu0 %v2152
        %2154 = vmatprep.subr.mxu0 0.0
        %v2155 = vand.u32 %v841, 4294901760
        %v2156 = vsub.f32 %v841, %v2155
        %v2157 = vand.u32 %v2156, 4294901760
        %2158 = vmatpush1.msra.mxu0 %v2157
        %2159 = vmatprep.subr.mxu0 0.0
        %2160 = vmatpush2.msra.mxu0 0.0
        %2161 = vmatprep.subr.mxu0 0.0
        %2162 = vmatpush2.msra.mxu0 0.0
        %2163 = vmatprep.subr.mxu0 0.0
        %2164 = vmatpush2.msra.mxu0 0.0
        %2165 = vmatprep.subr.mxu0 0.0
        %2166 = vmatpush2.msra.mxu0 0.0
        %2167 = vmatprep.subr.mxu0 0.0
        %2168 = vmatpush2.msra.mxu0 0.0
        %2169 = vmatprep.subr.mxu0 0.0
        %2170 = vmatpush2.msra.mxu0 0.0
        %2171 = vmatprep.subr.mxu0 0.0
        %2172 = vmatpush2.msra.mxu0 0.0
        %2173 = vmatprep.subr.mxu0 0.0
        %2174 = vmatpush2.msra.mxu0 0.0
        %2175 = vmatprep.subr.mxu0 0.0
        %2176 = vmatpush2.msra.mxu0 0.0
        %2177 = vmatprep.subr.mxu0 0.0
        %2178 = vmatpush2.msra.mxu0 0.0
        %2179 = vmatprep.subr.mxu0 0.0
        %2180 = vmatpush2.msra.mxu0 0.0
        %2181 = vmatprep.subr.mxu0 0.0
        %2182 = vmatpush2.msra.mxu0 0.0
        %2183 = vmatprep.subr.mxu0 0.0
        %2184 = vmatpush2.msra.mxu0 0.0
        %2185 = vmatprep.subr.mxu0 0.0
        %2186 = vmatpush2.msra.mxu0 0.0
        %2187 = vmatprep.subr.mxu0 0.0
        %2188 = vmatpush2.msra.mxu0 0.0
        %2189 = vmatprep.subr.mxu0 0.0
        %2190 = vmatpush2.msra.mxu0 0.0
        %2191 = vmatprep.mubr.f32.mxu0 0.0
        %v2192 = vand.u32 %v850, 4294901760
        %2193 = vmatmul.mubr.f32.gmra.mxu0 %v2192
        %v2194 = vpop.f32.mrf.mxu0
        %v2195 = vadd.f32 %v2112, %v2194
        %v2196 = vpop.f32.mrf.mxu0
        %2197 = vdwg.mxu0
        %2198 = vmatprep.subr.mxu0 0.0
        %2199 = vmatpush1.msra.mxu0 0.0
        %2200 = vmatprep.subr.mxu0 0.0
        %2201 = vmatpush1.msra.mxu0 0.0
        %2202 = vmatprep.subr.mxu0 0.0
        %2203 = vmatpush1.msra.mxu0 0.0
        %2204 = vmatprep.subr.mxu0 0.0
        %2205 = vmatpush1.msra.mxu0 0.0
        %2206 = vmatprep.subr.mxu0 0.0
        %2207 = vmatpush1.msra.mxu0 0.0
        %2208 = vmatprep.subr.mxu0 0.0
        %2209 = vmatpush1.msra.mxu0 0.0
        %2210 = vmatprep.subr.mxu0 0.0
        %2211 = vmatpush1.msra.mxu0 0.0
        %2212 = vmatprep.subr.mxu0 0.0
        %2213 = vmatpush1.msra.mxu0 0.0
        %2214 = vmatprep.subr.mxu0 0.0
        %2215 = vmatpush1.msra.mxu0 0.0
        %2216 = vmatprep.subr.mxu0 0.0
        %2217 = vmatpush1.msra.mxu0 0.0
        %2218 = vmatprep.subr.mxu0 0.0
        %2219 = vmatpush1.msra.mxu0 0.0
        %2220 = vmatprep.subr.mxu0 0.0
        %2221 = vmatpush1.msra.mxu0 0.0
        %2222 = vmatprep.subr.mxu0 0.0
        %v2223 = vand.u32 %v844, 4294901760
        %2224 = vmatpush1.msra.mxu0 %v2223
        %2225 = vmatprep.subr.mxu0 0.0
        %v2226 = vand.u32 %v843, 4294901760
        %2227 = vmatpush1.msra.mxu0 %v2226
        %2228 = vmatprep.subr.mxu0 0.0
        %v2229 = vand.u32 %v842, 4294901760
        %2230 = vmatpush1.msra.mxu0 %v2229
        %2231 = vmatprep.subr.mxu0 0.0
        %v2232 = vand.u32 %v841, 4294901760
        %2233 = vmatpush1.msra.mxu0 %v2232
        %2234 = vmatprep.subr.mxu0 0.0
        %2235 = vmatpush2.msra.mxu0 0.0
        %2236 = vmatprep.subr.mxu0 0.0
        %2237 = vmatpush2.msra.mxu0 0.0
        %2238 = vmatprep.subr.mxu0 0.0
        %2239 = vmatpush2.msra.mxu0 0.0
        %2240 = vmatprep.subr.mxu0 0.0
        %2241 = vmatpush2.msra.mxu0 0.0
        %2242 = vmatprep.subr.mxu0 0.0
        %2243 = vmatpush2.msra.mxu0 0.0
        %2244 = vmatprep.subr.mxu0 0.0
        %2245 = vmatpush2.msra.mxu0 0.0
        %2246 = vmatprep.subr.mxu0 0.0
        %2247 = vmatpush2.msra.mxu0 0.0
        %2248 = vmatprep.subr.mxu0 0.0
        %2249 = vmatpush2.msra.mxu0 0.0
        %2250 = vmatprep.subr.mxu0 0.0
        %2251 = vmatpush2.msra.mxu0 0.0
        %2252 = vmatprep.subr.mxu0 0.0
        %2253 = vmatpush2.msra.mxu0 0.0
        %2254 = vmatprep.subr.mxu0 0.0
        %2255 = vmatpush2.msra.mxu0 0.0
        %2256 = vmatprep.subr.mxu0 0.0
        %2257 = vmatpush2.msra.mxu0 0.0
        %2258 = vmatprep.subr.mxu0 0.0
        %2259 = vmatpush2.msra.mxu0 0.0
        %2260 = vmatprep.subr.mxu0 0.0
        %2261 = vmatpush2.msra.mxu0 0.0
        %2262 = vmatprep.subr.mxu0 0.0
        %2263 = vmatpush2.msra.mxu0 0.0
        %2264 = vmatprep.subr.mxu0 0.0
        %2265 = vmatpush2.msra.mxu0 0.0
        %2266 = vmatprep.mubr.f32.mxu0 0.0
        %v2267 = vand.u32 %v850, 4294901760
        %2268 = vmatmul.mubr.f32.gmra.mxu0 %v2267
        %v2269 = vpop.f32.mrf.mxu0
        %v2270 = vadd.f32 %v2195, %v2269
        %v2271 = vpop.f32.mrf.mxu0
        %2272 = vdwg.mxu0
        %vm2273 = vcmp.gt.f32.partialorder %v2270, 0.0
        %v2274 = vmul.f32 %v2270, 0.2
        %v2275 = vsel %vm2273, %v2270, %v2274
        %v2277 = vsel %vm1338, %v346, 0
        %2279 = vmatprep.subr.mxu0 0.0
        %2280 = vmatpush1.msra.mxu0 0.0
        %2281 = vmatprep.subr.mxu0 0.0
        %2282 = vmatpush1.msra.mxu0 0.0
        %2283 = vmatprep.subr.mxu0 0.0
        %2284 = vmatpush1.msra.mxu0 0.0
        %2285 = vmatprep.subr.mxu0 0.0
        %2286 = vmatpush1.msra.mxu0 0.0
        %2287 = vmatprep.subr.mxu0 0.0
        %2288 = vmatpush1.msra.mxu0 0.0
        %2289 = vmatprep.subr.mxu0 0.0
        %2290 = vmatpush1.msra.mxu0 0.0
        %2291 = vmatprep.subr.mxu0 0.0
        %2292 = vmatpush1.msra.mxu0 0.0
        %2293 = vmatprep.subr.mxu0 0.0
        %2294 = vmatpush1.msra.mxu0 0.0
        %2295 = vmatprep.subr.mxu0 0.0
        %2296 = vmatpush1.msra.mxu0 0.0
        %2297 = vmatprep.subr.mxu0 0.0
        %2298 = vmatpush1.msra.mxu0 0.0
        %2299 = vmatprep.subr.mxu0 0.0
        %2300 = vmatpush1.msra.mxu0 0.0
        %2301 = vmatprep.subr.mxu0 0.0
        %2302 = vmatpush1.msra.mxu0 0.0
        %2303 = vmatprep.subr.mxu0 0.0
        %2304 = vmatpush1.msra.mxu0 0.0
        %2305 = vmatprep.subr.mxu0 0.0
        %2306 = vmatpush1.msra.mxu0 0.0
        %2307 = vmatprep.subr.mxu0 0.0
        %2308 = vmatpush1.msra.mxu0 0.0
        %2309 = vmatprep.subr.mxu0 0.0
        %v2310 = vand.u32 %v347, 4294901760
        %2311 = vmatpush1.msra.mxu0 %v2310
        %2312 = vmatprep.subr.mxu0 0.0
        %2313 = vmatpush2.msra.mxu0 0.0
        %2314 = vmatprep.subr.mxu0 0.0
        %2315 = vmatpush2.msra.mxu0 0.0
        %2316 = vmatprep.subr.mxu0 0.0
        %2317 = vmatpush2.msra.mxu0 0.0
        %2318 = vmatprep.subr.mxu0 0.0
        %2319 = vmatpush2.msra.mxu0 0.0
        %2320 = vmatprep.subr.mxu0 0.0
        %2321 = vmatpush2.msra.mxu0 0.0
        %2322 = vmatprep.subr.mxu0 0.0
        %2323 = vmatpush2.msra.mxu0 0.0
        %2324 = vmatprep.subr.mxu0 0.0
        %2325 = vmatpush2.msra.mxu0 0.0
        %2326 = vmatprep.subr.mxu0 0.0
        %2327 = vmatpush2.msra.mxu0 0.0
        %2328 = vmatprep.subr.mxu0 0.0
        %2329 = vmatpush2.msra.mxu0 0.0
        %2330 = vmatprep.subr.mxu0 0.0
        %2331 = vmatpush2.msra.mxu0 0.0
        %2332 = vmatprep.subr.mxu0 0.0
        %2333 = vmatpush2.msra.mxu0 0.0
        %2334 = vmatprep.subr.mxu0 0.0
        %2335 = vmatpush2.msra.mxu0 0.0
        %2336 = vmatprep.subr.mxu0 0.0
        %2337 = vmatpush2.msra.mxu0 0.0
        %2338 = vmatprep.subr.mxu0 0.0
        %2339 = vmatpush2.msra.mxu0 0.0
        %2340 = vmatprep.subr.mxu0 0.0
        %2341 = vmatpush2.msra.mxu0 0.0
        %2342 = vmatprep.subr.mxu0 0.0
        %2343 = vmatpush2.msra.mxu0 0.0
        %2344 = vmatprep.mubr.f32.mxu0 0.0
        %v2345 = vand.u32 %v2277, 4294901760
        %v2346 = vsub.f32 %v2277, %v2345
        %v2347 = vand.u32 %v2346, 4294901760
        %v2348 = vsub.f32 %v2346, %v2347
        %v2349 = vand.u32 %v2348, 4294901760
        %2350 = vmatmul.mubr.f32.gmra.mxu0 %v2349
        %v2351 = vpop.f32.mrf.mxu0
        %v2352 = vadd.f32 0.0, %v2351
        %v2353 = vpop.f32.mrf.mxu0
        %2354 = vdwg.mxu0
        %2355 = vmatprep.subr.mxu0 0.0
        %2356 = vmatpush1.msra.mxu0 0.0
        %2357 = vmatprep.subr.mxu0 0.0
        %2358 = vmatpush1.msra.mxu0 0.0
        %2359 = vmatprep.subr.mxu0 0.0
        %2360 = vmatpush1.msra.mxu0 0.0
        %2361 = vmatprep.subr.mxu0 0.0
        %2362 = vmatpush1.msra.mxu0 0.0
        %2363 = vmatprep.subr.mxu0 0.0
        %2364 = vmatpush1.msra.mxu0 0.0
        %2365 = vmatprep.subr.mxu0 0.0
        %2366 = vmatpush1.msra.mxu0 0.0
        %2367 = vmatprep.subr.mxu0 0.0
        %2368 = vmatpush1.msra.mxu0 0.0
        %2369 = vmatprep.subr.mxu0 0.0
        %2370 = vmatpush1.msra.mxu0 0.0
        %2371 = vmatprep.subr.mxu0 0.0
        %2372 = vmatpush1.msra.mxu0 0.0
        %2373 = vmatprep.subr.mxu0 0.0
        %2374 = vmatpush1.msra.mxu0 0.0
        %2375 = vmatprep.subr.mxu0 0.0
        %2376 = vmatpush1.msra.mxu0 0.0
        %2377 = vmatprep.subr.mxu0 0.0
        %2378 = vmatpush1.msra.mxu0 0.0
        %2379 = vmatprep.subr.mxu0 0.0
        %2380 = vmatpush1.msra.mxu0 0.0
        %2381 = vmatprep.subr.mxu0 0.0
        %2382 = vmatpush1.msra.mxu0 0.0
        %2383 = vmatprep.subr.mxu0 0.0
        %2384 = vmatpush1.msra.mxu0 0.0
        %2385 = vmatprep.subr.mxu0 0.0
        %v2386 = vand.u32 %v347, 4294901760
        %v2387 = vsub.f32 %v347, %v2386
        %v2388 = vand.u32 %v2387, 4294901760
        %v2389 = vsub.f32 %v2387, %v2388
        %v2390 = vand.u32 %v2389, 4294901760
        %2391 = vmatpush1.msra.mxu0 %v2390
        %2392 = vmatprep.subr.mxu0 0.0
        %2393 = vmatpush2.msra.mxu0 0.0
        %2394 = vmatprep.subr.mxu0 0.0
        %2395 = vmatpush2.msra.mxu0 0.0
        %2396 = vmatprep.subr.mxu0 0.0
        %2397 = vmatpush2.msra.mxu0 0.0
        %2398 = vmatprep.subr.mxu0 0.0
        %2399 = vmatpush2.msra.mxu0 0.0
        %2400 = vmatprep.subr.mxu0 0.0
        %2401 = vmatpush2.msra.mxu0 0.0
        %2402 = vmatprep.subr.mxu0 0.0
        %2403 = vmatpush2.msra.mxu0 0.0
        %2404 = vmatprep.subr.mxu0 0.0
        %2405 = vmatpush2.msra.mxu0 0.0
        %2406 = vmatprep.subr.mxu0 0.0
        %2407 = vmatpush2.msra.mxu0 0.0
        %2408 = vmatprep.subr.mxu0 0.0
        %2409 = vmatpush2.msra.mxu0 0.0
        %2410 = vmatprep.subr.mxu0 0.0
        %2411 = vmatpush2.msra.mxu0 0.0
        %2412 = vmatprep.subr.mxu0 0.0
        %2413 = vmatpush2.msra.mxu0 0.0
        %2414 = vmatprep.subr.mxu0 0.0
        %2415 = vmatpush2.msra.mxu0 0.0
        %2416 = vmatprep.subr.mxu0 0.0
        %2417 = vmatpush2.msra.mxu0 0.0
        %2418 = vmatprep.subr.mxu0 0.0
        %2419 = vmatpush2.msra.mxu0 0.0
        %2420 = vmatprep.subr.mxu0 0.0
        %2421 = vmatpush2.msra.mxu0 0.0
        %2422 = vmatprep.subr.mxu0 0.0
        %2423 = vmatpush2.msra.mxu0 0.0
        %2424 = vmatprep.mubr.f32.mxu0 0.0
        %v2425 = vand.u32 %v2277, 4294901760
        %2426 = vmatmul.mubr.f32.gmra.mxu0 %v2425
        %v2427 = vpop.f32.mrf.mxu0
        %v2428 = vadd.f32 %v2352, %v2427
        %v2429 = vpop.f32.mrf.mxu0
        %2430 = vdwg.mxu0
        %2431 = vmatprep.subr.mxu0 0.0
        %2432 = vmatpush1.msra.mxu0 0.0
        %2433 = vmatprep.subr.mxu0 0.0
        %2434 = vmatpush1.msra.mxu0 0.0
        %2435 = vmatprep.subr.mxu0 0.0
        %2436 = vmatpush1.msra.mxu0 0.0
        %2437 = vmatprep.subr.mxu0 0.0
        %2438 = vmatpush1.msra.mxu0 0.0
        %2439 = vmatprep.subr.mxu0 0.0
        %2440 = vmatpush1.msra.mxu0 0.0
        %2441 = vmatprep.subr.mxu0 0.0
        %2442 = vmatpush1.msra.mxu0 0.0
        %2443 = vmatprep.subr.mxu0 0.0
        %2444 = vmatpush1.msra.mxu0 0.0
        %2445 = vmatprep.subr.mxu0 0.0
        %2446 = vmatpush1.msra.mxu0 0.0
        %2447 = vmatprep.subr.mxu0 0.0
        %2448 = vmatpush1.msra.mxu0 0.0
        %2449 = vmatprep.subr.mxu0 0.0
        %2450 = vmatpush1.msra.mxu0 0.0
        %2451 = vmatprep.subr.mxu0 0.0
        %2452 = vmatpush1.msra.mxu0 0.0
        %2453 = vmatprep.subr.mxu0 0.0
        %2454 = vmatpush1.msra.mxu0 0.0
        %2455 = vmatprep.subr.mxu0 0.0
        %2456 = vmatpush1.msra.mxu0 0.0
        %2457 = vmatprep.subr.mxu0 0.0
        %2458 = vmatpush1.msra.mxu0 0.0
        %2459 = vmatprep.subr.mxu0 0.0
        %2460 = vmatpush1.msra.mxu0 0.0
        %2461 = vmatprep.subr.mxu0 0.0
        %v2462 = vand.u32 %v347, 4294901760
        %v2463 = vsub.f32 %v347, %v2462
        %2464 = vmatpush1.msra.mxu0 %v2463
        %2465 = vmatprep.subr.mxu0 0.0
        %2466 = vmatpush2.msra.mxu0 0.0
        %2467 = vmatprep.subr.mxu0 0.0
        %2468 = vmatpush2.msra.mxu0 0.0
        %2469 = vmatprep.subr.mxu0 0.0
        %2470 = vmatpush2.msra.mxu0 0.0
        %2471 = vmatprep.subr.mxu0 0.0
        %2472 = vmatpush2.msra.mxu0 0.0
        %2473 = vmatprep.subr.mxu0 0.0
        %2474 = vmatpush2.msra.mxu0 0.0
        %2475 = vmatprep.subr.mxu0 0.0
        %2476 = vmatpush2.msra.mxu0 0.0
        %2477 = vmatprep.subr.mxu0 0.0
        %2478 = vmatpush2.msra.mxu0 0.0
        %2479 = vmatprep.subr.mxu0 0.0
        %2480 = vmatpush2.msra.mxu0 0.0
        %2481 = vmatprep.subr.mxu0 0.0
        %2482 = vmatpush2.msra.mxu0 0.0
        %2483 = vmatprep.subr.mxu0 0.0
        %2484 = vmatpush2.msra.mxu0 0.0
        %2485 = vmatprep.subr.mxu0 0.0
        %2486 = vmatpush2.msra.mxu0 0.0
        %2487 = vmatprep.subr.mxu0 0.0
        %2488 = vmatpush2.msra.mxu0 0.0
        %2489 = vmatprep.subr.mxu0 0.0
        %2490 = vmatpush2.msra.mxu0 0.0
        %2491 = vmatprep.subr.mxu0 0.0
        %2492 = vmatpush2.msra.mxu0 0.0
        %2493 = vmatprep.subr.mxu0 0.0
        %2494 = vmatpush2.msra.mxu0 0.0
        %2495 = vmatprep.subr.mxu0 0.0
        %2496 = vmatpush2.msra.mxu0 0.0
        %2497 = vmatprep.mubr.f32.mxu0 0.0
        %v2498 = vand.u32 %v2277, 4294901760
        %v2499 = vsub.f32 %v2277, %v2498
        %2500 = vmatmul.mubr.f32.gmra.mxu0 %v2499
        %v2501 = vpop.f32.mrf.mxu0
        %v2502 = vadd.f32 %v2428, %v2501
        %v2503 = vpop.f32.mrf.mxu0
        %2504 = vdwg.mxu0
        %2505 = vmatprep.subr.mxu0 0.0
        %2506 = vmatpush1.msra.mxu0 0.0
        %2507 = vmatprep.subr.mxu0 0.0
        %2508 = vmatpush1.msra.mxu0 0.0
        %2509 = vmatprep.subr.mxu0 0.0
        %2510 = vmatpush1.msra.mxu0 0.0
        %2511 = vmatprep.subr.mxu0 0.0
        %2512 = vmatpush1.msra.mxu0 0.0
        %2513 = vmatprep.subr.mxu0 0.0
        %2514 = vmatpush1.msra.mxu0 0.0
        %2515 = vmatprep.subr.mxu0 0.0
        %2516 = vmatpush1.msra.mxu0 0.0
        %2517 = vmatprep.subr.mxu0 0.0
        %2518 = vmatpush1.msra.mxu0 0.0
        %2519 = vmatprep.subr.mxu0 0.0
        %2520 = vmatpush1.msra.mxu0 0.0
        %2521 = vmatprep.subr.mxu0 0.0
        %2522 = vmatpush1.msra.mxu0 0.0
        %2523 = vmatprep.subr.mxu0 0.0
        %2524 = vmatpush1.msra.mxu0 0.0
        %2525 = vmatprep.subr.mxu0 0.0
        %2526 = vmatpush1.msra.mxu0 0.0
        %2527 = vmatprep.subr.mxu0 0.0
        %2528 = vmatpush1.msra.mxu0 0.0
        %2529 = vmatprep.subr.mxu0 0.0
        %2530 = vmatpush1.msra.mxu0 0.0
        %2531 = vmatprep.subr.mxu0 0.0
        %2532 = vmatpush1.msra.mxu0 0.0
        %2533 = vmatprep.subr.mxu0 0.0
        %2534 = vmatpush1.msra.mxu0 0.0
        %2535 = vmatprep.subr.mxu0 0.0
        %v2536 = vand.u32 %v347, 4294901760
        %2537 = vmatpush1.msra.mxu0 %v2536
        %2538 = vmatprep.subr.mxu0 0.0
        %2539 = vmatpush2.msra.mxu0 0.0
        %2540 = vmatprep.subr.mxu0 0.0
        %2541 = vmatpush2.msra.mxu0 0.0
        %2542 = vmatprep.subr.mxu0 0.0
        %2543 = vmatpush2.msra.mxu0 0.0
        %2544 = vmatprep.subr.mxu0 0.0
        %2545 = vmatpush2.msra.mxu0 0.0
        %2546 = vmatprep.subr.mxu0 0.0
        %2547 = vmatpush2.msra.mxu0 0.0
        %2548 = vmatprep.subr.mxu0 0.0
        %2549 = vmatpush2.msra.mxu0 0.0
        %2550 = vmatprep.subr.mxu0 0.0
        %2551 = vmatpush2.msra.mxu0 0.0
        %2552 = vmatprep.subr.mxu0 0.0
        %2553 = vmatpush2.msra.mxu0 0.0
        %2554 = vmatprep.subr.mxu0 0.0
        %2555 = vmatpush2.msra.mxu0 0.0
        %2556 = vmatprep.subr.mxu0 0.0
        %2557 = vmatpush2.msra.mxu0 0.0
        %2558 = vmatprep.subr.mxu0 0.0
        %2559 = vmatpush2.msra.mxu0 0.0
        %2560 = vmatprep.subr.mxu0 0.0
        %2561 = vmatpush2.msra.mxu0 0.0
        %2562 = vmatprep.subr.mxu0 0.0
        %2563 = vmatpush2.msra.mxu0 0.0
        %2564 = vmatprep.subr.mxu0 0.0
        %2565 = vmatpush2.msra.mxu0 0.0
        %2566 = vmatprep.subr.mxu0 0.0
        %2567 = vmatpush2.msra.mxu0 0.0
        %2568 = vmatprep.subr.mxu0 0.0
        %2569 = vmatpush2.msra.mxu0 0.0
        %2570 = vmatprep.mubr.f32.mxu0 0.0
        %v2571 = vand.u32 %v2277, 4294901760
        %v2572 = vsub.f32 %v2277, %v2571
        %v2573 = vand.u32 %v2572, 4294901760
        %2574 = vmatmul.mubr.f32.gmra.mxu0 %v2573
        %v2575 = vpop.f32.mrf.mxu0
        %v2576 = vadd.f32 %v2502, %v2575
        %v2577 = vpop.f32.mrf.mxu0
        %2578 = vdwg.mxu0
        %2579 = vmatprep.subr.mxu0 0.0
        %2580 = vmatpush1.msra.mxu0 0.0
        %2581 = vmatprep.subr.mxu0 0.0
        %2582 = vmatpush1.msra.mxu0 0.0
        %2583 = vmatprep.subr.mxu0 0.0
        %2584 = vmatpush1.msra.mxu0 0.0
        %2585 = vmatprep.subr.mxu0 0.0
        %2586 = vmatpush1.msra.mxu0 0.0
        %2587 = vmatprep.subr.mxu0 0.0
        %2588 = vmatpush1.msra.mxu0 0.0
        %2589 = vmatprep.subr.mxu0 0.0
        %2590 = vmatpush1.msra.mxu0 0.0
        %2591 = vmatprep.subr.mxu0 0.0
        %2592 = vmatpush1.msra.mxu0 0.0
        %2593 = vmatprep.subr.mxu0 0.0
        %2594 = vmatpush1.msra.mxu0 0.0
        %2595 = vmatprep.subr.mxu0 0.0
        %2596 = vmatpush1.msra.mxu0 0.0
        %2597 = vmatprep.subr.mxu0 0.0
        %2598 = vmatpush1.msra.mxu0 0.0
        %2599 = vmatprep.subr.mxu0 0.0
        %2600 = vmatpush1.msra.mxu0 0.0
        %2601 = vmatprep.subr.mxu0 0.0
        %2602 = vmatpush1.msra.mxu0 0.0
        %2603 = vmatprep.subr.mxu0 0.0
        %2604 = vmatpush1.msra.mxu0 0.0
        %2605 = vmatprep.subr.mxu0 0.0
        %2606 = vmatpush1.msra.mxu0 0.0
        %2607 = vmatprep.subr.mxu0 0.0
        %2608 = vmatpush1.msra.mxu0 0.0
        %2609 = vmatprep.subr.mxu0 0.0
        %v2610 = vand.u32 %v347, 4294901760
        %v2611 = vsub.f32 %v347, %v2610
        %v2612 = vand.u32 %v2611, 4294901760
        %2613 = vmatpush1.msra.mxu0 %v2612
        %2614 = vmatprep.subr.mxu0 0.0
        %2615 = vmatpush2.msra.mxu0 0.0
        %2616 = vmatprep.subr.mxu0 0.0
        %2617 = vmatpush2.msra.mxu0 0.0
        %2618 = vmatprep.subr.mxu0 0.0
        %2619 = vmatpush2.msra.mxu0 0.0
        %2620 = vmatprep.subr.mxu0 0.0
        %2621 = vmatpush2.msra.mxu0 0.0
        %2622 = vmatprep.subr.mxu0 0.0
        %2623 = vmatpush2.msra.mxu0 0.0
        %2624 = vmatprep.subr.mxu0 0.0
        %2625 = vmatpush2.msra.mxu0 0.0
        %2626 = vmatprep.subr.mxu0 0.0
        %2627 = vmatpush2.msra.mxu0 0.0
        %2628 = vmatprep.subr.mxu0 0.0
        %2629 = vmatpush2.msra.mxu0 0.0
        %2630 = vmatprep.subr.mxu0 0.0
        %2631 = vmatpush2.msra.mxu0 0.0
        %2632 = vmatprep.subr.mxu0 0.0
        %2633 = vmatpush2.msra.mxu0 0.0
        %2634 = vmatprep.subr.mxu0 0.0
        %2635 = vmatpush2.msra.mxu0 0.0
        %2636 = vmatprep.subr.mxu0 0.0
        %2637 = vmatpush2.msra.mxu0 0.0
        %2638 = vmatprep.subr.mxu0 0.0
        %2639 = vmatpush2.msra.mxu0 0.0
        %2640 = vmatprep.subr.mxu0 0.0
        %2641 = vmatpush2.msra.mxu0 0.0
        %2642 = vmatprep.subr.mxu0 0.0
        %2643 = vmatpush2.msra.mxu0 0.0
        %2644 = vmatprep.subr.mxu0 0.0
        %2645 = vmatpush2.msra.mxu0 0.0
        %2646 = vmatprep.mubr.f32.mxu0 0.0
        %v2647 = vand.u32 %v2277, 4294901760
        %2648 = vmatmul.mubr.f32.gmra.mxu0 %v2647
        %v2649 = vpop.f32.mrf.mxu0
        %v2650 = vadd.f32 %v2576, %v2649
        %v2651 = vpop.f32.mrf.mxu0
        %2652 = vdwg.mxu0
        %2653 = vmatprep.subr.mxu0 0.0
        %2654 = vmatpush1.msra.mxu0 0.0
        %2655 = vmatprep.subr.mxu0 0.0
        %2656 = vmatpush1.msra.mxu0 0.0
        %2657 = vmatprep.subr.mxu0 0.0
        %2658 = vmatpush1.msra.mxu0 0.0
        %2659 = vmatprep.subr.mxu0 0.0
        %2660 = vmatpush1.msra.mxu0 0.0
        %2661 = vmatprep.subr.mxu0 0.0
        %2662 = vmatpush1.msra.mxu0 0.0
        %2663 = vmatprep.subr.mxu0 0.0
        %2664 = vmatpush1.msra.mxu0 0.0
        %2665 = vmatprep.subr.mxu0 0.0
        %2666 = vmatpush1.msra.mxu0 0.0
        %2667 = vmatprep.subr.mxu0 0.0
        %2668 = vmatpush1.msra.mxu0 0.0
        %2669 = vmatprep.subr.mxu0 0.0
        %2670 = vmatpush1.msra.mxu0 0.0
        %2671 = vmatprep.subr.mxu0 0.0
        %2672 = vmatpush1.msra.mxu0 0.0
        %2673 = vmatprep.subr.mxu0 0.0
        %2674 = vmatpush1.msra.mxu0 0.0
        %2675 = vmatprep.subr.mxu0 0.0
        %2676 = vmatpush1.msra.mxu0 0.0
        %2677 = vmatprep.subr.mxu0 0.0
        %2678 = vmatpush1.msra.mxu0 0.0
        %2679 = vmatprep.subr.mxu0 0.0
        %2680 = vmatpush1.msra.mxu0 0.0
        %2681 = vmatprep.subr.mxu0 0.0
        %2682 = vmatpush1.msra.mxu0 0.0
        %2683 = vmatprep.subr.mxu0 0.0
        %v2684 = vand.u32 %v347, 4294901760
        %2685 = vmatpush1.msra.mxu0 %v2684
        %2686 = vmatprep.subr.mxu0 0.0
        %2687 = vmatpush2.msra.mxu0 0.0
        %2688 = vmatprep.subr.mxu0 0.0
        %2689 = vmatpush2.msra.mxu0 0.0
        %2690 = vmatprep.subr.mxu0 0.0
        %2691 = vmatpush2.msra.mxu0 0.0
        %2692 = vmatprep.subr.mxu0 0.0
        %2693 = vmatpush2.msra.mxu0 0.0
        %2694 = vmatprep.subr.mxu0 0.0
        %2695 = vmatpush2.msra.mxu0 0.0
        %2696 = vmatprep.subr.mxu0 0.0
        %2697 = vmatpush2.msra.mxu0 0.0
        %2698 = vmatprep.subr.mxu0 0.0
        %2699 = vmatpush2.msra.mxu0 0.0
        %2700 = vmatprep.subr.mxu0 0.0
        %2701 = vmatpush2.msra.mxu0 0.0
        %2702 = vmatprep.subr.mxu0 0.0
        %2703 = vmatpush2.msra.mxu0 0.0
        %2704 = vmatprep.subr.mxu0 0.0
        %2705 = vmatpush2.msra.mxu0 0.0
        %2706 = vmatprep.subr.mxu0 0.0
        %2707 = vmatpush2.msra.mxu0 0.0
        %2708 = vmatprep.subr.mxu0 0.0
        %2709 = vmatpush2.msra.mxu0 0.0
        %2710 = vmatprep.subr.mxu0 0.0
        %2711 = vmatpush2.msra.mxu0 0.0
        %2712 = vmatprep.subr.mxu0 0.0
        %2713 = vmatpush2.msra.mxu0 0.0
        %2714 = vmatprep.subr.mxu0 0.0
        %2715 = vmatpush2.msra.mxu0 0.0
        %2716 = vmatprep.subr.mxu0 0.0
        %2717 = vmatpush2.msra.mxu0 0.0
        %2718 = vmatprep.mubr.f32.mxu0 0.0
        %v2719 = vand.u32 %v2277, 4294901760
        %2720 = vmatmul.mubr.f32.gmra.mxu0 %v2719
        %v2721 = vpop.f32.mrf.mxu0
        %v2722 = vadd.f32 %v2650, %v2721
        %v2723 = vpop.f32.mrf.mxu0
        %2724 = vdwg.mxu0
        %vm2725 = vcmp.gt.f32.partialorder %v2722, 0.0
        %v2726 = vsel %vm2725, %v2275, -1e+09
        %v2727 = vsel %vm352, %v2726, -inf
        %2728 = vmax.xlane.f32.xlu0 %v2727
        %v2729 = vpop.xlane.xlu0 %2728
        %v2730 = vsub.f32 %v2726, %v2729
        %v2731 = vmul.f32 %v2730, 1.442695
        %v2732 = vpow.pop %v2731
        %v2733 = vld [vmem:[%s7] sm:$0xff]
        %v2734 = vld [vmem:[%s7 + $0x8] sm:$0xff]
        %v2735 = vld [vmem:[%s7 + $0x10] sm:$0xff]
        %v2736 = vld [vmem:[%s7 + $0x18] sm:$0xff]
        %v2738 = vsel %vm352, %v2732, 0
        %2740 = vmatprep.subr.mxu0 0.0
        %2741 = vmatpush1.msra.mxu0 0.0
        %2742 = vmatprep.subr.mxu0 0.0
        %2743 = vmatpush1.msra.mxu0 0.0
        %2744 = vmatprep.subr.mxu0 0.0
        %2745 = vmatpush1.msra.mxu0 0.0
        %2746 = vmatprep.subr.mxu0 0.0
        %2747 = vmatpush1.msra.mxu0 0.0
        %2748 = vmatprep.subr.mxu0 0.0
        %2749 = vmatpush1.msra.mxu0 0.0
        %2750 = vmatprep.subr.mxu0 0.0
        %2751 = vmatpush1.msra.mxu0 0.0
        %2752 = vmatprep.subr.mxu0 0.0
        %2753 = vmatpush1.msra.mxu0 0.0
        %2754 = vmatprep.subr.mxu0 0.0
        %2755 = vmatpush1.msra.mxu0 0.0
        %2756 = vmatprep.subr.mxu0 0.0
        %2757 = vmatpush1.msra.mxu0 0.0
        %2758 = vmatprep.subr.mxu0 0.0
        %2759 = vmatpush1.msra.mxu0 0.0
        %2760 = vmatprep.subr.mxu0 0.0
        %2761 = vmatpush1.msra.mxu0 0.0
        %2762 = vmatprep.subr.mxu0 0.0
        %2763 = vmatpush1.msra.mxu0 0.0
        %2764 = vmatprep.subr.mxu0 0.0
        %v2765 = vand.u32 %v2736, 4294901760
        %2766 = vmatpush1.msra.mxu0 %v2765
        %2767 = vmatprep.subr.mxu0 0.0
        %v2768 = vand.u32 %v2735, 4294901760
        %2769 = vmatpush1.msra.mxu0 %v2768
        %2770 = vmatprep.subr.mxu0 0.0
        %v2771 = vand.u32 %v2734, 4294901760
        %2772 = vmatpush1.msra.mxu0 %v2771
        %2773 = vmatprep.subr.mxu0 0.0
        %v2774 = vand.u32 %v2733, 4294901760
        %2775 = vmatpush1.msra.mxu0 %v2774
        %2776 = vmatprep.subr.mxu0 0.0
        %2777 = vmatpush2.msra.mxu0 0.0
        %2778 = vmatprep.subr.mxu0 0.0
        %2779 = vmatpush2.msra.mxu0 0.0
        %2780 = vmatprep.subr.mxu0 0.0
        %2781 = vmatpush2.msra.mxu0 0.0
        %2782 = vmatprep.subr.mxu0 0.0
        %2783 = vmatpush2.msra.mxu0 0.0
        %2784 = vmatprep.subr.mxu0 0.0
        %2785 = vmatpush2.msra.mxu0 0.0
        %2786 = vmatprep.subr.mxu0 0.0
        %2787 = vmatpush2.msra.mxu0 0.0
        %2788 = vmatprep.subr.mxu0 0.0
        %2789 = vmatpush2.msra.mxu0 0.0
        %2790 = vmatprep.subr.mxu0 0.0
        %2791 = vmatpush2.msra.mxu0 0.0
        %2792 = vmatprep.subr.mxu0 0.0
        %2793 = vmatpush2.msra.mxu0 0.0
        %2794 = vmatprep.subr.mxu0 0.0
        %2795 = vmatpush2.msra.mxu0 0.0
        %2796 = vmatprep.subr.mxu0 0.0
        %2797 = vmatpush2.msra.mxu0 0.0
        %2798 = vmatprep.subr.mxu0 0.0
        %2799 = vmatpush2.msra.mxu0 0.0
        %2800 = vmatprep.subr.mxu0 0.0
        %2801 = vmatpush2.msra.mxu0 0.0
        %2802 = vmatprep.subr.mxu0 0.0
        %2803 = vmatpush2.msra.mxu0 0.0
        %2804 = vmatprep.subr.mxu0 0.0
        %2805 = vmatpush2.msra.mxu0 0.0
        %2806 = vmatprep.subr.mxu0 0.0
        %2807 = vmatpush2.msra.mxu0 0.0
        %2808 = vmatprep.mubr.f32.mxu0 0.0
        %v2809 = vand.u32 %v2738, 4294901760
        %v2810 = vsub.f32 %v2738, %v2809
        %v2811 = vand.u32 %v2810, 4294901760
        %v2812 = vsub.f32 %v2810, %v2811
        %v2813 = vand.u32 %v2812, 4294901760
        %2814 = vmatmul.mubr.f32.gmra.mxu0 %v2813
        %v2815 = vpop.f32.mrf.mxu0
        %v2816 = vadd.f32 0.0, %v2815
        %v2817 = vpop.f32.mrf.mxu0
        %2818 = vdwg.mxu0
        %2819 = vmatprep.subr.mxu0 0.0
        %2820 = vmatpush1.msra.mxu0 0.0
        %2821 = vmatprep.subr.mxu0 0.0
        %2822 = vmatpush1.msra.mxu0 0.0
        %2823 = vmatprep.subr.mxu0 0.0
        %2824 = vmatpush1.msra.mxu0 0.0
        %2825 = vmatprep.subr.mxu0 0.0
        %2826 = vmatpush1.msra.mxu0 0.0
        %2827 = vmatprep.subr.mxu0 0.0
        %2828 = vmatpush1.msra.mxu0 0.0
        %2829 = vmatprep.subr.mxu0 0.0
        %2830 = vmatpush1.msra.mxu0 0.0
        %2831 = vmatprep.subr.mxu0 0.0
        %2832 = vmatpush1.msra.mxu0 0.0
        %2833 = vmatprep.subr.mxu0 0.0
        %2834 = vmatpush1.msra.mxu0 0.0
        %2835 = vmatprep.subr.mxu0 0.0
        %2836 = vmatpush1.msra.mxu0 0.0
        %2837 = vmatprep.subr.mxu0 0.0
        %2838 = vmatpush1.msra.mxu0 0.0
        %2839 = vmatprep.subr.mxu0 0.0
        %2840 = vmatpush1.msra.mxu0 0.0
        %2841 = vmatprep.subr.mxu0 0.0
        %2842 = vmatpush1.msra.mxu0 0.0
        %2843 = vmatprep.subr.mxu0 0.0
        %v2844 = vand.u32 %v2736, 4294901760
        %v2845 = vsub.f32 %v2736, %v2844
        %v2846 = vand.u32 %v2845, 4294901760
        %v2847 = vsub.f32 %v2845, %v2846
        %v2848 = vand.u32 %v2847, 4294901760
        %2849 = vmatpush1.msra.mxu0 %v2848
        %2850 = vmatprep.subr.mxu0 0.0
        %v2851 = vand.u32 %v2735, 4294901760
        %v2852 = vsub.f32 %v2735, %v2851
        %v2853 = vand.u32 %v2852, 4294901760
        %v2854 = vsub.f32 %v2852, %v2853
        %v2855 = vand.u32 %v2854, 4294901760
        %2856 = vmatpush1.msra.mxu0 %v2855
        %2857 = vmatprep.subr.mxu0 0.0
        %v2858 = vand.u32 %v2734, 4294901760
        %v2859 = vsub.f32 %v2734, %v2858
        %v2860 = vand.u32 %v2859, 4294901760
        %v2861 = vsub.f32 %v2859, %v2860
        %v2862 = vand.u32 %v2861, 4294901760
        %2863 = vmatpush1.msra.mxu0 %v2862
        %2864 = vmatprep.subr.mxu0 0.0
        %v2865 = vand.u32 %v2733, 4294901760
        %v2866 = vsub.f32 %v2733, %v2865
        %v2867 = vand.u32 %v2866, 4294901760
        %v2868 = vsub.f32 %v2866, %v2867
        %v2869 = vand.u32 %v2868, 4294901760
        %2870 = vmatpush1.msra.mxu0 %v2869
        %2871 = vmatprep.subr.mxu0 0.0
        %2872 = vmatpush2.msra.mxu0 0.0
        %2873 = vmatprep.subr.mxu0 0.0
        %2874 = vmatpush2.msra.mxu0 0.0
        %2875 = vmatprep.subr.mxu0 0.0
        %2876 = vmatpush2.msra.mxu0 0.0
        %2877 = vmatprep.subr.mxu0 0.0
        %2878 = vmatpush2.msra.mxu0 0.0
        %2879 = vmatprep.subr.mxu0 0.0
        %2880 = vmatpush2.msra.mxu0 0.0
        %2881 = vmatprep.subr.mxu0 0.0
        %2882 = vmatpush2.msra.mxu0 0.0
        %2883 = vmatprep.subr.mxu0 0.0
        %2884 = vmatpush2.msra.mxu0 0.0
        %2885 = vmatprep.subr.mxu0 0.0
        %2886 = vmatpush2.msra.mxu0 0.0
        %2887 = vmatprep.subr.mxu0 0.0
        %2888 = vmatpush2.msra.mxu0 0.0
        %2889 = vmatprep.subr.mxu0 0.0
        %2890 = vmatpush2.msra.mxu0 0.0
        %2891 = vmatprep.subr.mxu0 0.0
        %2892 = vmatpush2.msra.mxu0 0.0
        %2893 = vmatprep.subr.mxu0 0.0
        %2894 = vmatpush2.msra.mxu0 0.0
        %2895 = vmatprep.subr.mxu0 0.0
        %2896 = vmatpush2.msra.mxu0 0.0
        %2897 = vmatprep.subr.mxu0 0.0
        %2898 = vmatpush2.msra.mxu0 0.0
        %2899 = vmatprep.subr.mxu0 0.0
        %2900 = vmatpush2.msra.mxu0 0.0
        %2901 = vmatprep.subr.mxu0 0.0
        %2902 = vmatpush2.msra.mxu0 0.0
        %2903 = vmatprep.mubr.f32.mxu0 0.0
        %v2904 = vand.u32 %v2738, 4294901760
        %2905 = vmatmul.mubr.f32.gmra.mxu0 %v2904
        %v2906 = vpop.f32.mrf.mxu0
        %v2907 = vadd.f32 %v2816, %v2906
        %v2908 = vpop.f32.mrf.mxu0
        %2909 = vdwg.mxu0
        %2910 = vmatprep.subr.mxu0 0.0
        %2911 = vmatpush1.msra.mxu0 0.0
        %2912 = vmatprep.subr.mxu0 0.0
        %2913 = vmatpush1.msra.mxu0 0.0
        %2914 = vmatprep.subr.mxu0 0.0
        %2915 = vmatpush1.msra.mxu0 0.0
        %2916 = vmatprep.subr.mxu0 0.0
        %2917 = vmatpush1.msra.mxu0 0.0
        %2918 = vmatprep.subr.mxu0 0.0
        %2919 = vmatpush1.msra.mxu0 0.0
        %2920 = vmatprep.subr.mxu0 0.0
        %2921 = vmatpush1.msra.mxu0 0.0
        %2922 = vmatprep.subr.mxu0 0.0
        %2923 = vmatpush1.msra.mxu0 0.0
        %2924 = vmatprep.subr.mxu0 0.0
        %2925 = vmatpush1.msra.mxu0 0.0
        %2926 = vmatprep.subr.mxu0 0.0
        %2927 = vmatpush1.msra.mxu0 0.0
        %2928 = vmatprep.subr.mxu0 0.0
        %2929 = vmatpush1.msra.mxu0 0.0
        %2930 = vmatprep.subr.mxu0 0.0
        %2931 = vmatpush1.msra.mxu0 0.0
        %2932 = vmatprep.subr.mxu0 0.0
        %2933 = vmatpush1.msra.mxu0 0.0
        %2934 = vmatprep.subr.mxu0 0.0
        %v2935 = vand.u32 %v2736, 4294901760
        %v2936 = vsub.f32 %v2736, %v2935
        %2937 = vmatpush1.msra.mxu0 %v2936
        %2938 = vmatprep.subr.mxu0 0.0
        %v2939 = vand.u32 %v2735, 4294901760
        %v2940 = vsub.f32 %v2735, %v2939
        %2941 = vmatpush1.msra.mxu0 %v2940
        %2942 = vmatprep.subr.mxu0 0.0
        %v2943 = vand.u32 %v2734, 4294901760
        %v2944 = vsub.f32 %v2734, %v2943
        %2945 = vmatpush1.msra.mxu0 %v2944
        %2946 = vmatprep.subr.mxu0 0.0
        %v2947 = vand.u32 %v2733, 4294901760
        %v2948 = vsub.f32 %v2733, %v2947
        %2949 = vmatpush1.msra.mxu0 %v2948
        %2950 = vmatprep.subr.mxu0 0.0
        %2951 = vmatpush2.msra.mxu0 0.0
        %2952 = vmatprep.subr.mxu0 0.0
        %2953 = vmatpush2.msra.mxu0 0.0
        %2954 = vmatprep.subr.mxu0 0.0
        %2955 = vmatpush2.msra.mxu0 0.0
        %2956 = vmatprep.subr.mxu0 0.0
        %2957 = vmatpush2.msra.mxu0 0.0
        %2958 = vmatprep.subr.mxu0 0.0
        %2959 = vmatpush2.msra.mxu0 0.0
        %2960 = vmatprep.subr.mxu0 0.0
        %2961 = vmatpush2.msra.mxu0 0.0
        %2962 = vmatprep.subr.mxu0 0.0
        %2963 = vmatpush2.msra.mxu0 0.0
        %2964 = vmatprep.subr.mxu0 0.0
        %2965 = vmatpush2.msra.mxu0 0.0
        %2966 = vmatprep.subr.mxu0 0.0
        %2967 = vmatpush2.msra.mxu0 0.0
        %2968 = vmatprep.subr.mxu0 0.0
        %2969 = vmatpush2.msra.mxu0 0.0
        %2970 = vmatprep.subr.mxu0 0.0
        %2971 = vmatpush2.msra.mxu0 0.0
        %2972 = vmatprep.subr.mxu0 0.0
        %2973 = vmatpush2.msra.mxu0 0.0
        %2974 = vmatprep.subr.mxu0 0.0
        %2975 = vmatpush2.msra.mxu0 0.0
        %2976 = vmatprep.subr.mxu0 0.0
        %2977 = vmatpush2.msra.mxu0 0.0
        %2978 = vmatprep.subr.mxu0 0.0
        %2979 = vmatpush2.msra.mxu0 0.0
        %2980 = vmatprep.subr.mxu0 0.0
        %2981 = vmatpush2.msra.mxu0 0.0
        %2982 = vmatprep.mubr.f32.mxu0 0.0
        %v2983 = vand.u32 %v2738, 4294901760
        %v2984 = vsub.f32 %v2738, %v2983
        %2985 = vmatmul.mubr.f32.gmra.mxu0 %v2984
        %v2986 = vpop.f32.mrf.mxu0
        %v2987 = vadd.f32 %v2907, %v2986
        %v2988 = vpop.f32.mrf.mxu0
        %2989 = vdwg.mxu0
        %2990 = vmatprep.subr.mxu0 0.0
        %2991 = vmatpush1.msra.mxu0 0.0
        %2992 = vmatprep.subr.mxu0 0.0
        %2993 = vmatpush1.msra.mxu0 0.0
        %2994 = vmatprep.subr.mxu0 0.0
        %2995 = vmatpush1.msra.mxu0 0.0
        %2996 = vmatprep.subr.mxu0 0.0
        %2997 = vmatpush1.msra.mxu0 0.0
        %2998 = vmatprep.subr.mxu0 0.0
        %2999 = vmatpush1.msra.mxu0 0.0
        %3000 = vmatprep.subr.mxu0 0.0
        %3001 = vmatpush1.msra.mxu0 0.0
        %3002 = vmatprep.subr.mxu0 0.0
        %3003 = vmatpush1.msra.mxu0 0.0
        %3004 = vmatprep.subr.mxu0 0.0
        %3005 = vmatpush1.msra.mxu0 0.0
        %3006 = vmatprep.subr.mxu0 0.0
        %3007 = vmatpush1.msra.mxu0 0.0
        %3008 = vmatprep.subr.mxu0 0.0
        %3009 = vmatpush1.msra.mxu0 0.0
        %3010 = vmatprep.subr.mxu0 0.0
        %3011 = vmatpush1.msra.mxu0 0.0
        %3012 = vmatprep.subr.mxu0 0.0
        %3013 = vmatpush1.msra.mxu0 0.0
        %3014 = vmatprep.subr.mxu0 0.0
        %v3015 = vand.u32 %v2736, 4294901760
        %3016 = vmatpush1.msra.mxu0 %v3015
        %3017 = vmatprep.subr.mxu0 0.0
        %v3018 = vand.u32 %v2735, 4294901760
        %3019 = vmatpush1.msra.mxu0 %v3018
        %3020 = vmatprep.subr.mxu0 0.0
        %v3021 = vand.u32 %v2734, 4294901760
        %3022 = vmatpush1.msra.mxu0 %v3021
        %3023 = vmatprep.subr.mxu0 0.0
        %v3024 = vand.u32 %v2733, 4294901760
        %3025 = vmatpush1.msra.mxu0 %v3024
        %3026 = vmatprep.subr.mxu0 0.0
        %3027 = vmatpush2.msra.mxu0 0.0
        %3028 = vmatprep.subr.mxu0 0.0
        %3029 = vmatpush2.msra.mxu0 0.0
        %3030 = vmatprep.subr.mxu0 0.0
        %3031 = vmatpush2.msra.mxu0 0.0
        %3032 = vmatprep.subr.mxu0 0.0
        %3033 = vmatpush2.msra.mxu0 0.0
        %3034 = vmatprep.subr.mxu0 0.0
        %3035 = vmatpush2.msra.mxu0 0.0
        %3036 = vmatprep.subr.mxu0 0.0
        %3037 = vmatpush2.msra.mxu0 0.0
        %3038 = vmatprep.subr.mxu0 0.0
        %3039 = vmatpush2.msra.mxu0 0.0
        %3040 = vmatprep.subr.mxu0 0.0
        %3041 = vmatpush2.msra.mxu0 0.0
        %3042 = vmatprep.subr.mxu0 0.0
        %3043 = vmatpush2.msra.mxu0 0.0
        %3044 = vmatprep.subr.mxu0 0.0
        %3045 = vmatpush2.msra.mxu0 0.0
        %3046 = vmatprep.subr.mxu0 0.0
        %3047 = vmatpush2.msra.mxu0 0.0
        %3048 = vmatprep.subr.mxu0 0.0
        %3049 = vmatpush2.msra.mxu0 0.0
        %3050 = vmatprep.subr.mxu0 0.0
        %3051 = vmatpush2.msra.mxu0 0.0
        %3052 = vmatprep.subr.mxu0 0.0
        %3053 = vmatpush2.msra.mxu0 0.0
        %3054 = vmatprep.subr.mxu0 0.0
        %3055 = vmatpush2.msra.mxu0 0.0
        %3056 = vmatprep.subr.mxu0 0.0
        %3057 = vmatpush2.msra.mxu0 0.0
        %3058 = vmatprep.mubr.f32.mxu0 0.0
        %v3059 = vand.u32 %v2738, 4294901760
        %v3060 = vsub.f32 %v2738, %v3059
        %v3061 = vand.u32 %v3060, 4294901760
        %3062 = vmatmul.mubr.f32.gmra.mxu0 %v3061
        %v3063 = vpop.f32.mrf.mxu0
        %v3064 = vadd.f32 %v2987, %v3063
        %v3065 = vpop.f32.mrf.mxu0
        %3066 = vdwg.mxu0
        %3067 = vmatprep.subr.mxu0 0.0
        %3068 = vmatpush1.msra.mxu0 0.0
        %3069 = vmatprep.subr.mxu0 0.0
        %3070 = vmatpush1.msra.mxu0 0.0
        %3071 = vmatprep.subr.mxu0 0.0
        %3072 = vmatpush1.msra.mxu0 0.0
        %3073 = vmatprep.subr.mxu0 0.0
        %3074 = vmatpush1.msra.mxu0 0.0
        %3075 = vmatprep.subr.mxu0 0.0
        %3076 = vmatpush1.msra.mxu0 0.0
        %3077 = vmatprep.subr.mxu0 0.0
        %3078 = vmatpush1.msra.mxu0 0.0
        %3079 = vmatprep.subr.mxu0 0.0
        %3080 = vmatpush1.msra.mxu0 0.0
        %3081 = vmatprep.subr.mxu0 0.0
        %3082 = vmatpush1.msra.mxu0 0.0
        %3083 = vmatprep.subr.mxu0 0.0
        %3084 = vmatpush1.msra.mxu0 0.0
        %3085 = vmatprep.subr.mxu0 0.0
        %3086 = vmatpush1.msra.mxu0 0.0
        %3087 = vmatprep.subr.mxu0 0.0
        %3088 = vmatpush1.msra.mxu0 0.0
        %3089 = vmatprep.subr.mxu0 0.0
        %3090 = vmatpush1.msra.mxu0 0.0
        %3091 = vmatprep.subr.mxu0 0.0
        %v3092 = vand.u32 %v2736, 4294901760
        %v3093 = vsub.f32 %v2736, %v3092
        %v3094 = vand.u32 %v3093, 4294901760
        %3095 = vmatpush1.msra.mxu0 %v3094
        %3096 = vmatprep.subr.mxu0 0.0
        %v3097 = vand.u32 %v2735, 4294901760
        %v3098 = vsub.f32 %v2735, %v3097
        %v3099 = vand.u32 %v3098, 4294901760
        %3100 = vmatpush1.msra.mxu0 %v3099
        %3101 = vmatprep.subr.mxu0 0.0
        %v3102 = vand.u32 %v2734, 4294901760
        %v3103 = vsub.f32 %v2734, %v3102
        %v3104 = vand.u32 %v3103, 4294901760
        %3105 = vmatpush1.msra.mxu0 %v3104
        %3106 = vmatprep.subr.mxu0 0.0
        %v3107 = vand.u32 %v2733, 4294901760
        %v3108 = vsub.f32 %v2733, %v3107
        %v3109 = vand.u32 %v3108, 4294901760
        %3110 = vmatpush1.msra.mxu0 %v3109
        %3111 = vmatprep.subr.mxu0 0.0
        %3112 = vmatpush2.msra.mxu0 0.0
        %3113 = vmatprep.subr.mxu0 0.0
        %3114 = vmatpush2.msra.mxu0 0.0
        %3115 = vmatprep.subr.mxu0 0.0
        %3116 = vmatpush2.msra.mxu0 0.0
        %3117 = vmatprep.subr.mxu0 0.0
        %3118 = vmatpush2.msra.mxu0 0.0
        %3119 = vmatprep.subr.mxu0 0.0
        %3120 = vmatpush2.msra.mxu0 0.0
        %3121 = vmatprep.subr.mxu0 0.0
        %3122 = vmatpush2.msra.mxu0 0.0
        %3123 = vmatprep.subr.mxu0 0.0
        %3124 = vmatpush2.msra.mxu0 0.0
        %3125 = vmatprep.subr.mxu0 0.0
        %3126 = vmatpush2.msra.mxu0 0.0
        %3127 = vmatprep.subr.mxu0 0.0
        %3128 = vmatpush2.msra.mxu0 0.0
        %3129 = vmatprep.subr.mxu0 0.0
        %3130 = vmatpush2.msra.mxu0 0.0
        %3131 = vmatprep.subr.mxu0 0.0
        %3132 = vmatpush2.msra.mxu0 0.0
        %3133 = vmatprep.subr.mxu0 0.0
        %3134 = vmatpush2.msra.mxu0 0.0
        %3135 = vmatprep.subr.mxu0 0.0
        %3136 = vmatpush2.msra.mxu0 0.0
        %3137 = vmatprep.subr.mxu0 0.0
        %3138 = vmatpush2.msra.mxu0 0.0
        %3139 = vmatprep.subr.mxu0 0.0
        %3140 = vmatpush2.msra.mxu0 0.0
        %3141 = vmatprep.subr.mxu0 0.0
        %3142 = vmatpush2.msra.mxu0 0.0
        %3143 = vmatprep.mubr.f32.mxu0 0.0
        %v3144 = vand.u32 %v2738, 4294901760
        %3145 = vmatmul.mubr.f32.gmra.mxu0 %v3144
        %v3146 = vpop.f32.mrf.mxu0
        %v3147 = vadd.f32 %v3064, %v3146
        %v3148 = vpop.f32.mrf.mxu0
        %3149 = vdwg.mxu0
        %3150 = vmatprep.subr.mxu0 0.0
        %3151 = vmatpush1.msra.mxu0 0.0
        %3152 = vmatprep.subr.mxu0 0.0
        %3153 = vmatpush1.msra.mxu0 0.0
        %3154 = vmatprep.subr.mxu0 0.0
        %3155 = vmatpush1.msra.mxu0 0.0
        %3156 = vmatprep.subr.mxu0 0.0
        %3157 = vmatpush1.msra.mxu0 0.0
        %3158 = vmatprep.subr.mxu0 0.0
        %3159 = vmatpush1.msra.mxu0 0.0
        %3160 = vmatprep.subr.mxu0 0.0
        %3161 = vmatpush1.msra.mxu0 0.0
        %3162 = vmatprep.subr.mxu0 0.0
        %3163 = vmatpush1.msra.mxu0 0.0
        %3164 = vmatprep.subr.mxu0 0.0
        %3165 = vmatpush1.msra.mxu0 0.0
        %3166 = vmatprep.subr.mxu0 0.0
        %3167 = vmatpush1.msra.mxu0 0.0
        %3168 = vmatprep.subr.mxu0 0.0
        %3169 = vmatpush1.msra.mxu0 0.0
        %3170 = vmatprep.subr.mxu0 0.0
        %3171 = vmatpush1.msra.mxu0 0.0
        %3172 = vmatprep.subr.mxu0 0.0
        %3173 = vmatpush1.msra.mxu0 0.0
        %3174 = vmatprep.subr.mxu0 0.0
        %v3175 = vand.u32 %v2736, 4294901760
        %3176 = vmatpush1.msra.mxu0 %v3175
        %3177 = vmatprep.subr.mxu0 0.0
        %v3178 = vand.u32 %v2735, 4294901760
        %3179 = vmatpush1.msra.mxu0 %v3178
        %3180 = vmatprep.subr.mxu0 0.0
        %v3181 = vand.u32 %v2734, 4294901760
        %3182 = vmatpush1.msra.mxu0 %v3181
        %3183 = vmatprep.subr.mxu0 0.0
        %v3184 = vand.u32 %v2733, 4294901760
        %3185 = vmatpush1.msra.mxu0 %v3184
        %3186 = vmatprep.subr.mxu0 0.0
        %3187 = vmatpush2.msra.mxu0 0.0
        %3188 = vmatprep.subr.mxu0 0.0
        %3189 = vmatpush2.msra.mxu0 0.0
        %3190 = vmatprep.subr.mxu0 0.0
        %3191 = vmatpush2.msra.mxu0 0.0
        %3192 = vmatprep.subr.mxu0 0.0
        %3193 = vmatpush2.msra.mxu0 0.0
        %3194 = vmatprep.subr.mxu0 0.0
        %3195 = vmatpush2.msra.mxu0 0.0
        %3196 = vmatprep.subr.mxu0 0.0
        %3197 = vmatpush2.msra.mxu0 0.0
        %3198 = vmatprep.subr.mxu0 0.0
        %3199 = vmatpush2.msra.mxu0 0.0
        %3200 = vmatprep.subr.mxu0 0.0
        %3201 = vmatpush2.msra.mxu0 0.0
        %3202 = vmatprep.subr.mxu0 0.0
        %3203 = vmatpush2.msra.mxu0 0.0
        %3204 = vmatprep.subr.mxu0 0.0
        %3205 = vmatpush2.msra.mxu0 0.0
        %3206 = vmatprep.subr.mxu0 0.0
        %3207 = vmatpush2.msra.mxu0 0.0
        %3208 = vmatprep.subr.mxu0 0.0
        %3209 = vmatpush2.msra.mxu0 0.0
        %3210 = vmatprep.subr.mxu0 0.0
        %3211 = vmatpush2.msra.mxu0 0.0
        %3212 = vmatprep.subr.mxu0 0.0
        %3213 = vmatpush2.msra.mxu0 0.0
        %3214 = vmatprep.subr.mxu0 0.0
        %3215 = vmatpush2.msra.mxu0 0.0
        %3216 = vmatprep.subr.mxu0 0.0
        %3217 = vmatpush2.msra.mxu0 0.0
        %3218 = vmatprep.mubr.f32.mxu0 0.0
        %v3219 = vand.u32 %v2738, 4294901760
        %3220 = vmatmul.mubr.f32.gmra.mxu0 %v3219
        %v3221 = vpop.f32.mrf.mxu0
        %v3222 = vadd.f32 %v3147, %v3221
        %v3223 = vpop.f32.mrf.mxu0
        %3224 = vdwg.mxu0
        %v3225 = vrcp.pop %v3222
        %v3226 = vmul.f32 %v2732, %v3225
        %v3227 = vld [vmem:[%s6] sm:$0xff]
        %v3228 = vld [vmem:[%s6 + $0x8] sm:$0xff]
        %v3229 = vld [vmem:[%s6 + $0x10] sm:$0xff]
        %v3230 = vld [vmem:[%s6 + $0x18] sm:$0xff]
        %v3232 = vsel %vm1338, %v3227, 0
        %v3235 = vsel %vm1338, %v3228, 0
        %v3238 = vsel %vm1338, %v3229, 0
        %v3241 = vsel %vm1338, %v3230, 0
        %3243 = vmatprep.subr.mxu0 0.0
        %3244 = vmatpush1.msra.mxu0 0.0
        %3245 = vmatprep.subr.mxu0 0.0
        %3246 = vmatpush1.msra.mxu0 0.0
        %3247 = vmatprep.subr.mxu0 0.0
        %3248 = vmatpush1.msra.mxu0 0.0
        %3249 = vmatprep.subr.mxu0 0.0
        %3250 = vmatpush1.msra.mxu0 0.0
        %3251 = vmatprep.subr.mxu0 0.0
        %3252 = vmatpush1.msra.mxu0 0.0
        %3253 = vmatprep.subr.mxu0 0.0
        %3254 = vmatpush1.msra.mxu0 0.0
        %3255 = vmatprep.subr.mxu0 0.0
        %3256 = vmatpush1.msra.mxu0 0.0
        %3257 = vmatprep.subr.mxu0 0.0
        %3258 = vmatpush1.msra.mxu0 0.0
        %3259 = vmatprep.subr.mxu0 0.0
        %3260 = vmatpush1.msra.mxu0 0.0
        %3261 = vmatprep.subr.mxu0 0.0
        %3262 = vmatpush1.msra.mxu0 0.0
        %3263 = vmatprep.subr.mxu0 0.0
        %3264 = vmatpush1.msra.mxu0 0.0
        %3265 = vmatprep.subr.mxu0 0.0
        %3266 = vmatpush1.msra.mxu0 0.0
        %3267 = vmatprep.subr.mxu0 0.0
        %3268 = vmatpush1.msra.mxu0 0.0
        %3269 = vmatprep.subr.mxu0 0.0
        %3270 = vmatpush1.msra.mxu0 0.0
        %3271 = vmatprep.subr.mxu0 0.0
        %3272 = vmatpush1.msra.mxu0 0.0
        %3273 = vmatprep.subr.mxu0 0.0
        %v3274 = vand.u32 %v838, 4294901760
        %3275 = vmatpush1.msra.mxu0 %v3274
        %3276 = vmatprep.subr.mxu0 0.0
        %3277 = vmatpush2.msra.mxu0 0.0
        %3278 = vmatprep.subr.mxu0 0.0
        %3279 = vmatpush2.msra.mxu0 0.0
        %3280 = vmatprep.subr.mxu0 0.0
        %3281 = vmatpush2.msra.mxu0 0.0
        %3282 = vmatprep.subr.mxu0 0.0
        %3283 = vmatpush2.msra.mxu0 0.0
        %3284 = vmatprep.subr.mxu0 0.0
        %3285 = vmatpush2.msra.mxu0 0.0
        %3286 = vmatprep.subr.mxu0 0.0
        %3287 = vmatpush2.msra.mxu0 0.0
        %3288 = vmatprep.subr.mxu0 0.0
        %3289 = vmatpush2.msra.mxu0 0.0
        %3290 = vmatprep.subr.mxu0 0.0
        %3291 = vmatpush2.msra.mxu0 0.0
        %3292 = vmatprep.subr.mxu0 0.0
        %3293 = vmatpush2.msra.mxu0 0.0
        %3294 = vmatprep.subr.mxu0 0.0
        %3295 = vmatpush2.msra.mxu0 0.0
        %3296 = vmatprep.subr.mxu0 0.0
        %3297 = vmatpush2.msra.mxu0 0.0
        %3298 = vmatprep.subr.mxu0 0.0
        %3299 = vmatpush2.msra.mxu0 0.0
        %3300 = vmatprep.subr.mxu0 0.0
        %3301 = vmatpush2.msra.mxu0 0.0
        %3302 = vmatprep.subr.mxu0 0.0
        %3303 = vmatpush2.msra.mxu0 0.0
        %3304 = vmatprep.subr.mxu0 0.0
        %3305 = vmatpush2.msra.mxu0 0.0
        %3306 = vmatprep.subr.mxu0 0.0
        %3307 = vmatpush2.msra.mxu0 0.0
        %3308 = vmatprep.mubr.f32.mxu0 0.0
        %v3309 = vand.u32 %v3232, 4294901760
        %v3310 = vsub.f32 %v3232, %v3309
        %v3311 = vand.u32 %v3310, 4294901760
        %v3312 = vsub.f32 %v3310, %v3311
        %v3313 = vand.u32 %v3312, 4294901760
        %3314 = vmatmul.mubr.f32.gmra.mxu0 %v3313
        %v3315 = vpop.f32.mrf.mxu0
        %v3316 = vadd.f32 0.0, %v3315
        %v3317 = vpop.f32.mrf.mxu0
        %3318 = vmatprep.mubr.f32.mxu0 0.0
        %v3319 = vand.u32 %v3235, 4294901760
        %v3320 = vsub.f32 %v3235, %v3319
        %v3321 = vand.u32 %v3320, 4294901760
        %v3322 = vsub.f32 %v3320, %v3321
        %v3323 = vand.u32 %v3322, 4294901760
        %3324 = vmatmul.mubr.f32.gmra.mxu0 %v3323
        %v3325 = vpop.f32.mrf.mxu0
        %v3326 = vadd.f32 0.0, %v3325
        %v3327 = vpop.f32.mrf.mxu0
        %3328 = vmatprep.mubr.f32.mxu0 0.0
        %v3329 = vand.u32 %v3238, 4294901760
        %v3330 = vsub.f32 %v3238, %v3329
        %v3331 = vand.u32 %v3330, 4294901760
        %v3332 = vsub.f32 %v3330, %v3331
        %v3333 = vand.u32 %v3332, 4294901760
        %3334 = vmatmul.mubr.f32.gmra.mxu0 %v3333
        %v3335 = vpop.f32.mrf.mxu0
        %v3336 = vadd.f32 0.0, %v3335
        %v3337 = vpop.f32.mrf.mxu0
        %3338 = vmatprep.mubr.f32.mxu0 0.0
        %v3339 = vand.u32 %v3241, 4294901760
        %v3340 = vsub.f32 %v3241, %v3339
        %v3341 = vand.u32 %v3340, 4294901760
        %v3342 = vsub.f32 %v3340, %v3341
        %v3343 = vand.u32 %v3342, 4294901760
        %3344 = vmatmul.mubr.f32.gmra.mxu0 %v3343
        %v3345 = vpop.f32.mrf.mxu0
        %v3346 = vadd.f32 0.0, %v3345
        %v3347 = vpop.f32.mrf.mxu0
        %3348 = vdwg.mxu0
        %3349 = vmatprep.subr.mxu0 0.0
        %3350 = vmatpush1.msra.mxu0 0.0
        %3351 = vmatprep.subr.mxu0 0.0
        %3352 = vmatpush1.msra.mxu0 0.0
        %3353 = vmatprep.subr.mxu0 0.0
        %3354 = vmatpush1.msra.mxu0 0.0
        %3355 = vmatprep.subr.mxu0 0.0
        %3356 = vmatpush1.msra.mxu0 0.0
        %3357 = vmatprep.subr.mxu0 0.0
        %3358 = vmatpush1.msra.mxu0 0.0
        %3359 = vmatprep.subr.mxu0 0.0
        %3360 = vmatpush1.msra.mxu0 0.0
        %3361 = vmatprep.subr.mxu0 0.0
        %3362 = vmatpush1.msra.mxu0 0.0
        %3363 = vmatprep.subr.mxu0 0.0
        %3364 = vmatpush1.msra.mxu0 0.0
        %3365 = vmatprep.subr.mxu0 0.0
        %3366 = vmatpush1.msra.mxu0 0.0
        %3367 = vmatprep.subr.mxu0 0.0
        %3368 = vmatpush1.msra.mxu0 0.0
        %3369 = vmatprep.subr.mxu0 0.0
        %3370 = vmatpush1.msra.mxu0 0.0
        %3371 = vmatprep.subr.mxu0 0.0
        %3372 = vmatpush1.msra.mxu0 0.0
        %3373 = vmatprep.subr.mxu0 0.0
        %3374 = vmatpush1.msra.mxu0 0.0
        %3375 = vmatprep.subr.mxu0 0.0
        %3376 = vmatpush1.msra.mxu0 0.0
        %3377 = vmatprep.subr.mxu0 0.0
        %3378 = vmatpush1.msra.mxu0 0.0
        %3379 = vmatprep.subr.mxu0 0.0
        %v3380 = vand.u32 %v838, 4294901760
        %v3381 = vsub.f32 %v838, %v3380
        %v3382 = vand.u32 %v3381, 4294901760
        %v3383 = vsub.f32 %v3381, %v3382
        %v3384 = vand.u32 %v3383, 4294901760
        %3385 = vmatpush1.msra.mxu0 %v3384
        %3386 = vmatprep.subr.mxu0 0.0
        %3387 = vmatpush2.msra.mxu0 0.0
        %3388 = vmatprep.subr.mxu0 0.0
        %3389 = vmatpush2.msra.mxu0 0.0
        %3390 = vmatprep.subr.mxu0 0.0
        %3391 = vmatpush2.msra.mxu0 0.0
        %3392 = vmatprep.subr.mxu0 0.0
        %3393 = vmatpush2.msra.mxu0 0.0
        %3394 = vmatprep.subr.mxu0 0.0
        %3395 = vmatpush2.msra.mxu0 0.0
        %3396 = vmatprep.subr.mxu0 0.0
        %3397 = vmatpush2.msra.mxu0 0.0
        %3398 = vmatprep.subr.mxu0 0.0
        %3399 = vmatpush2.msra.mxu0 0.0
        %3400 = vmatprep.subr.mxu0 0.0
        %3401 = vmatpush2.msra.mxu0 0.0
        %3402 = vmatprep.subr.mxu0 0.0
        %3403 = vmatpush2.msra.mxu0 0.0
        %3404 = vmatprep.subr.mxu0 0.0
        %3405 = vmatpush2.msra.mxu0 0.0
        %3406 = vmatprep.subr.mxu0 0.0
        %3407 = vmatpush2.msra.mxu0 0.0
        %3408 = vmatprep.subr.mxu0 0.0
        %3409 = vmatpush2.msra.mxu0 0.0
        %3410 = vmatprep.subr.mxu0 0.0
        %3411 = vmatpush2.msra.mxu0 0.0
        %3412 = vmatprep.subr.mxu0 0.0
        %3413 = vmatpush2.msra.mxu0 0.0
        %3414 = vmatprep.subr.mxu0 0.0
        %3415 = vmatpush2.msra.mxu0 0.0
        %3416 = vmatprep.subr.mxu0 0.0
        %3417 = vmatpush2.msra.mxu0 0.0
        %3418 = vmatprep.mubr.f32.mxu0 0.0
        %v3419 = vand.u32 %v3232, 4294901760
        %3420 = vmatmul.mubr.f32.gmra.mxu0 %v3419
        %v3421 = vpop.f32.mrf.mxu0
        %v3422 = vadd.f32 %v3316, %v3421
        %v3423 = vpop.f32.mrf.mxu0
        %3424 = vmatprep.mubr.f32.mxu0 0.0
        %v3425 = vand.u32 %v3235, 4294901760
        %3426 = vmatmul.mubr.f32.gmra.mxu0 %v3425
        %v3427 = vpop.f32.mrf.mxu0
        %v3428 = vadd.f32 %v3326, %v3427
        %v3429 = vpop.f32.mrf.mxu0
        %3430 = vmatprep.mubr.f32.mxu0 0.0
        %v3431 = vand.u32 %v3238, 4294901760
        %3432 = vmatmul.mubr.f32.gmra.mxu0 %v3431
        %v3433 = vpop.f32.mrf.mxu0
        %v3434 = vadd.f32 %v3336, %v3433
        %v3435 = vpop.f32.mrf.mxu0
        %3436 = vmatprep.mubr.f32.mxu0 0.0
        %v3437 = vand.u32 %v3241, 4294901760
        %3438 = vmatmul.mubr.f32.gmra.mxu0 %v3437
        %v3439 = vpop.f32.mrf.mxu0
        %v3440 = vadd.f32 %v3346, %v3439
        %v3441 = vpop.f32.mrf.mxu0
        %3442 = vdwg.mxu0
        %3443 = vmatprep.subr.mxu0 0.0
        %3444 = vmatpush1.msra.mxu0 0.0
        %3445 = vmatprep.subr.mxu0 0.0
        %3446 = vmatpush1.msra.mxu0 0.0
        %3447 = vmatprep.subr.mxu0 0.0
        %3448 = vmatpush1.msra.mxu0 0.0
        %3449 = vmatprep.subr.mxu0 0.0
        %3450 = vmatpush1.msra.mxu0 0.0
        %3451 = vmatprep.subr.mxu0 0.0
        %3452 = vmatpush1.msra.mxu0 0.0
        %3453 = vmatprep.subr.mxu0 0.0
        %3454 = vmatpush1.msra.mxu0 0.0
        %3455 = vmatprep.subr.mxu0 0.0
        %3456 = vmatpush1.msra.mxu0 0.0
        %3457 = vmatprep.subr.mxu0 0.0
        %3458 = vmatpush1.msra.mxu0 0.0
        %3459 = vmatprep.subr.mxu0 0.0
        %3460 = vmatpush1.msra.mxu0 0.0
        %3461 = vmatprep.subr.mxu0 0.0
        %3462 = vmatpush1.msra.mxu0 0.0
        %3463 = vmatprep.subr.mxu0 0.0
        %3464 = vmatpush1.msra.mxu0 0.0
        %3465 = vmatprep.subr.mxu0 0.0
        %3466 = vmatpush1.msra.mxu0 0.0
        %3467 = vmatprep.subr.mxu0 0.0
        %3468 = vmatpush1.msra.mxu0 0.0
        %3469 = vmatprep.subr.mxu0 0.0
        %3470 = vmatpush1.msra.mxu0 0.0
        %3471 = vmatprep.subr.mxu0 0.0
        %3472 = vmatpush1.msra.mxu0 0.0
        %3473 = vmatprep.subr.mxu0 0.0
        %v3474 = vand.u32 %v838, 4294901760
        %v3475 = vsub.f32 %v838, %v3474
        %3476 = vmatpush1.msra.mxu0 %v3475
        %3477 = vmatprep.subr.mxu0 0.0
        %3478 = vmatpush2.msra.mxu0 0.0
        %3479 = vmatprep.subr.mxu0 0.0
        %3480 = vmatpush2.msra.mxu0 0.0
        %3481 = vmatprep.subr.mxu0 0.0
        %3482 = vmatpush2.msra.mxu0 0.0
        %3483 = vmatprep.subr.mxu0 0.0
        %3484 = vmatpush2.msra.mxu0 0.0
        %3485 = vmatprep.subr.mxu0 0.0
        %3486 = vmatpush2.msra.mxu0 0.0
        %3487 = vmatprep.subr.mxu0 0.0
        %3488 = vmatpush2.msra.mxu0 0.0
        %3489 = vmatprep.subr.mxu0 0.0
        %3490 = vmatpush2.msra.mxu0 0.0
        %3491 = vmatprep.subr.mxu0 0.0
        %3492 = vmatpush2.msra.mxu0 0.0
        %3493 = vmatprep.subr.mxu0 0.0
        %3494 = vmatpush2.msra.mxu0 0.0
        %3495 = vmatprep.subr.mxu0 0.0
        %3496 = vmatpush2.msra.mxu0 0.0
        %3497 = vmatprep.subr.mxu0 0.0
        %3498 = vmatpush2.msra.mxu0 0.0
        %3499 = vmatprep.subr.mxu0 0.0
        %3500 = vmatpush2.msra.mxu0 0.0
        %3501 = vmatprep.subr.mxu0 0.0
        %3502 = vmatpush2.msra.mxu0 0.0
        %3503 = vmatprep.subr.mxu0 0.0
        %3504 = vmatpush2.msra.mxu0 0.0
        %3505 = vmatprep.subr.mxu0 0.0
        %3506 = vmatpush2.msra.mxu0 0.0
        %3507 = vmatprep.subr.mxu0 0.0
        %3508 = vmatpush2.msra.mxu0 0.0
        %3509 = vmatprep.mubr.f32.mxu0 0.0
        %v3510 = vand.u32 %v3232, 4294901760
        %v3511 = vsub.f32 %v3232, %v3510
        %3512 = vmatmul.mubr.f32.gmra.mxu0 %v3511
        %v3513 = vpop.f32.mrf.mxu0
        %v3514 = vadd.f32 %v3422, %v3513
        %v3515 = vpop.f32.mrf.mxu0
        %3516 = vmatprep.mubr.f32.mxu0 0.0
        %v3517 = vand.u32 %v3235, 4294901760
        %v3518 = vsub.f32 %v3235, %v3517
        %3519 = vmatmul.mubr.f32.gmra.mxu0 %v3518
        %v3520 = vpop.f32.mrf.mxu0
        %v3521 = vadd.f32 %v3428, %v3520
        %v3522 = vpop.f32.mrf.mxu0
        %3523 = vmatprep.mubr.f32.mxu0 0.0
        %v3524 = vand.u32 %v3238, 4294901760
        %v3525 = vsub.f32 %v3238, %v3524
        %3526 = vmatmul.mubr.f32.gmra.mxu0 %v3525
        %v3527 = vpop.f32.mrf.mxu0
        %v3528 = vadd.f32 %v3434, %v3527
        %v3529 = vpop.f32.mrf.mxu0
        %3530 = vmatprep.mubr.f32.mxu0 0.0
        %v3531 = vand.u32 %v3241, 4294901760
        %v3532 = vsub.f32 %v3241, %v3531
        %3533 = vmatmul.mubr.f32.gmra.mxu0 %v3532
        %v3534 = vpop.f32.mrf.mxu0
        %v3535 = vadd.f32 %v3440, %v3534
        %v3536 = vpop.f32.mrf.mxu0
        %3537 = vdwg.mxu0
        %3538 = vmatprep.subr.mxu0 0.0
        %3539 = vmatpush1.msra.mxu0 0.0
        %3540 = vmatprep.subr.mxu0 0.0
        %3541 = vmatpush1.msra.mxu0 0.0
        %3542 = vmatprep.subr.mxu0 0.0
        %3543 = vmatpush1.msra.mxu0 0.0
        %3544 = vmatprep.subr.mxu0 0.0
        %3545 = vmatpush1.msra.mxu0 0.0
        %3546 = vmatprep.subr.mxu0 0.0
        %3547 = vmatpush1.msra.mxu0 0.0
        %3548 = vmatprep.subr.mxu0 0.0
        %3549 = vmatpush1.msra.mxu0 0.0
        %3550 = vmatprep.subr.mxu0 0.0
        %3551 = vmatpush1.msra.mxu0 0.0
        %3552 = vmatprep.subr.mxu0 0.0
        %3553 = vmatpush1.msra.mxu0 0.0
        %3554 = vmatprep.subr.mxu0 0.0
        %3555 = vmatpush1.msra.mxu0 0.0
        %3556 = vmatprep.subr.mxu0 0.0
        %3557 = vmatpush1.msra.mxu0 0.0
        %3558 = vmatprep.subr.mxu0 0.0
        %3559 = vmatpush1.msra.mxu0 0.0
        %3560 = vmatprep.subr.mxu0 0.0
        %3561 = vmatpush1.msra.mxu0 0.0
        %3562 = vmatprep.subr.mxu0 0.0
        %3563 = vmatpush1.msra.mxu0 0.0
        %3564 = vmatprep.subr.mxu0 0.0
        %3565 = vmatpush1.msra.mxu0 0.0
        %3566 = vmatprep.subr.mxu0 0.0
        %3567 = vmatpush1.msra.mxu0 0.0
        %3568 = vmatprep.subr.mxu0 0.0
        %v3569 = vand.u32 %v838, 4294901760
        %3570 = vmatpush1.msra.mxu0 %v3569
        %3571 = vmatprep.subr.mxu0 0.0
        %3572 = vmatpush2.msra.mxu0 0.0
        %3573 = vmatprep.subr.mxu0 0.0
        %3574 = vmatpush2.msra.mxu0 0.0
        %3575 = vmatprep.subr.mxu0 0.0
        %3576 = vmatpush2.msra.mxu0 0.0
        %3577 = vmatprep.subr.mxu0 0.0
        %3578 = vmatpush2.msra.mxu0 0.0
        %3579 = vmatprep.subr.mxu0 0.0
        %3580 = vmatpush2.msra.mxu0 0.0
        %3581 = vmatprep.subr.mxu0 0.0
        %3582 = vmatpush2.msra.mxu0 0.0
        %3583 = vmatprep.subr.mxu0 0.0
        %3584 = vmatpush2.msra.mxu0 0.0
        %3585 = vmatprep.subr.mxu0 0.0
        %3586 = vmatpush2.msra.mxu0 0.0
        %3587 = vmatprep.subr.mxu0 0.0
        %3588 = vmatpush2.msra.mxu0 0.0
        %3589 = vmatprep.subr.mxu0 0.0
        %3590 = vmatpush2.msra.mxu0 0.0
        %3591 = vmatprep.subr.mxu0 0.0
        %3592 = vmatpush2.msra.mxu0 0.0
        %3593 = vmatprep.subr.mxu0 0.0
        %3594 = vmatpush2.msra.mxu0 0.0
        %3595 = vmatprep.subr.mxu0 0.0
        %3596 = vmatpush2.msra.mxu0 0.0
        %3597 = vmatprep.subr.mxu0 0.0
        %3598 = vmatpush2.msra.mxu0 0.0
        %3599 = vmatprep.subr.mxu0 0.0
        %3600 = vmatpush2.msra.mxu0 0.0
        %3601 = vmatprep.subr.mxu0 0.0
        %3602 = vmatpush2.msra.mxu0 0.0
        %3603 = vmatprep.mubr.f32.mxu0 0.0
        %v3604 = vand.u32 %v3232, 4294901760
        %v3605 = vsub.f32 %v3232, %v3604
        %v3606 = vand.u32 %v3605, 4294901760
        %3607 = vmatmul.mubr.f32.gmra.mxu0 %v3606
        %v3608 = vpop.f32.mrf.mxu0
        %v3609 = vadd.f32 %v3514, %v3608
        %v3610 = vpop.f32.mrf.mxu0
        %3611 = vmatprep.mubr.f32.mxu0 0.0
        %v3612 = vand.u32 %v3235, 4294901760
        %v3613 = vsub.f32 %v3235, %v3612
        %v3614 = vand.u32 %v3613, 4294901760
        %3615 = vmatmul.mubr.f32.gmra.mxu0 %v3614
        %v3616 = vpop.f32.mrf.mxu0
        %v3617 = vadd.f32 %v3521, %v3616
        %v3618 = vpop.f32.mrf.mxu0
        %3619 = vmatprep.mubr.f32.mxu0 0.0
        %v3620 = vand.u32 %v3238, 4294901760
        %v3621 = vsub.f32 %v3238, %v3620
        %v3622 = vand.u32 %v3621, 4294901760
        %3623 = vmatmul.mubr.f32.gmra.mxu0 %v3622
        %v3624 = vpop.f32.mrf.mxu0
        %v3625 = vadd.f32 %v3528, %v3624
        %v3626 = vpop.f32.mrf.mxu0
        %3627 = vmatprep.mubr.f32.mxu0 0.0
        %v3628 = vand.u32 %v3241, 4294901760
        %v3629 = vsub.f32 %v3241, %v3628
        %v3630 = vand.u32 %v3629, 4294901760
        %3631 = vmatmul.mubr.f32.gmra.mxu0 %v3630
        %v3632 = vpop.f32.mrf.mxu0
        %v3633 = vadd.f32 %v3535, %v3632
        %v3634 = vpop.f32.mrf.mxu0
        %3635 = vdwg.mxu0
        %3636 = vmatprep.subr.mxu0 0.0
        %3637 = vmatpush1.msra.mxu0 0.0
        %3638 = vmatprep.subr.mxu0 0.0
        %3639 = vmatpush1.msra.mxu0 0.0
        %3640 = vmatprep.subr.mxu0 0.0
        %3641 = vmatpush1.msra.mxu0 0.0
        %3642 = vmatprep.subr.mxu0 0.0
        %3643 = vmatpush1.msra.mxu0 0.0
        %3644 = vmatprep.subr.mxu0 0.0
        %3645 = vmatpush1.msra.mxu0 0.0
        %3646 = vmatprep.subr.mxu0 0.0
        %3647 = vmatpush1.msra.mxu0 0.0
        %3648 = vmatprep.subr.mxu0 0.0
        %3649 = vmatpush1.msra.mxu0 0.0
        %3650 = vmatprep.subr.mxu0 0.0
        %3651 = vmatpush1.msra.mxu0 0.0
        %3652 = vmatprep.subr.mxu0 0.0
        %3653 = vmatpush1.msra.mxu0 0.0
        %3654 = vmatprep.subr.mxu0 0.0
        %3655 = vmatpush1.msra.mxu0 0.0
        %3656 = vmatprep.subr.mxu0 0.0
        %3657 = vmatpush1.msra.mxu0 0.0
        %3658 = vmatprep.subr.mxu0 0.0
        %3659 = vmatpush1.msra.mxu0 0.0
        %3660 = vmatprep.subr.mxu0 0.0
        %3661 = vmatpush1.msra.mxu0 0.0
        %3662 = vmatprep.subr.mxu0 0.0
        %3663 = vmatpush1.msra.mxu0 0.0
        %3664 = vmatprep.subr.mxu0 0.0
        %3665 = vmatpush1.msra.mxu0 0.0
        %3666 = vmatprep.subr.mxu0 0.0
        %v3667 = vand.u32 %v838, 4294901760
        %v3668 = vsub.f32 %v838, %v3667
        %v3669 = vand.u32 %v3668, 4294901760
        %3670 = vmatpush1.msra.mxu0 %v3669
        %3671 = vmatprep.subr.mxu0 0.0
        %3672 = vmatpush2.msra.mxu0 0.0
        %3673 = vmatprep.subr.mxu0 0.0
        %3674 = vmatpush2.msra.mxu0 0.0
        %3675 = vmatprep.subr.mxu0 0.0
        %3676 = vmatpush2.msra.mxu0 0.0
        %3677 = vmatprep.subr.mxu0 0.0
        %3678 = vmatpush2.msra.mxu0 0.0
        %3679 = vmatprep.subr.mxu0 0.0
        %3680 = vmatpush2.msra.mxu0 0.0
        %3681 = vmatprep.subr.mxu0 0.0
        %3682 = vmatpush2.msra.mxu0 0.0
        %3683 = vmatprep.subr.mxu0 0.0
        %3684 = vmatpush2.msra.mxu0 0.0
        %3685 = vmatprep.subr.mxu0 0.0
        %3686 = vmatpush2.msra.mxu0 0.0
        %3687 = vmatprep.subr.mxu0 0.0
        %3688 = vmatpush2.msra.mxu0 0.0
        %3689 = vmatprep.subr.mxu0 0.0
        %3690 = vmatpush2.msra.mxu0 0.0
        %3691 = vmatprep.subr.mxu0 0.0
        %3692 = vmatpush2.msra.mxu0 0.0
        %3693 = vmatprep.subr.mxu0 0.0
        %3694 = vmatpush2.msra.mxu0 0.0
        %3695 = vmatprep.subr.mxu0 0.0
        %3696 = vmatpush2.msra.mxu0 0.0
        %3697 = vmatprep.subr.mxu0 0.0
        %3698 = vmatpush2.msra.mxu0 0.0
        %3699 = vmatprep.subr.mxu0 0.0
        %3700 = vmatpush2.msra.mxu0 0.0
        %3701 = vmatprep.subr.mxu0 0.0
        %3702 = vmatpush2.msra.mxu0 0.0
        %3703 = vmatprep.mubr.f32.mxu0 0.0
        %v3704 = vand.u32 %v3232, 4294901760
        %3705 = vmatmul.mubr.f32.gmra.mxu0 %v3704
        %v3706 = vpop.f32.mrf.mxu0
        %v3707 = vadd.f32 %v3609, %v3706
        %v3708 = vpop.f32.mrf.mxu0
        %3709 = vmatprep.mubr.f32.mxu0 0.0
        %v3710 = vand.u32 %v3235, 4294901760
        %3711 = vmatmul.mubr.f32.gmra.mxu0 %v3710
        %v3712 = vpop.f32.mrf.mxu0
        %v3713 = vadd.f32 %v3617, %v3712
        %v3714 = vpop.f32.mrf.mxu0
        %3715 = vmatprep.mubr.f32.mxu0 0.0
        %v3716 = vand.u32 %v3238, 4294901760
        %3717 = vmatmul.mubr.f32.gmra.mxu0 %v3716
        %v3718 = vpop.f32.mrf.mxu0
        %v3719 = vadd.f32 %v3625, %v3718
        %v3720 = vpop.f32.mrf.mxu0
        %3721 = vmatprep.mubr.f32.mxu0 0.0
        %v3722 = vand.u32 %v3241, 4294901760
        %3723 = vmatmul.mubr.f32.gmra.mxu0 %v3722
        %v3724 = vpop.f32.mrf.mxu0
        %v3725 = vadd.f32 %v3633, %v3724
        %v3726 = vpop.f32.mrf.mxu0
        %3727 = vdwg.mxu0
        %3728 = vmatprep.subr.mxu0 0.0
        %3729 = vmatpush1.msra.mxu0 0.0
        %3730 = vmatprep.subr.mxu0 0.0
        %3731 = vmatpush1.msra.mxu0 0.0
        %3732 = vmatprep.subr.mxu0 0.0
        %3733 = vmatpush1.msra.mxu0 0.0
        %3734 = vmatprep.subr.mxu0 0.0
        %3735 = vmatpush1.msra.mxu0 0.0
        %3736 = vmatprep.subr.mxu0 0.0
        %3737 = vmatpush1.msra.mxu0 0.0
        %3738 = vmatprep.subr.mxu0 0.0
        %3739 = vmatpush1.msra.mxu0 0.0
        %3740 = vmatprep.subr.mxu0 0.0
        %3741 = vmatpush1.msra.mxu0 0.0
        %3742 = vmatprep.subr.mxu0 0.0
        %3743 = vmatpush1.msra.mxu0 0.0
        %3744 = vmatprep.subr.mxu0 0.0
        %3745 = vmatpush1.msra.mxu0 0.0
        %3746 = vmatprep.subr.mxu0 0.0
        %3747 = vmatpush1.msra.mxu0 0.0
        %3748 = vmatprep.subr.mxu0 0.0
        %3749 = vmatpush1.msra.mxu0 0.0
        %3750 = vmatprep.subr.mxu0 0.0
        %3751 = vmatpush1.msra.mxu0 0.0
        %3752 = vmatprep.subr.mxu0 0.0
        %3753 = vmatpush1.msra.mxu0 0.0
        %3754 = vmatprep.subr.mxu0 0.0
        %3755 = vmatpush1.msra.mxu0 0.0
        %3756 = vmatprep.subr.mxu0 0.0
        %3757 = vmatpush1.msra.mxu0 0.0
        %3758 = vmatprep.subr.mxu0 0.0
        %v3759 = vand.u32 %v838, 4294901760
        %3760 = vmatpush1.msra.mxu0 %v3759
        %3761 = vmatprep.subr.mxu0 0.0
        %3762 = vmatpush2.msra.mxu0 0.0
        %3763 = vmatprep.subr.mxu0 0.0
        %3764 = vmatpush2.msra.mxu0 0.0
        %3765 = vmatprep.subr.mxu0 0.0
        %3766 = vmatpush2.msra.mxu0 0.0
        %3767 = vmatprep.subr.mxu0 0.0
        %3768 = vmatpush2.msra.mxu0 0.0
        %3769 = vmatprep.subr.mxu0 0.0
        %3770 = vmatpush2.msra.mxu0 0.0
        %3771 = vmatprep.subr.mxu0 0.0
        %3772 = vmatpush2.msra.mxu0 0.0
        %3773 = vmatprep.subr.mxu0 0.0
        %3774 = vmatpush2.msra.mxu0 0.0
        %3775 = vmatprep.subr.mxu0 0.0
        %3776 = vmatpush2.msra.mxu0 0.0
        %3777 = vmatprep.subr.mxu0 0.0
        %3778 = vmatpush2.msra.mxu0 0.0
        %3779 = vmatprep.subr.mxu0 0.0
        %3780 = vmatpush2.msra.mxu0 0.0
        %3781 = vmatprep.subr.mxu0 0.0
        %3782 = vmatpush2.msra.mxu0 0.0
        %3783 = vmatprep.subr.mxu0 0.0
        %3784 = vmatpush2.msra.mxu0 0.0
        %3785 = vmatprep.subr.mxu0 0.0
        %3786 = vmatpush2.msra.mxu0 0.0
        %3787 = vmatprep.subr.mxu0 0.0
        %3788 = vmatpush2.msra.mxu0 0.0
        %3789 = vmatprep.subr.mxu0 0.0
        %3790 = vmatpush2.msra.mxu0 0.0
        %3791 = vmatprep.subr.mxu0 0.0
        %3792 = vmatpush2.msra.mxu0 0.0
        %3793 = vmatprep.mubr.f32.mxu0 0.0
        %v3794 = vand.u32 %v3232, 4294901760
        %3795 = vmatmul.mubr.f32.gmra.mxu0 %v3794
        %v3796 = vpop.f32.mrf.mxu0
        %v3797 = vadd.f32 %v3707, %v3796
        %v3798 = vpop.f32.mrf.mxu0
        %3799 = vmatprep.mubr.f32.mxu0 0.0
        %v3800 = vand.u32 %v3235, 4294901760
        %3801 = vmatmul.mubr.f32.gmra.mxu0 %v3800
        %v3802 = vpop.f32.mrf.mxu0
        %v3803 = vadd.f32 %v3713, %v3802
        %v3804 = vpop.f32.mrf.mxu0
        %3805 = vmatprep.mubr.f32.mxu0 0.0
        %v3806 = vand.u32 %v3238, 4294901760
        %3807 = vmatmul.mubr.f32.gmra.mxu0 %v3806
        %v3808 = vpop.f32.mrf.mxu0
        %v3809 = vadd.f32 %v3719, %v3808
        %v3810 = vpop.f32.mrf.mxu0
        %3811 = vmatprep.mubr.f32.mxu0 0.0
        %v3812 = vand.u32 %v3241, 4294901760
        %3813 = vmatmul.mubr.f32.gmra.mxu0 %v3812
        %v3814 = vpop.f32.mrf.mxu0
        %v3815 = vadd.f32 %v3725, %v3814
        %v3816 = vpop.f32.mrf.mxu0
        %3817 = vdwg.mxu0
        %v3818 = vld [vmem:[%s8] sm:$0xff]
        %v3819 = vld [vmem:[%s8 + $0x8] sm:$0xff]
        %v3820 = vld [vmem:[%s8 + $0x10] sm:$0xff]
        %v3821 = vld [vmem:[%s8 + $0x18] sm:$0xff]
        %v3822 = vmul.f32 %v3797, %v3818
        %v3823 = vmul.f32 %v3803, %v3819
        %v3824 = vmul.f32 %v3809, %v3820
        %v3825 = vmul.f32 %v3815, %v3821
        %v3827 = vsel %vm352, %v3226, 0
        %3829 = vmatprep.subr.mxu0 0.0
        %3830 = vmatpush1.msra.mxu0 0.0
        %3831 = vmatprep.subr.mxu0 0.0
        %3832 = vmatpush1.msra.mxu0 0.0
        %3833 = vmatprep.subr.mxu0 0.0
        %3834 = vmatpush1.msra.mxu0 0.0
        %3835 = vmatprep.subr.mxu0 0.0
        %3836 = vmatpush1.msra.mxu0 0.0
        %3837 = vmatprep.subr.mxu0 0.0
        %3838 = vmatpush1.msra.mxu0 0.0
        %3839 = vmatprep.subr.mxu0 0.0
        %3840 = vmatpush1.msra.mxu0 0.0
        %3841 = vmatprep.subr.mxu0 0.0
        %3842 = vmatpush1.msra.mxu0 0.0
        %3843 = vmatprep.subr.mxu0 0.0
        %3844 = vmatpush1.msra.mxu0 0.0
        %3845 = vmatprep.subr.mxu0 0.0
        %3846 = vmatpush1.msra.mxu0 0.0
        %3847 = vmatprep.subr.mxu0 0.0
        %3848 = vmatpush1.msra.mxu0 0.0
        %3849 = vmatprep.subr.mxu0 0.0
        %3850 = vmatpush1.msra.mxu0 0.0
        %3851 = vmatprep.subr.mxu0 0.0
        %3852 = vmatpush1.msra.mxu0 0.0
        %3853 = vmatprep.subr.mxu0 0.0
        %v3854 = vand.u32 %v3825, 4294901760
        %3855 = vmatpush1.msra.mxu0 %v3854
        %3856 = vmatprep.subr.mxu0 0.0
        %v3857 = vand.u32 %v3824, 4294901760
        %3858 = vmatpush1.msra.mxu0 %v3857
        %3859 = vmatprep.subr.mxu0 0.0
        %v3860 = vand.u32 %v3823, 4294901760
        %3861 = vmatpush1.msra.mxu0 %v3860
        %3862 = vmatprep.subr.mxu0 0.0
        %v3863 = vand.u32 %v3822, 4294901760
        %3864 = vmatpush1.msra.mxu0 %v3863
        %3865 = vmatprep.subr.mxu0 0.0
        %3866 = vmatpush2.msra.mxu0 0.0
        %3867 = vmatprep.subr.mxu0 0.0
        %3868 = vmatpush2.msra.mxu0 0.0
        %3869 = vmatprep.subr.mxu0 0.0
        %3870 = vmatpush2.msra.mxu0 0.0
        %3871 = vmatprep.subr.mxu0 0.0
        %3872 = vmatpush2.msra.mxu0 0.0
        %3873 = vmatprep.subr.mxu0 0.0
        %3874 = vmatpush2.msra.mxu0 0.0
        %3875 = vmatprep.subr.mxu0 0.0
        %3876 = vmatpush2.msra.mxu0 0.0
        %3877 = vmatprep.subr.mxu0 0.0
        %3878 = vmatpush2.msra.mxu0 0.0
        %3879 = vmatprep.subr.mxu0 0.0
        %3880 = vmatpush2.msra.mxu0 0.0
        %3881 = vmatprep.subr.mxu0 0.0
        %3882 = vmatpush2.msra.mxu0 0.0
        %3883 = vmatprep.subr.mxu0 0.0
        %3884 = vmatpush2.msra.mxu0 0.0
        %3885 = vmatprep.subr.mxu0 0.0
        %3886 = vmatpush2.msra.mxu0 0.0
        %3887 = vmatprep.subr.mxu0 0.0
        %3888 = vmatpush2.msra.mxu0 0.0
        %3889 = vmatprep.subr.mxu0 0.0
        %3890 = vmatpush2.msra.mxu0 0.0
        %3891 = vmatprep.subr.mxu0 0.0
        %3892 = vmatpush2.msra.mxu0 0.0
        %3893 = vmatprep.subr.mxu0 0.0
        %3894 = vmatpush2.msra.mxu0 0.0
        %3895 = vmatprep.subr.mxu0 0.0
        %3896 = vmatpush2.msra.mxu0 0.0
        %3897 = vmatprep.mubr.f32.mxu0 0.0
        %v3898 = vand.u32 %v3827, 4294901760
        %v3899 = vsub.f32 %v3827, %v3898
        %v3900 = vand.u32 %v3899, 4294901760
        %v3901 = vsub.f32 %v3899, %v3900
        %v3902 = vand.u32 %v3901, 4294901760
        %3903 = vmatmul.mubr.f32.gmra.mxu0 %v3902
        %v3904 = vpop.f32.mrf.mxu0
        %v3905 = vadd.f32 0.0, %v3904
        %v3906 = vpop.f32.mrf.mxu0
        %3907 = vdwg.mxu0
        %3908 = vmatprep.subr.mxu0 0.0
        %3909 = vmatpush1.msra.mxu0 0.0
        %3910 = vmatprep.subr.mxu0 0.0
        %3911 = vmatpush1.msra.mxu0 0.0
        %3912 = vmatprep.subr.mxu0 0.0
        %3913 = vmatpush1.msra.mxu0 0.0
        %3914 = vmatprep.subr.mxu0 0.0
        %3915 = vmatpush1.msra.mxu0 0.0
        %3916 = vmatprep.subr.mxu0 0.0
        %3917 = vmatpush1.msra.mxu0 0.0
        %3918 = vmatprep.subr.mxu0 0.0
        %3919 = vmatpush1.msra.mxu0 0.0
        %3920 = vmatprep.subr.mxu0 0.0
        %3921 = vmatpush1.msra.mxu0 0.0
        %3922 = vmatprep.subr.mxu0 0.0
        %3923 = vmatpush1.msra.mxu0 0.0
        %3924 = vmatprep.subr.mxu0 0.0
        %3925 = vmatpush1.msra.mxu0 0.0
        %3926 = vmatprep.subr.mxu0 0.0
        %3927 = vmatpush1.msra.mxu0 0.0
        %3928 = vmatprep.subr.mxu0 0.0
        %3929 = vmatpush1.msra.mxu0 0.0
        %3930 = vmatprep.subr.mxu0 0.0
        %3931 = vmatpush1.msra.mxu0 0.0
        %3932 = vmatprep.subr.mxu0 0.0
        %v3933 = vand.u32 %v3825, 4294901760
        %v3934 = vsub.f32 %v3825, %v3933
        %v3935 = vand.u32 %v3934, 4294901760
        %v3936 = vsub.f32 %v3934, %v3935
        %v3937 = vand.u32 %v3936, 4294901760
        %3938 = vmatpush1.msra.mxu0 %v3937
        %3939 = vmatprep.subr.mxu0 0.0
        %v3940 = vand.u32 %v3824, 4294901760
        %v3941 = vsub.f32 %v3824, %v3940
        %v3942 = vand.u32 %v3941, 4294901760
        %v3943 = vsub.f32 %v3941, %v3942
        %v3944 = vand.u32 %v3943, 4294901760
        %3945 = vmatpush1.msra.mxu0 %v3944
        %3946 = vmatprep.subr.mxu0 0.0
        %v3947 = vand.u32 %v3823, 4294901760
        %v3948 = vsub.f32 %v3823, %v3947
        %v3949 = vand.u32 %v3948, 4294901760
        %v3950 = vsub.f32 %v3948, %v3949
        %v3951 = vand.u32 %v3950, 4294901760
        %3952 = vmatpush1.msra.mxu0 %v3951
        %3953 = vmatprep.subr.mxu0 0.0
        %v3954 = vand.u32 %v3822, 4294901760
        %v3955 = vsub.f32 %v3822, %v3954
        %v3956 = vand.u32 %v3955, 4294901760
        %v3957 = vsub.f32 %v3955, %v3956
        %v3958 = vand.u32 %v3957, 4294901760
        %3959 = vmatpush1.msra.mxu0 %v3958
        %3960 = vmatprep.subr.mxu0 0.0
        %3961 = vmatpush2.msra.mxu0 0.0
        %3962 = vmatprep.subr.mxu0 0.0
        %3963 = vmatpush2.msra.mxu0 0.0
        %3964 = vmatprep.subr.mxu0 0.0
        %3965 = vmatpush2.msra.mxu0 0.0
        %3966 = vmatprep.subr.mxu0 0.0
        %3967 = vmatpush2.msra.mxu0 0.0
        %3968 = vmatprep.subr.mxu0 0.0
        %3969 = vmatpush2.msra.mxu0 0.0
        %3970 = vmatprep.subr.mxu0 0.0
        %3971 = vmatpush2.msra.mxu0 0.0
        %3972 = vmatprep.subr.mxu0 0.0
        %3973 = vmatpush2.msra.mxu0 0.0
        %3974 = vmatprep.subr.mxu0 0.0
        %3975 = vmatpush2.msra.mxu0 0.0
        %3976 = vmatprep.subr.mxu0 0.0
        %3977 = vmatpush2.msra.mxu0 0.0
        %3978 = vmatprep.subr.mxu0 0.0
        %3979 = vmatpush2.msra.mxu0 0.0
        %3980 = vmatprep.subr.mxu0 0.0
        %3981 = vmatpush2.msra.mxu0 0.0
        %3982 = vmatprep.subr.mxu0 0.0
        %3983 = vmatpush2.msra.mxu0 0.0
        %3984 = vmatprep.subr.mxu0 0.0
        %3985 = vmatpush2.msra.mxu0 0.0
        %3986 = vmatprep.subr.mxu0 0.0
        %3987 = vmatpush2.msra.mxu0 0.0
        %3988 = vmatprep.subr.mxu0 0.0
        %3989 = vmatpush2.msra.mxu0 0.0
        %3990 = vmatprep.subr.mxu0 0.0
        %3991 = vmatpush2.msra.mxu0 0.0
        %3992 = vmatprep.mubr.f32.mxu0 0.0
        %v3993 = vand.u32 %v3827, 4294901760
        %3994 = vmatmul.mubr.f32.gmra.mxu0 %v3993
        %v3995 = vpop.f32.mrf.mxu0
        %v3996 = vadd.f32 %v3905, %v3995
        %v3997 = vpop.f32.mrf.mxu0
        %3998 = vdwg.mxu0
        %3999 = vmatprep.subr.mxu0 0.0
        %4000 = vmatpush1.msra.mxu0 0.0
        %4001 = vmatprep.subr.mxu0 0.0
        %4002 = vmatpush1.msra.mxu0 0.0
        %4003 = vmatprep.subr.mxu0 0.0
        %4004 = vmatpush1.msra.mxu0 0.0
        %4005 = vmatprep.subr.mxu0 0.0
        %4006 = vmatpush1.msra.mxu0 0.0
        %4007 = vmatprep.subr.mxu0 0.0
        %4008 = vmatpush1.msra.mxu0 0.0
        %4009 = vmatprep.subr.mxu0 0.0
        %4010 = vmatpush1.msra.mxu0 0.0
        %4011 = vmatprep.subr.mxu0 0.0
        %4012 = vmatpush1.msra.mxu0 0.0
        %4013 = vmatprep.subr.mxu0 0.0
        %4014 = vmatpush1.msra.mxu0 0.0
        %4015 = vmatprep.subr.mxu0 0.0
        %4016 = vmatpush1.msra.mxu0 0.0
        %4017 = vmatprep.subr.mxu0 0.0
        %4018 = vmatpush1.msra.mxu0 0.0
        %4019 = vmatprep.subr.mxu0 0.0
        %4020 = vmatpush1.msra.mxu0 0.0
        %4021 = vmatprep.subr.mxu0 0.0
        %4022 = vmatpush1.msra.mxu0 0.0
        %4023 = vmatprep.subr.mxu0 0.0
        %v4024 = vand.u32 %v3825, 4294901760
        %v4025 = vsub.f32 %v3825, %v4024
        %4026 = vmatpush1.msra.mxu0 %v4025
        %4027 = vmatprep.subr.mxu0 0.0
        %v4028 = vand.u32 %v3824, 4294901760
        %v4029 = vsub.f32 %v3824, %v4028
        %4030 = vmatpush1.msra.mxu0 %v4029
        %4031 = vmatprep.subr.mxu0 0.0
        %v4032 = vand.u32 %v3823, 4294901760
        %v4033 = vsub.f32 %v3823, %v4032
        %4034 = vmatpush1.msra.mxu0 %v4033
        %4035 = vmatprep.subr.mxu0 0.0
        %v4036 = vand.u32 %v3822, 4294901760
        %v4037 = vsub.f32 %v3822, %v4036
        %4038 = vmatpush1.msra.mxu0 %v4037
        %4039 = vmatprep.subr.mxu0 0.0
        %4040 = vmatpush2.msra.mxu0 0.0
        %4041 = vmatprep.subr.mxu0 0.0
        %4042 = vmatpush2.msra.mxu0 0.0
        %4043 = vmatprep.subr.mxu0 0.0
        %4044 = vmatpush2.msra.mxu0 0.0
        %4045 = vmatprep.subr.mxu0 0.0
        %4046 = vmatpush2.msra.mxu0 0.0
        %4047 = vmatprep.subr.mxu0 0.0
        %4048 = vmatpush2.msra.mxu0 0.0
        %4049 = vmatprep.subr.mxu0 0.0
        %4050 = vmatpush2.msra.mxu0 0.0
        %4051 = vmatprep.subr.mxu0 0.0
        %4052 = vmatpush2.msra.mxu0 0.0
        %4053 = vmatprep.subr.mxu0 0.0
        %4054 = vmatpush2.msra.mxu0 0.0
        %4055 = vmatprep.subr.mxu0 0.0
        %4056 = vmatpush2.msra.mxu0 0.0
        %4057 = vmatprep.subr.mxu0 0.0
        %4058 = vmatpush2.msra.mxu0 0.0
        %4059 = vmatprep.subr.mxu0 0.0
        %4060 = vmatpush2.msra.mxu0 0.0
        %4061 = vmatprep.subr.mxu0 0.0
        %4062 = vmatpush2.msra.mxu0 0.0
        %4063 = vmatprep.subr.mxu0 0.0
        %4064 = vmatpush2.msra.mxu0 0.0
        %4065 = vmatprep.subr.mxu0 0.0
        %4066 = vmatpush2.msra.mxu0 0.0
        %4067 = vmatprep.subr.mxu0 0.0
        %4068 = vmatpush2.msra.mxu0 0.0
        %4069 = vmatprep.subr.mxu0 0.0
        %4070 = vmatpush2.msra.mxu0 0.0
        %4071 = vmatprep.mubr.f32.mxu0 0.0
        %v4072 = vand.u32 %v3827, 4294901760
        %v4073 = vsub.f32 %v3827, %v4072
        %4074 = vmatmul.mubr.f32.gmra.mxu0 %v4073
        %v4075 = vpop.f32.mrf.mxu0
        %v4076 = vadd.f32 %v3996, %v4075
        %v4077 = vpop.f32.mrf.mxu0
        %4078 = vdwg.mxu0
        %4079 = vmatprep.subr.mxu0 0.0
        %4080 = vmatpush1.msra.mxu0 0.0
        %4081 = vmatprep.subr.mxu0 0.0
        %4082 = vmatpush1.msra.mxu0 0.0
        %4083 = vmatprep.subr.mxu0 0.0
        %4084 = vmatpush1.msra.mxu0 0.0
        %4085 = vmatprep.subr.mxu0 0.0
        %4086 = vmatpush1.msra.mxu0 0.0
        %4087 = vmatprep.subr.mxu0 0.0
        %4088 = vmatpush1.msra.mxu0 0.0
        %4089 = vmatprep.subr.mxu0 0.0
        %4090 = vmatpush1.msra.mxu0 0.0
        %4091 = vmatprep.subr.mxu0 0.0
        %4092 = vmatpush1.msra.mxu0 0.0
        %4093 = vmatprep.subr.mxu0 0.0
        %4094 = vmatpush1.msra.mxu0 0.0
        %4095 = vmatprep.subr.mxu0 0.0
        %4096 = vmatpush1.msra.mxu0 0.0
        %4097 = vmatprep.subr.mxu0 0.0
        %4098 = vmatpush1.msra.mxu0 0.0
        %4099 = vmatprep.subr.mxu0 0.0
        %4100 = vmatpush1.msra.mxu0 0.0
        %4101 = vmatprep.subr.mxu0 0.0
        %4102 = vmatpush1.msra.mxu0 0.0
        %4103 = vmatprep.subr.mxu0 0.0
        %v4104 = vand.u32 %v3825, 4294901760
        %4105 = vmatpush1.msra.mxu0 %v4104
        %4106 = vmatprep.subr.mxu0 0.0
        %v4107 = vand.u32 %v3824, 4294901760
        %4108 = vmatpush1.msra.mxu0 %v4107
        %4109 = vmatprep.subr.mxu0 0.0
        %v4110 = vand.u32 %v3823, 4294901760
        %4111 = vmatpush1.msra.mxu0 %v4110
        %4112 = vmatprep.subr.mxu0 0.0
        %v4113 = vand.u32 %v3822, 4294901760
        %4114 = vmatpush1.msra.mxu0 %v4113
        %4115 = vmatprep.subr.mxu0 0.0
        %4116 = vmatpush2.msra.mxu0 0.0
        %4117 = vmatprep.subr.mxu0 0.0
        %4118 = vmatpush2.msra.mxu0 0.0
        %4119 = vmatprep.subr.mxu0 0.0
        %4120 = vmatpush2.msra.mxu0 0.0
        %4121 = vmatprep.subr.mxu0 0.0
        %4122 = vmatpush2.msra.mxu0 0.0
        %4123 = vmatprep.subr.mxu0 0.0
        %4124 = vmatpush2.msra.mxu0 0.0
        %4125 = vmatprep.subr.mxu0 0.0
        %4126 = vmatpush2.msra.mxu0 0.0
        %4127 = vmatprep.subr.mxu0 0.0
        %4128 = vmatpush2.msra.mxu0 0.0
        %4129 = vmatprep.subr.mxu0 0.0
        %4130 = vmatpush2.msra.mxu0 0.0
        %4131 = vmatprep.subr.mxu0 0.0
        %4132 = vmatpush2.msra.mxu0 0.0
        %4133 = vmatprep.subr.mxu0 0.0
        %4134 = vmatpush2.msra.mxu0 0.0
        %4135 = vmatprep.subr.mxu0 0.0
        %4136 = vmatpush2.msra.mxu0 0.0
        %4137 = vmatprep.subr.mxu0 0.0
        %4138 = vmatpush2.msra.mxu0 0.0
        %4139 = vmatprep.subr.mxu0 0.0
        %4140 = vmatpush2.msra.mxu0 0.0
        %4141 = vmatprep.subr.mxu0 0.0
        %4142 = vmatpush2.msra.mxu0 0.0
        %4143 = vmatprep.subr.mxu0 0.0
        %4144 = vmatpush2.msra.mxu0 0.0
        %4145 = vmatprep.subr.mxu0 0.0
        %4146 = vmatpush2.msra.mxu0 0.0
        %4147 = vmatprep.mubr.f32.mxu0 0.0
        %v4148 = vand.u32 %v3827, 4294901760
        %v4149 = vsub.f32 %v3827, %v4148
        %v4150 = vand.u32 %v4149, 4294901760
        %4151 = vmatmul.mubr.f32.gmra.mxu0 %v4150
        %v4152 = vpop.f32.mrf.mxu0
        %v4153 = vadd.f32 %v4076, %v4152
        %v4154 = vpop.f32.mrf.mxu0
        %4155 = vdwg.mxu0
        %4156 = vmatprep.subr.mxu0 0.0
        %4157 = vmatpush1.msra.mxu0 0.0
        %4158 = vmatprep.subr.mxu0 0.0
        %4159 = vmatpush1.msra.mxu0 0.0
        %4160 = vmatprep.subr.mxu0 0.0
        %4161 = vmatpush1.msra.mxu0 0.0
        %4162 = vmatprep.subr.mxu0 0.0
        %4163 = vmatpush1.msra.mxu0 0.0
        %4164 = vmatprep.subr.mxu0 0.0
        %4165 = vmatpush1.msra.mxu0 0.0
        %4166 = vmatprep.subr.mxu0 0.0
        %4167 = vmatpush1.msra.mxu0 0.0
        %4168 = vmatprep.subr.mxu0 0.0
        %4169 = vmatpush1.msra.mxu0 0.0
        %4170 = vmatprep.subr.mxu0 0.0
        %4171 = vmatpush1.msra.mxu0 0.0
        %4172 = vmatprep.subr.mxu0 0.0
        %4173 = vmatpush1.msra.mxu0 0.0
        %4174 = vmatprep.subr.mxu0 0.0
        %4175 = vmatpush1.msra.mxu0 0.0
        %4176 = vmatprep.subr.mxu0 0.0
        %4177 = vmatpush1.msra.mxu0 0.0
        %4178 = vmatprep.subr.mxu0 0.0
        %4179 = vmatpush1.msra.mxu0 0.0
        %4180 = vmatprep.subr.mxu0 0.0
        %v4181 = vand.u32 %v3825, 4294901760
        %v4182 = vsub.f32 %v3825, %v4181
        %v4183 = vand.u32 %v4182, 4294901760
        %4184 = vmatpush1.msra.mxu0 %v4183
        %4185 = vmatprep.subr.mxu0 0.0
        %v4186 = vand.u32 %v3824, 4294901760
        %v4187 = vsub.f32 %v3824, %v4186
        %v4188 = vand.u32 %v4187, 4294901760
        %4189 = vmatpush1.msra.mxu0 %v4188
        %4190 = vmatprep.subr.mxu0 0.0
        %v4191 = vand.u32 %v3823, 4294901760
        %v4192 = vsub.f32 %v3823, %v4191
        %v4193 = vand.u32 %v4192, 4294901760
        %4194 = vmatpush1.msra.mxu0 %v4193
        %4195 = vmatprep.subr.mxu0 0.0
        %v4196 = vand.u32 %v3822, 4294901760
        %v4197 = vsub.f32 %v3822, %v4196
        %v4198 = vand.u32 %v4197, 4294901760
        %4199 = vmatpush1.msra.mxu0 %v4198
        %4200 = vmatprep.subr.mxu0 0.0
        %4201 = vmatpush2.msra.mxu0 0.0
        %4202 = vmatprep.subr.mxu0 0.0
        %4203 = vmatpush2.msra.mxu0 0.0
        %4204 = vmatprep.subr.mxu0 0.0
        %4205 = vmatpush2.msra.mxu0 0.0
        %4206 = vmatprep.subr.mxu0 0.0
        %4207 = vmatpush2.msra.mxu0 0.0
        %4208 = vmatprep.subr.mxu0 0.0
        %4209 = vmatpush2.msra.mxu0 0.0
        %4210 = vmatprep.subr.mxu0 0.0
        %4211 = vmatpush2.msra.mxu0 0.0
        %4212 = vmatprep.subr.mxu0 0.0
        %4213 = vmatpush2.msra.mxu0 0.0
        %4214 = vmatprep.subr.mxu0 0.0
        %4215 = vmatpush2.msra.mxu0 0.0
        %4216 = vmatprep.subr.mxu0 0.0
        %4217 = vmatpush2.msra.mxu0 0.0
        %4218 = vmatprep.subr.mxu0 0.0
        %4219 = vmatpush2.msra.mxu0 0.0
        %4220 = vmatprep.subr.mxu0 0.0
        %4221 = vmatpush2.msra.mxu0 0.0
        %4222 = vmatprep.subr.mxu0 0.0
        %4223 = vmatpush2.msra.mxu0 0.0
        %4224 = vmatprep.subr.mxu0 0.0
        %4225 = vmatpush2.msra.mxu0 0.0
        %4226 = vmatprep.subr.mxu0 0.0
        %4227 = vmatpush2.msra.mxu0 0.0
        %4228 = vmatprep.subr.mxu0 0.0
        %4229 = vmatpush2.msra.mxu0 0.0
        %4230 = vmatprep.subr.mxu0 0.0
        %4231 = vmatpush2.msra.mxu0 0.0
        %4232 = vmatprep.mubr.f32.mxu0 0.0
        %v4233 = vand.u32 %v3827, 4294901760
        %4234 = vmatmul.mubr.f32.gmra.mxu0 %v4233
        %v4235 = vpop.f32.mrf.mxu0
        %v4236 = vadd.f32 %v4153, %v4235
        %v4237 = vpop.f32.mrf.mxu0
        %4238 = vdwg.mxu0
        %4239 = vmatprep.subr.mxu0 0.0
        %4240 = vmatpush1.msra.mxu0 0.0
        %4241 = vmatprep.subr.mxu0 0.0
        %4242 = vmatpush1.msra.mxu0 0.0
        %4243 = vmatprep.subr.mxu0 0.0
        %4244 = vmatpush1.msra.mxu0 0.0
        %4245 = vmatprep.subr.mxu0 0.0
        %4246 = vmatpush1.msra.mxu0 0.0
        %4247 = vmatprep.subr.mxu0 0.0
        %4248 = vmatpush1.msra.mxu0 0.0
        %4249 = vmatprep.subr.mxu0 0.0
        %4250 = vmatpush1.msra.mxu0 0.0
        %4251 = vmatprep.subr.mxu0 0.0
        %4252 = vmatpush1.msra.mxu0 0.0
        %4253 = vmatprep.subr.mxu0 0.0
        %4254 = vmatpush1.msra.mxu0 0.0
        %4255 = vmatprep.subr.mxu0 0.0
        %4256 = vmatpush1.msra.mxu0 0.0
        %4257 = vmatprep.subr.mxu0 0.0
        %4258 = vmatpush1.msra.mxu0 0.0
        %4259 = vmatprep.subr.mxu0 0.0
        %4260 = vmatpush1.msra.mxu0 0.0
        %4261 = vmatprep.subr.mxu0 0.0
        %4262 = vmatpush1.msra.mxu0 0.0
        %4263 = vmatprep.subr.mxu0 0.0
        %v4264 = vand.u32 %v3825, 4294901760
        %4265 = vmatpush1.msra.mxu0 %v4264
        %4266 = vmatprep.subr.mxu0 0.0
        %v4267 = vand.u32 %v3824, 4294901760
        %4268 = vmatpush1.msra.mxu0 %v4267
        %4269 = vmatprep.subr.mxu0 0.0
        %v4270 = vand.u32 %v3823, 4294901760
        %4271 = vmatpush1.msra.mxu0 %v4270
        %4272 = vmatprep.subr.mxu0 0.0
        %v4273 = vand.u32 %v3822, 4294901760
        %4274 = vmatpush1.msra.mxu0 %v4273
        %4275 = vmatprep.subr.mxu0 0.0
        %4276 = vmatpush2.msra.mxu0 0.0
        %4277 = vmatprep.subr.mxu0 0.0
        %4278 = vmatpush2.msra.mxu0 0.0
        %4279 = vmatprep.subr.mxu0 0.0
        %4280 = vmatpush2.msra.mxu0 0.0
        %4281 = vmatprep.subr.mxu0 0.0
        %4282 = vmatpush2.msra.mxu0 0.0
        %4283 = vmatprep.subr.mxu0 0.0
        %4284 = vmatpush2.msra.mxu0 0.0
        %4285 = vmatprep.subr.mxu0 0.0
        %4286 = vmatpush2.msra.mxu0 0.0
        %4287 = vmatprep.subr.mxu0 0.0
        %4288 = vmatpush2.msra.mxu0 0.0
        %4289 = vmatprep.subr.mxu0 0.0
        %4290 = vmatpush2.msra.mxu0 0.0
        %4291 = vmatprep.subr.mxu0 0.0
        %4292 = vmatpush2.msra.mxu0 0.0
        %4293 = vmatprep.subr.mxu0 0.0
        %4294 = vmatpush2.msra.mxu0 0.0
        %4295 = vmatprep.subr.mxu0 0.0
        %4296 = vmatpush2.msra.mxu0 0.0
        %4297 = vmatprep.subr.mxu0 0.0
        %4298 = vmatpush2.msra.mxu0 0.0
        %4299 = vmatprep.subr.mxu0 0.0
        %4300 = vmatpush2.msra.mxu0 0.0
        %4301 = vmatprep.subr.mxu0 0.0
        %4302 = vmatpush2.msra.mxu0 0.0
        %4303 = vmatprep.subr.mxu0 0.0
        %4304 = vmatpush2.msra.mxu0 0.0
        %4305 = vmatprep.subr.mxu0 0.0
        %4306 = vmatpush2.msra.mxu0 0.0
        %4307 = vmatprep.mubr.f32.mxu0 0.0
        %v4308 = vand.u32 %v3827, 4294901760
        %4309 = vmatmul.mubr.f32.gmra.mxu0 %v4308
        %v4310 = vpop.f32.mrf.mxu0
        %v4311 = vadd.f32 %v4236, %v4310
        %v4312 = vpop.f32.mrf.mxu0
        %4313 = vdwg.mxu0
        %vm4314 = vcmp.gt.f32.partialorder %v4311, 0.0
        %v4315 = vmin.f32 %v4311, 0.0
        %v4316 = vmul.f32 %v4315, 1.442695
        %v4317 = vpow.pop %v4316
        %v4318 = vsub.f32 %v4317, 1.0
        %v4319 = vsel %vm4314, %v4311, %v4318
        %4320 = vst.msk [vmem:[%s336] sm:$0xff] %vm352, %v4319
        %s4321 = sand.u32 %s230, 1
        %s4322 = scalar_lea.sflag [#allocation3], %s4321
        %s4323 = sand.u32 %s230, 1
        %s4324 = smul.addr %s4323, 8
        %s4325 = scalar_lea.vmem [#allocation2], %s4324
        // Predicated region
        $region57: #{decode_cora.1} parent=55 // pred_check
          %p4326 = pneg %p240
        $region58: #{decode_cora.1} parent=55 // pred_check_branch
          %4328 = sbr.rel (%p4326) target = $region60
        $region59: #{decode_cora.1} parent=55 // pred_region
          %s4330 = ssub.s32 128, 128
          %4331 = vsyncadd %s4322, %s4330
          %s4332 = smul.addr %s23, 128
          %s4333 = scalar_lea.hbm %s9, %s4332
          %s4335 = sshll.u32 %s4325, 4
          %s4336 = int_to_ptr.vmem [resolvable:$true] %s4335
          %4338 = dma.vmem_to_hbm [thread:$0]  %s4336, 128, %s4333, %s4322
        $region60: #{decode_cora.1} parent=55 // pred_fallthru
          _
      $region56: #{decode_cora.1} parent=5 // pred_fallthru
        _
      %p4339 = scmp.le.s32.totalorder 2, %s18
      // Predicated region
      $region61: #{decode_cora.1} parent=5 // pred_check
        %p4340 = pneg %p4339
      $region62: #{decode_cora.1} parent=5 // pred_check_branch
        %4342 = sbr.rel (%p4340) target = $region64
      $region63: #{decode_cora.1} parent=5 // pred_region
        %s4343 = ssub.s32 %s18, 2
        // Predicated region
        $region65: #{decode_cora.1} parent=63 // pred_check
          %p4344 = pneg %p246
        $region66: #{decode_cora.1} parent=63 // pred_check_branch
          %4346 = sbr.rel (%p4344) target = $region68
        $region67: #{decode_cora.1} parent=63 // pred_region
          %s4347 = sand.u32 %s231, 1
          %s4348 = scalar_lea.sflag [#allocation3], %s4347
          %s4349 = sand.u32 %s231, 1
          %s4350 = smul.addr %s4349, 8
          %s4351 = scalar_lea.vmem [#allocation2], %s4350
          %4352 = dma.done %s4348, 128
        $region68: #{decode_cora.1} parent=63 // pred_fallthru
          _
      $region64: #{decode_cora.1} parent=5 // pred_fallthru
        _
    $region6: #{decode_cora.1} parent=1 // loop_footer
      %s22 = sadd.s32 1, %s18
    $region7: #{decode_cora.1} parent=1 // loop_footer_branch
      %17 = sbr.rel target = $region3
    $region8: #{decode_cora.1} parent=1 // loop_exit
      _
    %4353 = vsyncpa [#allocation3], 1
    %s4354 = scalar_lea.sflag [#allocation3], 1
    %4355 = vsyncpa %s4354, 1

</llo_original>
